<compile_context>
chip_gen: v5e
topology: v5e:2x2
jax: 0.10.0
libtpu: 0.0.40
codegen_flags: <defaults>
</compile_context>

<pallas_src>
import functools

import jax
import jax.numpy as jnp
from jax.experimental import pallas as pl
from jax.experimental.pallas import tpu as pltpu

# Module dimensions (from torch.nn.Linear(9216, 10))
IN_FEATURES = 9216
OUT_FEATURES = 10
_N_PAD = 128          # lane-dense padded width of the weight slab
_MAX_TB = 512         # batch-tile cap: 512x9216 f32 double-buffered ~ 36 MiB


def _sigmoid_compute_dtype():
    """bf16 sigmoid on v6e/v7x (bf16 VPU/EUP); f32 on older generations."""
    try:
        kind = jax.devices()[0].device_kind.lower()
    except Exception:
        return jnp.bfloat16
    if any(tag in kind for tag in ("v2", "v3", "v4", "v5")):
        return jnp.float32
    return jnp.bfloat16


def _sigmoid_linear_kernel(x_ref, w_ref, b_ref, o_ref, *, compute_dtype):
    # sigmoid(x) = 0.5 * tanh(0.5 * x) + 0.5  -> single EUP op, no f32 divide.
    half = jnp.asarray(0.5, compute_dtype)
    x = x_ref[...].astype(compute_dtype)                   # (TB, K)
    v1 = half * jnp.tanh(half * x) + half                  # sigmoid
    # Standard-form MXU matmul against the lane-dense, VMEM-resident weight.
    acc = jnp.dot(v1.astype(jnp.bfloat16), w_ref[...],     # (TB,K) @ (K,128)
                  preferred_element_type=jnp.float32)      # (TB, 128) f32
    o_ref[...] = acc[:, :OUT_FEATURES] + b_ref[...]        # (TB, 10) + (1, 10)


def _pick_tb(batch):
    """Batch tile: <= 512, multiple of 8 sublanes, >= 2 tiles for moderate B."""
    if batch <= 16:
        return batch                       # single tiny tile; block == full dim
    tb = pl.cdiv(batch, 2)                 # aim for >= 2 grid steps (megacore)
    tb = ((tb + 7) // 8) * 8               # sublane multiple
    return min(tb, _MAX_TB)


def sigmoid_linear(x_flat, weight_padded, bias_row):
    """x_flat: (B, K) f32; weight_padded: (K, 128) bf16; bias_row: (1, 10) f32."""
    B, K = x_flat.shape
    n_pad = weight_padded.shape[1]

    tb = _pick_tb(B)
    grid_b = pl.cdiv(B, tb)
    # 2x x-tile (double-buffered) + 2x W + out/bias, with headroom.
    vmem_limit = (48 if tb > 256 else 32) * 1024 * 1024

    kernel = functools.partial(_sigmoid_linear_kernel,
                               compute_dtype=_sigmoid_compute_dtype())

    return pl.pallas_call(
        kernel,
        out_shape=jax.ShapeDtypeStruct((B, OUT_FEATURES), jnp.float32),
        grid=(grid_b,),
        in_specs=[
            pl.BlockSpec((tb, K), lambda i: (i, 0)),            # x: streamed over B
            pl.BlockSpec((K, n_pad), lambda i: (0, 0)),         # W: VMEM-resident
            pl.BlockSpec((1, OUT_FEATURES), lambda i: (0, 0)),  # bias row
        ],
        out_specs=pl.BlockSpec((tb, OUT_FEATURES), lambda i: (i, 0)),
        compiler_params=pltpu.CompilerParams(
            dimension_semantics=("parallel",),
            vmem_limit_bytes=vmem_limit),
    )(x_flat, weight_padded, bias_row)


class Model:
    """JAX/Pallas equivalent of the PyTorch Model (sigmoid -> flatten -> Linear)."""

    def __init__(self, key):
        kw, kb = jax.random.split(key)
        # torch.nn.Linear default init: U(-1/sqrt(K), 1/sqrt(K))
        bound = 1.0 / (IN_FEATURES ** 0.5)
        w_f32 = jax.random.uniform(
            kw, (OUT_FEATURES, IN_FEATURES), jnp.float32, -bound, bound)
        b_f32 = jax.random.uniform(
            kb, (OUT_FEATURES,), jnp.float32, -bound, bound)
        # Kernel-ready layouts, prepared once (not on the call path):
        # weight: (K, 128) bf16, lane-dense, zero-padded beyond column N-1.
        w_kn = jnp.transpose(w_f32)                                    # (K, N)
        self.weight = jnp.pad(
            w_kn, ((0, 0), (0, _N_PAD - OUT_FEATURES))).astype(jnp.bfloat16)
        self.bias_row = b_f32.reshape(1, OUT_FEATURES)                 # (1, N)

    def __call__(self, x1):
        # x1: (B, 1, 2, 4, 1152) -> sigmoid -> flatten -> linear.
        B = x1.shape[0]
        x_flat = x1.reshape(B, -1)                  # same as .view(B, -1)
        assert x_flat.shape[1] == IN_FEATURES
        return sigmoid_linear(x_flat, self.weight, self.bias_row)


if __name__ == "__main__":
    key = jax.random.PRNGKey(0)
    k_in, k_model = jax.random.split(key)

    # Small batch; 5-D shape whose flatten matches the Linear's 9216 in-features.
    B = 2
    x1 = jax.random.normal(k_in, (B, 1, 2, 4, 1152), jnp.float32)

    model = Model(k_model)
    out = model(x1)
    out = jax.block_until_ready(out)

    # Plain-JAX reference mirroring the kernel's precision choices
    # (compute-dtype tanh-sigmoid, bf16 operands on the MXU, f32 accumulate).
    cdt = _sigmoid_compute_dtype()
    x_flat = x1.reshape(B, -1)
    half = jnp.asarray(0.5, cdt)
    v1 = half * jnp.tanh(half * x_flat.astype(cdt)) + half
    v1 = v1.astype(jnp.bfloat16).astype(jnp.float32)
    w = model.weight[:, :OUT_FEATURES].astype(jnp.float32)             # (K, N)
    ref = v1 @ w + model.bias_row

    assert out.shape == (B, OUT_FEATURES)
    err = float(jnp.max(jnp.abs(out - ref)))
    assert jnp.allclose(out, ref, atol=2e-2, rtol=2e-2), f"max abs err {err}"

    print("KERNEL_OK")
</pallas_src>

<mosaic_0001>
module attributes {stable_mosaic.version = 11 : i64} {
  func.func @_sigmoid_linear_kernel(%arg0: i32, %arg1: memref<2x9216xf32, #tpu.memory_space<vmem>>, %arg2: memref<9216x128xbf16, #tpu.memory_space<vmem>>, %arg3: memref<1x10xf32, #tpu.memory_space<vmem>>, %arg4: memref<2x10xf32, #tpu.memory_space<vmem>>) attributes {dimension_semantics = [#tpu.dimension_semantics<parallel>], iteration_bounds = array<i64: 1>, scalar_prefetch = 0 : i64, scratch_operands = 0 : i64, tpu.core_type = #tpu.core_type<tc>, window_params = [{transform_indices = @transform_0, window_bounds = array<i64: 2, 9216>}, {pipeline_mode = #tpu.pipeline_mode<synchronous>, transform_indices = @transform_1, window_bounds = array<i64: 9216, 128>}, {pipeline_mode = #tpu.pipeline_mode<synchronous>, transform_indices = @transform_2, window_bounds = array<i64: 1, 10>}, {transform_indices = @transform_3, window_bounds = array<i64: 2, 10>}]} {
    %c0 = arith.constant 0 : index
    %c0_0 = arith.constant 0 : index
    %0 = vector.load %arg1[%c0, %c0_0] : memref<2x9216xf32, #tpu.memory_space<vmem>>, vector<2x9216xf32>
    %1 = arith.truncf %0 : vector<2x9216xf32> to vector<2x9216xbf16>
    %cst = arith.constant 5.000000e-01 : bf16
    %2 = vector.broadcast %cst : bf16 to vector<2x9216xbf16>
    %3 = arith.mulf %2, %1 : vector<2x9216xbf16>
    %4 = math.tanh %3 : vector<2x9216xbf16>
    %cst_1 = arith.constant 5.000000e-01 : bf16
    %5 = vector.broadcast %cst_1 : bf16 to vector<2x9216xbf16>
    %6 = arith.mulf %5, %4 : vector<2x9216xbf16>
    %cst_2 = arith.constant 5.000000e-01 : bf16
    %7 = vector.broadcast %cst_2 : bf16 to vector<2x9216xbf16>
    %8 = arith.addf %6, %7 : vector<2x9216xbf16>
    %c0_3 = arith.constant 0 : index
    %c0_4 = arith.constant 0 : index
    %9 = vector.load %arg2[%c0_3, %c0_4] : memref<9216x128xbf16, #tpu.memory_space<vmem>>, vector<9216x128xbf16>
    %cst_5 = arith.constant dense<0.000000e+00> : vector<2x128xf32>
    %10 = tpu.matmul %8, %9, %cst_5 {dimension_numbers = #tpu.dot_dimension_numbers<[1], [0], [0], [1], [0, 0, 1, 1], [], []>} : vector<2x9216xbf16>, vector<9216x128xbf16>, vector<2x128xf32> -> vector<2x128xf32>
    %11 = vector.extract_strided_slice %10 {offsets = [0, 0], sizes = [2, 10], strides = [1, 1]} : vector<2x128xf32> to vector<2x10xf32>
    %c0_6 = arith.constant 0 : index
    %c0_7 = arith.constant 0 : index
    %12 = vector.load %arg3[%c0_6, %c0_7] : memref<1x10xf32, #tpu.memory_space<vmem>>, vector<1x10xf32>
    %13 = vector.broadcast %12 : vector<1x10xf32> to vector<2x10xf32>
    %14 = arith.addf %11, %13 : vector<2x10xf32>
    %c0_8 = arith.constant 0 : index
    %c0_9 = arith.constant 0 : index
    %15 = vector.load %arg4[%c0_8, %c0_9] : memref<2x10xf32, #tpu.memory_space<vmem>>, vector<2x10xf32>
    tpu.vector_store %arg4[%c0_8, %c0_9], %14 {strides = array<i32>} : memref<2x10xf32, #tpu.memory_space<vmem>>, vector<2x10xf32>,
    return
  }
  func.func @transform_0(%arg0: i32) -> (i32, i32) {
    %c0_i32 = arith.constant 0 : i32
    %c0_i32_0 = arith.constant 0 : i32
    return %arg0, %c0_i32 : i32, i32
  }
  func.func @transform_1(%arg0: i32) -> (i32, i32) {
    %c0_i32 = arith.constant 0 : i32
    %c0_i32_0 = arith.constant 0 : i32
    %c0_i32_1 = arith.constant 0 : i32
    return %c0_i32, %c0_i32_0 : i32, i32
  }
  func.func @transform_2(%arg0: i32) -> (i32, i32) {
    %c0_i32 = arith.constant 0 : i32
    %c0_i32_0 = arith.constant 0 : i32
    %c0_i32_1 = arith.constant 0 : i32
    return %c0_i32, %c0_i32_0 : i32, i32
  }
  func.func @transform_3(%arg0: i32) -> (i32, i32) {
    %c0_i32 = arith.constant 0 : i32
    %c0_i32_0 = arith.constant 0 : i32
    return %arg0, %c0_i32 : i32, i32
  }
}

</mosaic_0001>

<llo_original>
// kernel: tpu_custom_call.1
$region0: #{tpu_custom_call.1}
  #allocation0 [shape = 'u32[]', space=smem, size = 0x4, offset = 0x4, fixed_abs, tag = 'smem constant byte address 0x4 - core index']
  #allocation1 [shape = 'u32[72,128]{1,0:T(1,128)}', space=vmem, size = 0x9000, scoped, tag = 'internal scratch']
  %s0 = inlined_call_operand.hbm [shape: f32[2,9216], index: 0, kind: input, shape index: {}]
  %s1 = inlined_call_operand.hbm [shape: bf16[9216,128], index: 1, kind: input, shape index: {}]
  %s2 = inlined_call_operand.hbm [shape: f32[1,10], index: 2, kind: input, shape index: {}]
  %s3 = inlined_call_operand.hbm [shape: f32[2,10], index: 3, kind: output, shape index: {}]
  %s4 = sld [smem:[#allocation0]]
  $region34: #{tpu_custom_call.1} parent=0
    _
  %s6 = ssub.s32 1, %s4
  %s7 = scalar_select 0, %s6, %s4
  $region1: #{tpu_custom_call.1} parent=0
    #allocation2 [shape = 'u8[73728]{0}', space=vmem, size = 0x12000, scoped, tag = 'input window, operand 0, single buffered']
    #allocation3 [shape = 's32[1]{0}', space=sflag, size = 0x4, scoped, tag = 'scoped memory for tpu_custom_call.1']
    #allocation4 [shape = 's32[1]{0}', space=sflag, size = 0x4, scoped, tag = 'scoped memory for tpu_custom_call.1']
    #allocation5 [shape = 'u8[2359296]{0}', space=vmem, size = 0x240000, scoped, tag = 'input window, operand 1, single buffered']
    #allocation6 [shape = 's32[1]{0}', space=sflag, size = 0x4, scoped, tag = 'scoped memory for tpu_custom_call.1']
    #allocation7 [shape = 'u8[512]{0}', space=vmem, size = 0x400, scoped, tag = 'input window, operand 2, single buffered']
    #allocation8 [shape = 'u8[1024]{0}', space=vmem, size = 0x400, scoped, tag = 'output window, operand 0, single buffered']
    %8 = vsyncpa [#allocation3], 0
    %9 = vsyncpa [#allocation6], 0
    %10 = vsyncpa [#allocation4], 0
    // Predicated region
    $region2: #{tpu_custom_call.1} parent=1 // pred_check
      _
    $region3: #{tpu_custom_call.1} parent=1 // pred_check_branch
      %12 = sbr.rel (0) target = $region5
    $region4: #{tpu_custom_call.1} parent=1 // pred_region
      %14 = vsyncadd [#allocation3], 0
      %s16 = sshll.u32 %s0, 4
      %s17 = int_to_ptr.hbm [resolvable:$true] %s16
      %s18 = sshll.u32 [#allocation2], 4
      %s19 = int_to_ptr.vmem [resolvable:$true] %s18
      %21 = dma.hbm_to_vmem [thread:$0]  %s17, 2304, %s19, [#allocation3]
    $region5: #{tpu_custom_call.1} parent=1 // pred_fallthru
      _
    // Predicated region
    $region6: #{tpu_custom_call.1} parent=1 // pred_check
      _
    $region7: #{tpu_custom_call.1} parent=1 // pred_check_branch
      %23 = sbr.rel (0) target = $region9
    $region8: #{tpu_custom_call.1} parent=1 // pred_region
      %25 = vsyncadd [#allocation6], 0
      %s26 = sshll.u32 %s1, 4
      %s27 = int_to_ptr.hbm [resolvable:$true] %s26
      %s28 = sshll.u32 [#allocation5], 4
      %s29 = int_to_ptr.vmem [resolvable:$true] %s28
      %34 = dma.hbm_to_vmem [thread:$0]  %s27, 73728, %s29, [#allocation6], 64, 64, 4
    $region9: #{tpu_custom_call.1} parent=1 // pred_fallthru
      _
    // Predicated region
    $region10: #{tpu_custom_call.1} parent=1 // pred_check
      _
    $region11: #{tpu_custom_call.1} parent=1 // pred_check_branch
      %36 = sbr.rel (0) target = $region13
    $region12: #{tpu_custom_call.1} parent=1 // pred_region
      %38 = vsyncadd [#allocation6], 0
      %s40 = sshll.u32 %s2, 4
      %s41 = int_to_ptr.hbm [resolvable:$true] %s40
      %s42 = sshll.u32 [#allocation7], 4
      %s43 = int_to_ptr.vmem [resolvable:$true] %s42
      %45 = dma.hbm_to_vmem [thread:$0]  %s41, 16, %s43, [#allocation6]
    $region13: #{tpu_custom_call.1} parent=1 // pred_fallthru
      _
    // Predicated region
    $region14: #{tpu_custom_call.1} parent=1 // pred_check
      _
    $region15: #{tpu_custom_call.1} parent=1 // pred_check_branch
      %47 = sbr.rel (0) target = $region17
    $region16: #{tpu_custom_call.1} parent=1 // pred_region
      %49 = dma.done [#allocation3], 2304
    $region17: #{tpu_custom_call.1} parent=1 // pred_fallthru
      _
    // Predicated region
    $region18: #{tpu_custom_call.1} parent=1 // pred_check
      _
    $region19: #{tpu_custom_call.1} parent=1 // pred_check_branch
      %51 = sbr.rel (0) target = $region21
    $region20: #{tpu_custom_call.1} parent=1 // pred_region
      %53 = dma.done [#allocation6], 73728
    $region21: #{tpu_custom_call.1} parent=1 // pred_fallthru
      _
    // Predicated region
    $region22: #{tpu_custom_call.1} parent=1 // pred_check
      _
    $region23: #{tpu_custom_call.1} parent=1 // pred_check_branch
      %55 = sbr.rel (0) target = $region25
    $region24: #{tpu_custom_call.1} parent=1 // pred_region
      %57 = dma.done [#allocation6], 16
    $region25: #{tpu_custom_call.1} parent=1 // pred_fallthru
      _
    %v58 = vld [vmem:[#allocation2] sm:$0xff]
    %v59 = vld [vmem:[#allocation2 + $0x8] sm:$0xff]
    %v60 = vld [vmem:[#allocation2 + $0x10] sm:$0xff]
    %v61 = vld [vmem:[#allocation2 + $0x18] sm:$0xff]
    %v62 = vld [vmem:[#allocation2 + $0x20] sm:$0xff]
    %v63 = vld [vmem:[#allocation2 + $0x28] sm:$0xff]
    %v64 = vld [vmem:[#allocation2 + $0x30] sm:$0xff]
    %v65 = vld [vmem:[#allocation2 + $0x38] sm:$0xff]
    %v66 = vld [vmem:[#allocation2 + $0x40] sm:$0xff]
    %v67 = vld [vmem:[#allocation2 + $0x48] sm:$0xff]
    %v68 = vld [vmem:[#allocation2 + $0x50] sm:$0xff]
    %v69 = vld [vmem:[#allocation2 + $0x58] sm:$0xff]
    %v70 = vld [vmem:[#allocation2 + $0x60] sm:$0xff]
    %v71 = vld [vmem:[#allocation2 + $0x68] sm:$0xff]
    %v72 = vld [vmem:[#allocation2 + $0x70] sm:$0xff]
    %v73 = vld [vmem:[#allocation2 + $0x78] sm:$0xff]
    %v74 = vld [vmem:[#allocation2 + $0x80] sm:$0xff]
    %v75 = vld [vmem:[#allocation2 + $0x88] sm:$0xff]
    %94 = vst [vmem:[#allocation1] ss:$4 sm:$0xff] %v58
    %s95 = scalar_lea.vmem [#allocation1], 32
    %96 = vst [vmem:[%s95] ss:$4 sm:$0xff] %v59
    %v97 = vld.sshfl [vmem:[#allocation1] sm:$0xff pattern:$0x73625140]
    %v98 = vld.sshfl [vmem:[#allocation1 + $0x8] sm:$0xff pattern:$0x73625140]
    %v99 = vld.sshfl [vmem:[#allocation1 + $0x10] sm:$0xff pattern:$0x73625140]
    %v100 = vld.sshfl [vmem:[#allocation1 + $0x18] sm:$0xff pattern:$0x73625140]
    %v101 = vld.sshfl [vmem:[#allocation1 + $0x20] sm:$0xff pattern:$0x73625140]
    %v102 = vld.sshfl [vmem:[#allocation1 + $0x28] sm:$0xff pattern:$0x73625140]
    %v103 = vld.sshfl [vmem:[#allocation1 + $0x30] sm:$0xff pattern:$0x73625140]
    %v104 = vld.sshfl [vmem:[#allocation1 + $0x38] sm:$0xff pattern:$0x73625140]
    %105 = vst [vmem:[#allocation1] ss:$4 sm:$0xff] %v60
    %106 = vst [vmem:[%s95] ss:$4 sm:$0xff] %v61
    %v107 = vld.sshfl [vmem:[#allocation1] sm:$0xff pattern:$0x73625140]
    %v108 = vld.sshfl [vmem:[#allocation1 + $0x8] sm:$0xff pattern:$0x73625140]
    %v109 = vld.sshfl [vmem:[#allocation1 + $0x10] sm:$0xff pattern:$0x73625140]
    %v110 = vld.sshfl [vmem:[#allocation1 + $0x18] sm:$0xff pattern:$0x73625140]
    %v111 = vld.sshfl [vmem:[#allocation1 + $0x20] sm:$0xff pattern:$0x73625140]
    %v112 = vld.sshfl [vmem:[#allocation1 + $0x28] sm:$0xff pattern:$0x73625140]
    %v113 = vld.sshfl [vmem:[#allocation1 + $0x30] sm:$0xff pattern:$0x73625140]
    %v114 = vld.sshfl [vmem:[#allocation1 + $0x38] sm:$0xff pattern:$0x73625140]
    %115 = vst [vmem:[#allocation1] ss:$4 sm:$0xff] %v62
    %116 = vst [vmem:[%s95] ss:$4 sm:$0xff] %v63
    %v117 = vld.sshfl [vmem:[#allocation1] sm:$0xff pattern:$0x73625140]
    %v118 = vld.sshfl [vmem:[#allocation1 + $0x8] sm:$0xff pattern:$0x73625140]
    %v119 = vld.sshfl [vmem:[#allocation1 + $0x10] sm:$0xff pattern:$0x73625140]
    %v120 = vld.sshfl [vmem:[#allocation1 + $0x18] sm:$0xff pattern:$0x73625140]
    %v121 = vld.sshfl [vmem:[#allocation1 + $0x20] sm:$0xff pattern:$0x73625140]
    %v122 = vld.sshfl [vmem:[#allocation1 + $0x28] sm:$0xff pattern:$0x73625140]
    %v123 = vld.sshfl [vmem:[#allocation1 + $0x30] sm:$0xff pattern:$0x73625140]
    %v124 = vld.sshfl [vmem:[#allocation1 + $0x38] sm:$0xff pattern:$0x73625140]
    %125 = vst [vmem:[#allocation1] ss:$4 sm:$0xff] %v64
    %126 = vst [vmem:[%s95] ss:$4 sm:$0xff] %v65
    %v127 = vld.sshfl [vmem:[#allocation1] sm:$0xff pattern:$0x73625140]
    %v128 = vld.sshfl [vmem:[#allocation1 + $0x8] sm:$0xff pattern:$0x73625140]
    %v129 = vld.sshfl [vmem:[#allocation1 + $0x10] sm:$0xff pattern:$0x73625140]
    %v130 = vld.sshfl [vmem:[#allocation1 + $0x18] sm:$0xff pattern:$0x73625140]
    %v131 = vld.sshfl [vmem:[#allocation1 + $0x20] sm:$0xff pattern:$0x73625140]
    %v132 = vld.sshfl [vmem:[#allocation1 + $0x28] sm:$0xff pattern:$0x73625140]
    %v133 = vld.sshfl [vmem:[#allocation1 + $0x30] sm:$0xff pattern:$0x73625140]
    %v134 = vld.sshfl [vmem:[#allocation1 + $0x38] sm:$0xff pattern:$0x73625140]
    %135 = vst [vmem:[#allocation1] ss:$4 sm:$0xff] %v66
    %136 = vst [vmem:[%s95] ss:$4 sm:$0xff] %v67
    %v137 = vld.sshfl [vmem:[#allocation1] sm:$0xff pattern:$0x73625140]
    %v138 = vld.sshfl [vmem:[#allocation1 + $0x8] sm:$0xff pattern:$0x73625140]
    %v139 = vld.sshfl [vmem:[#allocation1 + $0x10] sm:$0xff pattern:$0x73625140]
    %v140 = vld.sshfl [vmem:[#allocation1 + $0x18] sm:$0xff pattern:$0x73625140]
    %v141 = vld.sshfl [vmem:[#allocation1 + $0x20] sm:$0xff pattern:$0x73625140]
    %v142 = vld.sshfl [vmem:[#allocation1 + $0x28] sm:$0xff pattern:$0x73625140]
    %v143 = vld.sshfl [vmem:[#allocation1 + $0x30] sm:$0xff pattern:$0x73625140]
    %v144 = vld.sshfl [vmem:[#allocation1 + $0x38] sm:$0xff pattern:$0x73625140]
    %145 = vst [vmem:[#allocation1] ss:$4 sm:$0xff] %v68
    %146 = vst [vmem:[%s95] ss:$4 sm:$0xff] %v69
    %v147 = vld.sshfl [vmem:[#allocation1] sm:$0xff pattern:$0x73625140]
    %v148 = vld.sshfl [vmem:[#allocation1 + $0x8] sm:$0xff pattern:$0x73625140]
    %v149 = vld.sshfl [vmem:[#allocation1 + $0x10] sm:$0xff pattern:$0x73625140]
    %v150 = vld.sshfl [vmem:[#allocation1 + $0x18] sm:$0xff pattern:$0x73625140]
    %v151 = vld.sshfl [vmem:[#allocation1 + $0x20] sm:$0xff pattern:$0x73625140]
    %v152 = vld.sshfl [vmem:[#allocation1 + $0x28] sm:$0xff pattern:$0x73625140]
    %v153 = vld.sshfl [vmem:[#allocation1 + $0x30] sm:$0xff pattern:$0x73625140]
    %v154 = vld.sshfl [vmem:[#allocation1 + $0x38] sm:$0xff pattern:$0x73625140]
    %155 = vst [vmem:[#allocation1] ss:$4 sm:$0xff] %v70
    %156 = vst [vmem:[%s95] ss:$4 sm:$0xff] %v71
    %v157 = vld.sshfl [vmem:[#allocation1] sm:$0xff pattern:$0x73625140]
    %v158 = vld.sshfl [vmem:[#allocation1 + $0x8] sm:$0xff pattern:$0x73625140]
    %v159 = vld.sshfl [vmem:[#allocation1 + $0x10] sm:$0xff pattern:$0x73625140]
    %v160 = vld.sshfl [vmem:[#allocation1 + $0x18] sm:$0xff pattern:$0x73625140]
    %v161 = vld.sshfl [vmem:[#allocation1 + $0x20] sm:$0xff pattern:$0x73625140]
    %v162 = vld.sshfl [vmem:[#allocation1 + $0x28] sm:$0xff pattern:$0x73625140]
    %v163 = vld.sshfl [vmem:[#allocation1 + $0x30] sm:$0xff pattern:$0x73625140]
    %v164 = vld.sshfl [vmem:[#allocation1 + $0x38] sm:$0xff pattern:$0x73625140]
    %165 = vst [vmem:[#allocation1] ss:$4 sm:$0xff] %v72
    %166 = vst [vmem:[%s95] ss:$4 sm:$0xff] %v73
    %v167 = vld.sshfl [vmem:[#allocation1] sm:$0xff pattern:$0x73625140]
    %v168 = vld.sshfl [vmem:[#allocation1 + $0x8] sm:$0xff pattern:$0x73625140]
    %v169 = vld.sshfl [vmem:[#allocation1 + $0x10] sm:$0xff pattern:$0x73625140]
    %v170 = vld.sshfl [vmem:[#allocation1 + $0x18] sm:$0xff pattern:$0x73625140]
    %v171 = vld.sshfl [vmem:[#allocation1 + $0x20] sm:$0xff pattern:$0x73625140]
    %v172 = vld.sshfl [vmem:[#allocation1 + $0x28] sm:$0xff pattern:$0x73625140]
    %v173 = vld.sshfl [vmem:[#allocation1 + $0x30] sm:$0xff pattern:$0x73625140]
    %v174 = vld.sshfl [vmem:[#allocation1 + $0x38] sm:$0xff pattern:$0x73625140]
    %175 = vst [vmem:[#allocation1] ss:$4 sm:$0xff] %v74
    %176 = vst [vmem:[%s95] ss:$4 sm:$0xff] %v75
    %v177 = vld.sshfl [vmem:[#allocation1] sm:$0xff pattern:$0x73625140]
    %v178 = vld.sshfl [vmem:[#allocation1 + $0x8] sm:$0xff pattern:$0x73625140]
    %v179 = vld.sshfl [vmem:[#allocation1 + $0x10] sm:$0xff pattern:$0x73625140]
    %v180 = vld.sshfl [vmem:[#allocation1 + $0x18] sm:$0xff pattern:$0x73625140]
    %v181 = vld.sshfl [vmem:[#allocation1 + $0x20] sm:$0xff pattern:$0x73625140]
    %v182 = vld.sshfl [vmem:[#allocation1 + $0x28] sm:$0xff pattern:$0x73625140]
    %v183 = vld.sshfl [vmem:[#allocation1 + $0x30] sm:$0xff pattern:$0x73625140]
    %v184 = vld.sshfl [vmem:[#allocation1 + $0x38] sm:$0xff pattern:$0x73625140]
    %v257 = vpack.c.bf16 %v98, %v97
    %v258 = vpack.c.bf16 %v100, %v99
    %v259 = vpack.c.bf16 %v102, %v101
    %v260 = vpack.c.bf16 %v104, %v103
    %v261 = vpack.c.bf16 %v108, %v107
    %v262 = vpack.c.bf16 %v110, %v109
    %v263 = vpack.c.bf16 %v112, %v111
    %v264 = vpack.c.bf16 %v114, %v113
    %v265 = vpack.c.bf16 %v118, %v117
    %v266 = vpack.c.bf16 %v120, %v119
    %v267 = vpack.c.bf16 %v122, %v121
    %v268 = vpack.c.bf16 %v124, %v123
    %v269 = vpack.c.bf16 %v128, %v127
    %v270 = vpack.c.bf16 %v130, %v129
    %v271 = vpack.c.bf16 %v132, %v131
    %v272 = vpack.c.bf16 %v134, %v133
    %v273 = vpack.c.bf16 %v138, %v137
    %v274 = vpack.c.bf16 %v140, %v139
    %v275 = vpack.c.bf16 %v142, %v141
    %v276 = vpack.c.bf16 %v144, %v143
    %v277 = vpack.c.bf16 %v148, %v147
    %v278 = vpack.c.bf16 %v150, %v149
    %v279 = vpack.c.bf16 %v152, %v151
    %v280 = vpack.c.bf16 %v154, %v153
    %v281 = vpack.c.bf16 %v158, %v157
    %v282 = vpack.c.bf16 %v160, %v159
    %v283 = vpack.c.bf16 %v162, %v161
    %v284 = vpack.c.bf16 %v164, %v163
    %v285 = vpack.c.bf16 %v168, %v167
    %v286 = vpack.c.bf16 %v170, %v169
    %v287 = vpack.c.bf16 %v172, %v171
    %v288 = vpack.c.bf16 %v174, %v173
    %v289 = vpack.c.bf16 %v178, %v177
    %v290 = vpack.c.bf16 %v180, %v179
    %v291 = vpack.c.bf16 %v182, %v181
    %v292 = vpack.c.bf16 %v184, %v183
    %v293 = vunpack.c.l.bf16 %v257
    %v294 = vunpack.c.h.bf16 %v257
    %v295 = vunpack.c.l.bf16 %v258
    %v296 = vunpack.c.h.bf16 %v258
    %v297 = vunpack.c.l.bf16 %v259
    %v298 = vunpack.c.h.bf16 %v259
    %v299 = vunpack.c.l.bf16 %v260
    %v300 = vunpack.c.h.bf16 %v260
    %v301 = vunpack.c.l.bf16 %v261
    %v302 = vunpack.c.h.bf16 %v261
    %v303 = vunpack.c.l.bf16 %v262
    %v304 = vunpack.c.h.bf16 %v262
    %v305 = vunpack.c.l.bf16 %v263
    %v306 = vunpack.c.h.bf16 %v263
    %v307 = vunpack.c.l.bf16 %v264
    %v308 = vunpack.c.h.bf16 %v264
    %v309 = vunpack.c.l.bf16 %v265
    %v310 = vunpack.c.h.bf16 %v265
    %v311 = vunpack.c.l.bf16 %v266
    %v312 = vunpack.c.h.bf16 %v266
    %v313 = vunpack.c.l.bf16 %v267
    %v314 = vunpack.c.h.bf16 %v267
    %v315 = vunpack.c.l.bf16 %v268
    %v316 = vunpack.c.h.bf16 %v268
    %v317 = vunpack.c.l.bf16 %v269
    %v318 = vunpack.c.h.bf16 %v269
    %v319 = vunpack.c.l.bf16 %v270
    %v320 = vunpack.c.h.bf16 %v270
    %v321 = vunpack.c.l.bf16 %v271
    %v322 = vunpack.c.h.bf16 %v271
    %v323 = vunpack.c.l.bf16 %v272
    %v324 = vunpack.c.h.bf16 %v272
    %v325 = vunpack.c.l.bf16 %v273
    %v326 = vunpack.c.h.bf16 %v273
    %v327 = vunpack.c.l.bf16 %v274
    %v328 = vunpack.c.h.bf16 %v274
    %v329 = vunpack.c.l.bf16 %v275
    %v330 = vunpack.c.h.bf16 %v275
    %v331 = vunpack.c.l.bf16 %v276
    %v332 = vunpack.c.h.bf16 %v276
    %v333 = vunpack.c.l.bf16 %v277
    %v334 = vunpack.c.h.bf16 %v277
    %v335 = vunpack.c.l.bf16 %v278
    %v336 = vunpack.c.h.bf16 %v278
    %v337 = vunpack.c.l.bf16 %v279
    %v338 = vunpack.c.h.bf16 %v279
    %v339 = vunpack.c.l.bf16 %v280
    %v340 = vunpack.c.h.bf16 %v280
    %v341 = vunpack.c.l.bf16 %v281
    %v342 = vunpack.c.h.bf16 %v281
    %v343 = vunpack.c.l.bf16 %v282
    %v344 = vunpack.c.h.bf16 %v282
    %v345 = vunpack.c.l.bf16 %v283
    %v346 = vunpack.c.h.bf16 %v283
    %v347 = vunpack.c.l.bf16 %v284
    %v348 = vunpack.c.h.bf16 %v284
    %v349 = vunpack.c.l.bf16 %v285
    %v350 = vunpack.c.h.bf16 %v285
    %v351 = vunpack.c.l.bf16 %v286
    %v352 = vunpack.c.h.bf16 %v286
    %v353 = vunpack.c.l.bf16 %v287
    %v354 = vunpack.c.h.bf16 %v287
    %v355 = vunpack.c.l.bf16 %v288
    %v356 = vunpack.c.h.bf16 %v288
    %v357 = vunpack.c.l.bf16 %v289
    %v358 = vunpack.c.h.bf16 %v289
    %v359 = vunpack.c.l.bf16 %v290
    %v360 = vunpack.c.h.bf16 %v290
    %v361 = vunpack.c.l.bf16 %v291
    %v362 = vunpack.c.h.bf16 %v291
    %v363 = vunpack.c.l.bf16 %v292
    %v364 = vunpack.c.h.bf16 %v292
    %v365 = vmul.f32 %v293, 0.5
    %v366 = vmul.f32 %v294, 0.5
    %v367 = vmul.f32 %v295, 0.5
    %v368 = vmul.f32 %v296, 0.5
    %v369 = vmul.f32 %v297, 0.5
    %v370 = vmul.f32 %v298, 0.5
    %v371 = vmul.f32 %v299, 0.5
    %v372 = vmul.f32 %v300, 0.5
    %v373 = vmul.f32 %v301, 0.5
    %v374 = vmul.f32 %v302, 0.5
    %v375 = vmul.f32 %v303, 0.5
    %v376 = vmul.f32 %v304, 0.5
    %v377 = vmul.f32 %v305, 0.5
    %v378 = vmul.f32 %v306, 0.5
    %v379 = vmul.f32 %v307, 0.5
    %v380 = vmul.f32 %v308, 0.5
    %v381 = vmul.f32 %v309, 0.5
    %v382 = vmul.f32 %v310, 0.5
    %v383 = vmul.f32 %v311, 0.5
    %v384 = vmul.f32 %v312, 0.5
    %v385 = vmul.f32 %v313, 0.5
    %v386 = vmul.f32 %v314, 0.5
    %v387 = vmul.f32 %v315, 0.5
    %v388 = vmul.f32 %v316, 0.5
    %v389 = vmul.f32 %v317, 0.5
    %v390 = vmul.f32 %v318, 0.5
    %v391 = vmul.f32 %v319, 0.5
    %v392 = vmul.f32 %v320, 0.5
    %v393 = vmul.f32 %v321, 0.5
    %v394 = vmul.f32 %v322, 0.5
    %v395 = vmul.f32 %v323, 0.5
    %v396 = vmul.f32 %v324, 0.5
    %v397 = vmul.f32 %v325, 0.5
    %v398 = vmul.f32 %v326, 0.5
    %v399 = vmul.f32 %v327, 0.5
    %v400 = vmul.f32 %v328, 0.5
    %v401 = vmul.f32 %v329, 0.5
    %v402 = vmul.f32 %v330, 0.5
    %v403 = vmul.f32 %v331, 0.5
    %v404 = vmul.f32 %v332, 0.5
    %v405 = vmul.f32 %v333, 0.5
    %v406 = vmul.f32 %v334, 0.5
    %v407 = vmul.f32 %v335, 0.5
    %v408 = vmul.f32 %v336, 0.5
    %v409 = vmul.f32 %v337, 0.5
    %v410 = vmul.f32 %v338, 0.5
    %v411 = vmul.f32 %v339, 0.5
    %v412 = vmul.f32 %v340, 0.5
    %v413 = vmul.f32 %v341, 0.5
    %v414 = vmul.f32 %v342, 0.5
    %v415 = vmul.f32 %v343, 0.5
    %v416 = vmul.f32 %v344, 0.5
    %v417 = vmul.f32 %v345, 0.5
    %v418 = vmul.f32 %v346, 0.5
    %v419 = vmul.f32 %v347, 0.5
    %v420 = vmul.f32 %v348, 0.5
    %v421 = vmul.f32 %v349, 0.5
    %v422 = vmul.f32 %v350, 0.5
    %v423 = vmul.f32 %v351, 0.5
    %v424 = vmul.f32 %v352, 0.5
    %v425 = vmul.f32 %v353, 0.5
    %v426 = vmul.f32 %v354, 0.5
    %v427 = vmul.f32 %v355, 0.5
    %v428 = vmul.f32 %v356, 0.5
    %v429 = vmul.f32 %v357, 0.5
    %v430 = vmul.f32 %v358, 0.5
    %v431 = vmul.f32 %v359, 0.5
    %v432 = vmul.f32 %v360, 0.5
    %v433 = vmul.f32 %v361, 0.5
    %v434 = vmul.f32 %v362, 0.5
    %v435 = vmul.f32 %v363, 0.5
    %v436 = vmul.f32 %v364, 0.5
    %v437 = vpack.c.bf16 %v366, %v365
    %v438 = vpack.c.bf16 %v368, %v367
    %v439 = vpack.c.bf16 %v370, %v369
    %v440 = vpack.c.bf16 %v372, %v371
    %v441 = vpack.c.bf16 %v374, %v373
    %v442 = vpack.c.bf16 %v376, %v375
    %v443 = vpack.c.bf16 %v378, %v377
    %v444 = vpack.c.bf16 %v380, %v379
    %v445 = vpack.c.bf16 %v382, %v381
    %v446 = vpack.c.bf16 %v384, %v383
    %v447 = vpack.c.bf16 %v386, %v385
    %v448 = vpack.c.bf16 %v388, %v387
    %v449 = vpack.c.bf16 %v390, %v389
    %v450 = vpack.c.bf16 %v392, %v391
    %v451 = vpack.c.bf16 %v394, %v393
    %v452 = vpack.c.bf16 %v396, %v395
    %v453 = vpack.c.bf16 %v398, %v397
    %v454 = vpack.c.bf16 %v400, %v399
    %v455 = vpack.c.bf16 %v402, %v401
    %v456 = vpack.c.bf16 %v404, %v403
    %v457 = vpack.c.bf16 %v406, %v405
    %v458 = vpack.c.bf16 %v408, %v407
    %v459 = vpack.c.bf16 %v410, %v409
    %v460 = vpack.c.bf16 %v412, %v411
    %v461 = vpack.c.bf16 %v414, %v413
    %v462 = vpack.c.bf16 %v416, %v415
    %v463 = vpack.c.bf16 %v418, %v417
    %v464 = vpack.c.bf16 %v420, %v419
    %v465 = vpack.c.bf16 %v422, %v421
    %v466 = vpack.c.bf16 %v424, %v423
    %v467 = vpack.c.bf16 %v426, %v425
    %v468 = vpack.c.bf16 %v428, %v427
    %v469 = vpack.c.bf16 %v430, %v429
    %v470 = vpack.c.bf16 %v432, %v431
    %v471 = vpack.c.bf16 %v434, %v433
    %v472 = vpack.c.bf16 %v436, %v435
    %v473 = vunpack.c.l.bf16 %v437
    %v474 = vunpack.c.h.bf16 %v437
    %v475 = vunpack.c.l.bf16 %v438
    %v476 = vunpack.c.h.bf16 %v438
    %v477 = vunpack.c.l.bf16 %v439
    %v478 = vunpack.c.h.bf16 %v439
    %v479 = vunpack.c.l.bf16 %v440
    %v480 = vunpack.c.h.bf16 %v440
    %v481 = vunpack.c.l.bf16 %v441
    %v482 = vunpack.c.h.bf16 %v441
    %v483 = vunpack.c.l.bf16 %v442
    %v484 = vunpack.c.h.bf16 %v442
    %v485 = vunpack.c.l.bf16 %v443
    %v486 = vunpack.c.h.bf16 %v443
    %v487 = vunpack.c.l.bf16 %v444
    %v488 = vunpack.c.h.bf16 %v444
    %v489 = vunpack.c.l.bf16 %v445
    %v490 = vunpack.c.h.bf16 %v445
    %v491 = vunpack.c.l.bf16 %v446
    %v492 = vunpack.c.h.bf16 %v446
    %v493 = vunpack.c.l.bf16 %v447
    %v494 = vunpack.c.h.bf16 %v447
    %v495 = vunpack.c.l.bf16 %v448
    %v496 = vunpack.c.h.bf16 %v448
    %v497 = vunpack.c.l.bf16 %v449
    %v498 = vunpack.c.h.bf16 %v449
    %v499 = vunpack.c.l.bf16 %v450
    %v500 = vunpack.c.h.bf16 %v450
    %v501 = vunpack.c.l.bf16 %v451
    %v502 = vunpack.c.h.bf16 %v451
    %v503 = vunpack.c.l.bf16 %v452
    %v504 = vunpack.c.h.bf16 %v452
    %v505 = vunpack.c.l.bf16 %v453
    %v506 = vunpack.c.h.bf16 %v453
    %v507 = vunpack.c.l.bf16 %v454
    %v508 = vunpack.c.h.bf16 %v454
    %v509 = vunpack.c.l.bf16 %v455
    %v510 = vunpack.c.h.bf16 %v455
    %v511 = vunpack.c.l.bf16 %v456
    %v512 = vunpack.c.h.bf16 %v456
    %v513 = vunpack.c.l.bf16 %v457
    %v514 = vunpack.c.h.bf16 %v457
    %v515 = vunpack.c.l.bf16 %v458
    %v516 = vunpack.c.h.bf16 %v458
    %v517 = vunpack.c.l.bf16 %v459
    %v518 = vunpack.c.h.bf16 %v459
    %v519 = vunpack.c.l.bf16 %v460
    %v520 = vunpack.c.h.bf16 %v460
    %v521 = vunpack.c.l.bf16 %v461
    %v522 = vunpack.c.h.bf16 %v461
    %v523 = vunpack.c.l.bf16 %v462
    %v524 = vunpack.c.h.bf16 %v462
    %v525 = vunpack.c.l.bf16 %v463
    %v526 = vunpack.c.h.bf16 %v463
    %v527 = vunpack.c.l.bf16 %v464
    %v528 = vunpack.c.h.bf16 %v464
    %v529 = vunpack.c.l.bf16 %v465
    %v530 = vunpack.c.h.bf16 %v465
    %v531 = vunpack.c.l.bf16 %v466
    %v532 = vunpack.c.h.bf16 %v466
    %v533 = vunpack.c.l.bf16 %v467
    %v534 = vunpack.c.h.bf16 %v467
    %v535 = vunpack.c.l.bf16 %v468
    %v536 = vunpack.c.h.bf16 %v468
    %v537 = vunpack.c.l.bf16 %v469
    %v538 = vunpack.c.h.bf16 %v469
    %v539 = vunpack.c.l.bf16 %v470
    %v540 = vunpack.c.h.bf16 %v470
    %v541 = vunpack.c.l.bf16 %v471
    %v542 = vunpack.c.h.bf16 %v471
    %v543 = vunpack.c.l.bf16 %v472
    %v544 = vunpack.c.h.bf16 %v472
    %v545 = vtanh.pop %v473
    %v546 = vtanh.pop %v474
    %v547 = vtanh.pop %v475
    %v548 = vtanh.pop %v476
    %v549 = vtanh.pop %v477
    %v550 = vtanh.pop %v478
    %v551 = vtanh.pop %v479
    %v552 = vtanh.pop %v480
    %v553 = vtanh.pop %v481
    %v554 = vtanh.pop %v482
    %v555 = vtanh.pop %v483
    %v556 = vtanh.pop %v484
    %v557 = vtanh.pop %v485
    %v558 = vtanh.pop %v486
    %v559 = vtanh.pop %v487
    %v560 = vtanh.pop %v488
    %v561 = vtanh.pop %v489
    %v562 = vtanh.pop %v490
    %v563 = vtanh.pop %v491
    %v564 = vtanh.pop %v492
    %v565 = vtanh.pop %v493
    %v566 = vtanh.pop %v494
    %v567 = vtanh.pop %v495
    %v568 = vtanh.pop %v496
    %v569 = vtanh.pop %v497
    %v570 = vtanh.pop %v498
    %v571 = vtanh.pop %v499
    %v572 = vtanh.pop %v500
    %v573 = vtanh.pop %v501
    %v574 = vtanh.pop %v502
    %v575 = vtanh.pop %v503
    %v576 = vtanh.pop %v504
    %v577 = vtanh.pop %v505
    %v578 = vtanh.pop %v506
    %v579 = vtanh.pop %v507
    %v580 = vtanh.pop %v508
    %v581 = vtanh.pop %v509
    %v582 = vtanh.pop %v510
    %v583 = vtanh.pop %v511
    %v584 = vtanh.pop %v512
    %v585 = vtanh.pop %v513
    %v586 = vtanh.pop %v514
    %v587 = vtanh.pop %v515
    %v588 = vtanh.pop %v516
    %v589 = vtanh.pop %v517
    %v590 = vtanh.pop %v518
    %v591 = vtanh.pop %v519
    %v592 = vtanh.pop %v520
    %v593 = vtanh.pop %v521
    %v594 = vtanh.pop %v522
    %v595 = vtanh.pop %v523
    %v596 = vtanh.pop %v524
    %v597 = vtanh.pop %v525
    %v598 = vtanh.pop %v526
    %v599 = vtanh.pop %v527
    %v600 = vtanh.pop %v528
    %v601 = vtanh.pop %v529
    %v602 = vtanh.pop %v530
    %v603 = vtanh.pop %v531
    %v604 = vtanh.pop %v532
    %v605 = vtanh.pop %v533
    %v606 = vtanh.pop %v534
    %v607 = vtanh.pop %v535
    %v608 = vtanh.pop %v536
    %v609 = vtanh.pop %v537
    %v610 = vtanh.pop %v538
    %v611 = vtanh.pop %v539
    %v612 = vtanh.pop %v540
    %v613 = vtanh.pop %v541
    %v614 = vtanh.pop %v542
    %v615 = vtanh.pop %v543
    %v616 = vtanh.pop %v544
    %v617 = vpack.c.bf16 %v546, %v545
    %v618 = vpack.c.bf16 %v548, %v547
    %v619 = vpack.c.bf16 %v550, %v549
    %v620 = vpack.c.bf16 %v552, %v551
    %v621 = vpack.c.bf16 %v554, %v553
    %v622 = vpack.c.bf16 %v556, %v555
    %v623 = vpack.c.bf16 %v558, %v557
    %v624 = vpack.c.bf16 %v560, %v559
    %v625 = vpack.c.bf16 %v562, %v561
    %v626 = vpack.c.bf16 %v564, %v563
    %v627 = vpack.c.bf16 %v566, %v565
    %v628 = vpack.c.bf16 %v568, %v567
    %v629 = vpack.c.bf16 %v570, %v569
    %v630 = vpack.c.bf16 %v572, %v571
    %v631 = vpack.c.bf16 %v574, %v573
    %v632 = vpack.c.bf16 %v576, %v575
    %v633 = vpack.c.bf16 %v578, %v577
    %v634 = vpack.c.bf16 %v580, %v579
    %v635 = vpack.c.bf16 %v582, %v581
    %v636 = vpack.c.bf16 %v584, %v583
    %v637 = vpack.c.bf16 %v586, %v585
    %v638 = vpack.c.bf16 %v588, %v587
    %v639 = vpack.c.bf16 %v590, %v589
    %v640 = vpack.c.bf16 %v592, %v591
    %v641 = vpack.c.bf16 %v594, %v593
    %v642 = vpack.c.bf16 %v596, %v595
    %v643 = vpack.c.bf16 %v598, %v597
    %v644 = vpack.c.bf16 %v600, %v599
    %v645 = vpack.c.bf16 %v602, %v601
    %v646 = vpack.c.bf16 %v604, %v603
    %v647 = vpack.c.bf16 %v606, %v605
    %v648 = vpack.c.bf16 %v608, %v607
    %v649 = vpack.c.bf16 %v610, %v609
    %v650 = vpack.c.bf16 %v612, %v611
    %v651 = vpack.c.bf16 %v614, %v613
    %v652 = vpack.c.bf16 %v616, %v615
    %v653 = vunpack.c.l.bf16 %v617
    %v654 = vunpack.c.h.bf16 %v617
    %v655 = vunpack.c.l.bf16 %v618
    %v656 = vunpack.c.h.bf16 %v618
    %v657 = vunpack.c.l.bf16 %v619
    %v658 = vunpack.c.h.bf16 %v619
    %v659 = vunpack.c.l.bf16 %v620
    %v660 = vunpack.c.h.bf16 %v620
    %v661 = vunpack.c.l.bf16 %v621
    %v662 = vunpack.c.h.bf16 %v621
    %v663 = vunpack.c.l.bf16 %v622
    %v664 = vunpack.c.h.bf16 %v622
    %v665 = vunpack.c.l.bf16 %v623
    %v666 = vunpack.c.h.bf16 %v623
    %v667 = vunpack.c.l.bf16 %v624
    %v668 = vunpack.c.h.bf16 %v624
    %v669 = vunpack.c.l.bf16 %v625
    %v670 = vunpack.c.h.bf16 %v625
    %v671 = vunpack.c.l.bf16 %v626
    %v672 = vunpack.c.h.bf16 %v626
    %v673 = vunpack.c.l.bf16 %v627
    %v674 = vunpack.c.h.bf16 %v627
    %v675 = vunpack.c.l.bf16 %v628
    %v676 = vunpack.c.h.bf16 %v628
    %v677 = vunpack.c.l.bf16 %v629
    %v678 = vunpack.c.h.bf16 %v629
    %v679 = vunpack.c.l.bf16 %v630
    %v680 = vunpack.c.h.bf16 %v630
    %v681 = vunpack.c.l.bf16 %v631
    %v682 = vunpack.c.h.bf16 %v631
    %v683 = vunpack.c.l.bf16 %v632
    %v684 = vunpack.c.h.bf16 %v632
    %v685 = vunpack.c.l.bf16 %v633
    %v686 = vunpack.c.h.bf16 %v633
    %v687 = vunpack.c.l.bf16 %v634
    %v688 = vunpack.c.h.bf16 %v634
    %v689 = vunpack.c.l.bf16 %v635
    %v690 = vunpack.c.h.bf16 %v635
    %v691 = vunpack.c.l.bf16 %v636
    %v692 = vunpack.c.h.bf16 %v636
    %v693 = vunpack.c.l.bf16 %v637
    %v694 = vunpack.c.h.bf16 %v637
    %v695 = vunpack.c.l.bf16 %v638
    %v696 = vunpack.c.h.bf16 %v638
    %v697 = vunpack.c.l.bf16 %v639
    %v698 = vunpack.c.h.bf16 %v639
    %v699 = vunpack.c.l.bf16 %v640
    %v700 = vunpack.c.h.bf16 %v640
    %v701 = vunpack.c.l.bf16 %v641
    %v702 = vunpack.c.h.bf16 %v641
    %v703 = vunpack.c.l.bf16 %v642
    %v704 = vunpack.c.h.bf16 %v642
    %v705 = vunpack.c.l.bf16 %v643
    %v706 = vunpack.c.h.bf16 %v643
    %v707 = vunpack.c.l.bf16 %v644
    %v708 = vunpack.c.h.bf16 %v644
    %v709 = vunpack.c.l.bf16 %v645
    %v710 = vunpack.c.h.bf16 %v645
    %v711 = vunpack.c.l.bf16 %v646
    %v712 = vunpack.c.h.bf16 %v646
    %v713 = vunpack.c.l.bf16 %v647
    %v714 = vunpack.c.h.bf16 %v647
    %v715 = vunpack.c.l.bf16 %v648
    %v716 = vunpack.c.h.bf16 %v648
    %v717 = vunpack.c.l.bf16 %v649
    %v718 = vunpack.c.h.bf16 %v649
    %v719 = vunpack.c.l.bf16 %v650
    %v720 = vunpack.c.h.bf16 %v650
    %v721 = vunpack.c.l.bf16 %v651
    %v722 = vunpack.c.h.bf16 %v651
    %v723 = vunpack.c.l.bf16 %v652
    %v724 = vunpack.c.h.bf16 %v652
    %v725 = vmul.f32 %v653, 0.5
    %v726 = vmul.f32 %v654, 0.5
    %v727 = vmul.f32 %v655, 0.5
    %v728 = vmul.f32 %v656, 0.5
    %v729 = vmul.f32 %v657, 0.5
    %v730 = vmul.f32 %v658, 0.5
    %v731 = vmul.f32 %v659, 0.5
    %v732 = vmul.f32 %v660, 0.5
    %v733 = vmul.f32 %v661, 0.5
    %v734 = vmul.f32 %v662, 0.5
    %v735 = vmul.f32 %v663, 0.5
    %v736 = vmul.f32 %v664, 0.5
    %v737 = vmul.f32 %v665, 0.5
    %v738 = vmul.f32 %v666, 0.5
    %v739 = vmul.f32 %v667, 0.5
    %v740 = vmul.f32 %v668, 0.5
    %v741 = vmul.f32 %v669, 0.5
    %v742 = vmul.f32 %v670, 0.5
    %v743 = vmul.f32 %v671, 0.5
    %v744 = vmul.f32 %v672, 0.5
    %v745 = vmul.f32 %v673, 0.5
    %v746 = vmul.f32 %v674, 0.5
    %v747 = vmul.f32 %v675, 0.5
    %v748 = vmul.f32 %v676, 0.5
    %v749 = vmul.f32 %v677, 0.5
    %v750 = vmul.f32 %v678, 0.5
    %v751 = vmul.f32 %v679, 0.5
    %v752 = vmul.f32 %v680, 0.5
    %v753 = vmul.f32 %v681, 0.5
    %v754 = vmul.f32 %v682, 0.5
    %v755 = vmul.f32 %v683, 0.5
    %v756 = vmul.f32 %v684, 0.5
    %v757 = vmul.f32 %v685, 0.5
    %v758 = vmul.f32 %v686, 0.5
    %v759 = vmul.f32 %v687, 0.5
    %v760 = vmul.f32 %v688, 0.5
    %v761 = vmul.f32 %v689, 0.5
    %v762 = vmul.f32 %v690, 0.5
    %v763 = vmul.f32 %v691, 0.5
    %v764 = vmul.f32 %v692, 0.5
    %v765 = vmul.f32 %v693, 0.5
    %v766 = vmul.f32 %v694, 0.5
    %v767 = vmul.f32 %v695, 0.5
    %v768 = vmul.f32 %v696, 0.5
    %v769 = vmul.f32 %v697, 0.5
    %v770 = vmul.f32 %v698, 0.5
    %v771 = vmul.f32 %v699, 0.5
    %v772 = vmul.f32 %v700, 0.5
    %v773 = vmul.f32 %v701, 0.5
    %v774 = vmul.f32 %v702, 0.5
    %v775 = vmul.f32 %v703, 0.5
    %v776 = vmul.f32 %v704, 0.5
    %v777 = vmul.f32 %v705, 0.5
    %v778 = vmul.f32 %v706, 0.5
    %v779 = vmul.f32 %v707, 0.5
    %v780 = vmul.f32 %v708, 0.5
    %v781 = vmul.f32 %v709, 0.5
    %v782 = vmul.f32 %v710, 0.5
    %v783 = vmul.f32 %v711, 0.5
    %v784 = vmul.f32 %v712, 0.5
    %v785 = vmul.f32 %v713, 0.5
    %v786 = vmul.f32 %v714, 0.5
    %v787 = vmul.f32 %v715, 0.5
    %v788 = vmul.f32 %v716, 0.5
    %v789 = vmul.f32 %v717, 0.5
    %v790 = vmul.f32 %v718, 0.5
    %v791 = vmul.f32 %v719, 0.5
    %v792 = vmul.f32 %v720, 0.5
    %v793 = vmul.f32 %v721, 0.5
    %v794 = vmul.f32 %v722, 0.5
    %v795 = vmul.f32 %v723, 0.5
    %v796 = vmul.f32 %v724, 0.5
    %v797 = vpack.c.bf16 %v726, %v725
    %v798 = vpack.c.bf16 %v728, %v727
    %v799 = vpack.c.bf16 %v730, %v729
    %v800 = vpack.c.bf16 %v732, %v731
    %v801 = vpack.c.bf16 %v734, %v733
    %v802 = vpack.c.bf16 %v736, %v735
    %v803 = vpack.c.bf16 %v738, %v737
    %v804 = vpack.c.bf16 %v740, %v739
    %v805 = vpack.c.bf16 %v742, %v741
    %v806 = vpack.c.bf16 %v744, %v743
    %v807 = vpack.c.bf16 %v746, %v745
    %v808 = vpack.c.bf16 %v748, %v747
    %v809 = vpack.c.bf16 %v750, %v749
    %v810 = vpack.c.bf16 %v752, %v751
    %v811 = vpack.c.bf16 %v754, %v753
    %v812 = vpack.c.bf16 %v756, %v755
    %v813 = vpack.c.bf16 %v758, %v757
    %v814 = vpack.c.bf16 %v760, %v759
    %v815 = vpack.c.bf16 %v762, %v761
    %v816 = vpack.c.bf16 %v764, %v763
    %v817 = vpack.c.bf16 %v766, %v765
    %v818 = vpack.c.bf16 %v768, %v767
    %v819 = vpack.c.bf16 %v770, %v769
    %v820 = vpack.c.bf16 %v772, %v771
    %v821 = vpack.c.bf16 %v774, %v773
    %v822 = vpack.c.bf16 %v776, %v775
    %v823 = vpack.c.bf16 %v778, %v777
    %v824 = vpack.c.bf16 %v780, %v779
    %v825 = vpack.c.bf16 %v782, %v781
    %v826 = vpack.c.bf16 %v784, %v783
    %v827 = vpack.c.bf16 %v786, %v785
    %v828 = vpack.c.bf16 %v788, %v787
    %v829 = vpack.c.bf16 %v790, %v789
    %v830 = vpack.c.bf16 %v792, %v791
    %v831 = vpack.c.bf16 %v794, %v793
    %v832 = vpack.c.bf16 %v796, %v795
    %v833 = vunpack.c.l.bf16 %v797
    %v834 = vunpack.c.h.bf16 %v797
    %v835 = vunpack.c.l.bf16 %v798
    %v836 = vunpack.c.h.bf16 %v798
    %v837 = vunpack.c.l.bf16 %v799
    %v838 = vunpack.c.h.bf16 %v799
    %v839 = vunpack.c.l.bf16 %v800
    %v840 = vunpack.c.h.bf16 %v800
    %v841 = vunpack.c.l.bf16 %v801
    %v842 = vunpack.c.h.bf16 %v801
    %v843 = vunpack.c.l.bf16 %v802
    %v844 = vunpack.c.h.bf16 %v802
    %v845 = vunpack.c.l.bf16 %v803
    %v846 = vunpack.c.h.bf16 %v803
    %v847 = vunpack.c.l.bf16 %v804
    %v848 = vunpack.c.h.bf16 %v804
    %v849 = vunpack.c.l.bf16 %v805
    %v850 = vunpack.c.h.bf16 %v805
    %v851 = vunpack.c.l.bf16 %v806
    %v852 = vunpack.c.h.bf16 %v806
    %v853 = vunpack.c.l.bf16 %v807
    %v854 = vunpack.c.h.bf16 %v807
    %v855 = vunpack.c.l.bf16 %v808
    %v856 = vunpack.c.h.bf16 %v808
    %v857 = vunpack.c.l.bf16 %v809
    %v858 = vunpack.c.h.bf16 %v809
    %v859 = vunpack.c.l.bf16 %v810
    %v860 = vunpack.c.h.bf16 %v810
    %v861 = vunpack.c.l.bf16 %v811
    %v862 = vunpack.c.h.bf16 %v811
    %v863 = vunpack.c.l.bf16 %v812
    %v864 = vunpack.c.h.bf16 %v812
    %v865 = vunpack.c.l.bf16 %v813
    %v866 = vunpack.c.h.bf16 %v813
    %v867 = vunpack.c.l.bf16 %v814
    %v868 = vunpack.c.h.bf16 %v814
    %v869 = vunpack.c.l.bf16 %v815
    %v870 = vunpack.c.h.bf16 %v815
    %v871 = vunpack.c.l.bf16 %v816
    %v872 = vunpack.c.h.bf16 %v816
    %v873 = vunpack.c.l.bf16 %v817
    %v874 = vunpack.c.h.bf16 %v817
    %v875 = vunpack.c.l.bf16 %v818
    %v876 = vunpack.c.h.bf16 %v818
    %v877 = vunpack.c.l.bf16 %v819
    %v878 = vunpack.c.h.bf16 %v819
    %v879 = vunpack.c.l.bf16 %v820
    %v880 = vunpack.c.h.bf16 %v820
    %v881 = vunpack.c.l.bf16 %v821
    %v882 = vunpack.c.h.bf16 %v821
    %v883 = vunpack.c.l.bf16 %v822
    %v884 = vunpack.c.h.bf16 %v822
    %v885 = vunpack.c.l.bf16 %v823
    %v886 = vunpack.c.h.bf16 %v823
    %v887 = vunpack.c.l.bf16 %v824
    %v888 = vunpack.c.h.bf16 %v824
    %v889 = vunpack.c.l.bf16 %v825
    %v890 = vunpack.c.h.bf16 %v825
    %v891 = vunpack.c.l.bf16 %v826
    %v892 = vunpack.c.h.bf16 %v826
    %v893 = vunpack.c.l.bf16 %v827
    %v894 = vunpack.c.h.bf16 %v827
    %v895 = vunpack.c.l.bf16 %v828
    %v896 = vunpack.c.h.bf16 %v828
    %v897 = vunpack.c.l.bf16 %v829
    %v898 = vunpack.c.h.bf16 %v829
    %v899 = vunpack.c.l.bf16 %v830
    %v900 = vunpack.c.h.bf16 %v830
    %v901 = vunpack.c.l.bf16 %v831
    %v902 = vunpack.c.h.bf16 %v831
    %v903 = vunpack.c.l.bf16 %v832
    %v904 = vunpack.c.h.bf16 %v832
    %v905 = vadd.f32 %v833, 0.5
    %v906 = vadd.f32 %v834, 0.5
    %v907 = vadd.f32 %v835, 0.5
    %v908 = vadd.f32 %v836, 0.5
    %v909 = vadd.f32 %v837, 0.5
    %v910 = vadd.f32 %v838, 0.5
    %v911 = vadd.f32 %v839, 0.5
    %v912 = vadd.f32 %v840, 0.5
    %v913 = vadd.f32 %v841, 0.5
    %v914 = vadd.f32 %v842, 0.5
    %v915 = vadd.f32 %v843, 0.5
    %v916 = vadd.f32 %v844, 0.5
    %v917 = vadd.f32 %v845, 0.5
    %v918 = vadd.f32 %v846, 0.5
    %v919 = vadd.f32 %v847, 0.5
    %v920 = vadd.f32 %v848, 0.5
    %v921 = vadd.f32 %v849, 0.5
    %v922 = vadd.f32 %v850, 0.5
    %v923 = vadd.f32 %v851, 0.5
    %v924 = vadd.f32 %v852, 0.5
    %v925 = vadd.f32 %v853, 0.5
    %v926 = vadd.f32 %v854, 0.5
    %v927 = vadd.f32 %v855, 0.5
    %v928 = vadd.f32 %v856, 0.5
    %v929 = vadd.f32 %v857, 0.5
    %v930 = vadd.f32 %v858, 0.5
    %v931 = vadd.f32 %v859, 0.5
    %v932 = vadd.f32 %v860, 0.5
    %v933 = vadd.f32 %v861, 0.5
    %v934 = vadd.f32 %v862, 0.5
    %v935 = vadd.f32 %v863, 0.5
    %v936 = vadd.f32 %v864, 0.5
    %v937 = vadd.f32 %v865, 0.5
    %v938 = vadd.f32 %v866, 0.5
    %v939 = vadd.f32 %v867, 0.5
    %v940 = vadd.f32 %v868, 0.5
    %v941 = vadd.f32 %v869, 0.5
    %v942 = vadd.f32 %v870, 0.5
    %v943 = vadd.f32 %v871, 0.5
    %v944 = vadd.f32 %v872, 0.5
    %v945 = vadd.f32 %v873, 0.5
    %v946 = vadd.f32 %v874, 0.5
    %v947 = vadd.f32 %v875, 0.5
    %v948 = vadd.f32 %v876, 0.5
    %v949 = vadd.f32 %v877, 0.5
    %v950 = vadd.f32 %v878, 0.5
    %v951 = vadd.f32 %v879, 0.5
    %v952 = vadd.f32 %v880, 0.5
    %v953 = vadd.f32 %v881, 0.5
    %v954 = vadd.f32 %v882, 0.5
    %v955 = vadd.f32 %v883, 0.5
    %v956 = vadd.f32 %v884, 0.5
    %v957 = vadd.f32 %v885, 0.5
    %v958 = vadd.f32 %v886, 0.5
    %v959 = vadd.f32 %v887, 0.5
    %v960 = vadd.f32 %v888, 0.5
    %v961 = vadd.f32 %v889, 0.5
    %v962 = vadd.f32 %v890, 0.5
    %v963 = vadd.f32 %v891, 0.5
    %v964 = vadd.f32 %v892, 0.5
    %v965 = vadd.f32 %v893, 0.5
    %v966 = vadd.f32 %v894, 0.5
    %v967 = vadd.f32 %v895, 0.5
    %v968 = vadd.f32 %v896, 0.5
    %v969 = vadd.f32 %v897, 0.5
    %v970 = vadd.f32 %v898, 0.5
    %v971 = vadd.f32 %v899, 0.5
    %v972 = vadd.f32 %v900, 0.5
    %v973 = vadd.f32 %v901, 0.5
    %v974 = vadd.f32 %v902, 0.5
    %v975 = vadd.f32 %v903, 0.5
    %v976 = vadd.f32 %v904, 0.5
    %v977 = vpack.c.bf16 %v905, %v905
    %v978 = vpack.c.bf16 %v906, %v906
    %v979 = vpack.c.bf16 %v907, %v907
    %v980 = vpack.c.bf16 %v908, %v908
    %v981 = vpack.c.bf16 %v909, %v909
    %v982 = vpack.c.bf16 %v910, %v910
    %v983 = vpack.c.bf16 %v911, %v911
    %v984 = vpack.c.bf16 %v912, %v912
    %v985 = vpack.c.bf16 %v913, %v913
    %v986 = vpack.c.bf16 %v914, %v914
    %v987 = vpack.c.bf16 %v915, %v915
    %v988 = vpack.c.bf16 %v916, %v916
    %v989 = vpack.c.bf16 %v917, %v917
    %v990 = vpack.c.bf16 %v918, %v918
    %v991 = vpack.c.bf16 %v919, %v919
    %v992 = vpack.c.bf16 %v920, %v920
    %v993 = vpack.c.bf16 %v921, %v921
    %v994 = vpack.c.bf16 %v922, %v922
    %v995 = vpack.c.bf16 %v923, %v923
    %v996 = vpack.c.bf16 %v924, %v924
    %v997 = vpack.c.bf16 %v925, %v925
    %v998 = vpack.c.bf16 %v926, %v926
    %v999 = vpack.c.bf16 %v927, %v927
    %v1000 = vpack.c.bf16 %v928, %v928
    %v1001 = vpack.c.bf16 %v929, %v929
    %v1002 = vpack.c.bf16 %v930, %v930
    %v1003 = vpack.c.bf16 %v931, %v931
    %v1004 = vpack.c.bf16 %v932, %v932
    %v1005 = vpack.c.bf16 %v933, %v933
    %v1006 = vpack.c.bf16 %v934, %v934
    %v1007 = vpack.c.bf16 %v935, %v935
    %v1008 = vpack.c.bf16 %v936, %v936
    %v1009 = vpack.c.bf16 %v937, %v937
    %v1010 = vpack.c.bf16 %v938, %v938
    %v1011 = vpack.c.bf16 %v939, %v939
    %v1012 = vpack.c.bf16 %v940, %v940
    %v1013 = vpack.c.bf16 %v941, %v941
    %v1014 = vpack.c.bf16 %v942, %v942
    %v1015 = vpack.c.bf16 %v943, %v943
    %v1016 = vpack.c.bf16 %v944, %v944
    %v1017 = vpack.c.bf16 %v945, %v945
    %v1018 = vpack.c.bf16 %v946, %v946
    %v1019 = vpack.c.bf16 %v947, %v947
    %v1020 = vpack.c.bf16 %v948, %v948
    %v1021 = vpack.c.bf16 %v949, %v949
    %v1022 = vpack.c.bf16 %v950, %v950
    %v1023 = vpack.c.bf16 %v951, %v951
    %v1024 = vpack.c.bf16 %v952, %v952
    %v1025 = vpack.c.bf16 %v953, %v953
    %v1026 = vpack.c.bf16 %v954, %v954
    %v1027 = vpack.c.bf16 %v955, %v955
    %v1028 = vpack.c.bf16 %v956, %v956
    %v1029 = vpack.c.bf16 %v957, %v957
    %v1030 = vpack.c.bf16 %v958, %v958
    %v1031 = vpack.c.bf16 %v959, %v959
    %v1032 = vpack.c.bf16 %v960, %v960
    %v1033 = vpack.c.bf16 %v961, %v961
    %v1034 = vpack.c.bf16 %v962, %v962
    %v1035 = vpack.c.bf16 %v963, %v963
    %v1036 = vpack.c.bf16 %v964, %v964
    %v1037 = vpack.c.bf16 %v965, %v965
    %v1038 = vpack.c.bf16 %v966, %v966
    %v1039 = vpack.c.bf16 %v967, %v967
    %v1040 = vpack.c.bf16 %v968, %v968
    %v1041 = vpack.c.bf16 %v969, %v969
    %v1042 = vpack.c.bf16 %v970, %v970
    %v1043 = vpack.c.bf16 %v971, %v971
    %v1044 = vpack.c.bf16 %v972, %v972
    %v1045 = vpack.c.bf16 %v973, %v973
    %v1046 = vpack.c.bf16 %v974, %v974
    %v1047 = vpack.c.bf16 %v975, %v975
    %v1048 = vpack.c.bf16 %v976, %v976
    %v1049 = vld [vmem:[#allocation5] sm:$0xf]
    %v1050 = vld [vmem:[#allocation5 + $0x4] sm:$0xf]
    %v1051 = vld [vmem:[#allocation5 + $0x8] sm:$0xf]
    %v1052 = vld [vmem:[#allocation5 + $0xc] sm:$0xf]
    %v1053 = vld [vmem:[#allocation5 + $0x10] sm:$0xf]
    %v1054 = vld [vmem:[#allocation5 + $0x14] sm:$0xf]
    %v1055 = vld [vmem:[#allocation5 + $0x18] sm:$0xf]
    %v1056 = vld [vmem:[#allocation5 + $0x1c] sm:$0xf]
    %v1057 = vld [vmem:[#allocation5 + $0x20] sm:$0xf]
    %v1058 = vld [vmem:[#allocation5 + $0x24] sm:$0xf]
    %v1059 = vld [vmem:[#allocation5 + $0x28] sm:$0xf]
    %v1060 = vld [vmem:[#allocation5 + $0x2c] sm:$0xf]
    %v1061 = vld [vmem:[#allocation5 + $0x30] sm:$0xf]
    %v1062 = vld [vmem:[#allocation5 + $0x34] sm:$0xf]
    %v1063 = vld [vmem:[#allocation5 + $0x38] sm:$0xf]
    %v1064 = vld [vmem:[#allocation5 + $0x3c] sm:$0xf]
    %v1065 = vld [vmem:[#allocation5 + $0x40] sm:$0xf]
    %v1066 = vld [vmem:[#allocation5 + $0x44] sm:$0xf]
    %v1067 = vld [vmem:[#allocation5 + $0x48] sm:$0xf]
    %v1068 = vld [vmem:[#allocation5 + $0x4c] sm:$0xf]
    %v1069 = vld [vmem:[#allocation5 + $0x50] sm:$0xf]
    %v1070 = vld [vmem:[#allocation5 + $0x54] sm:$0xf]
    %v1071 = vld [vmem:[#allocation5 + $0x58] sm:$0xf]
    %v1072 = vld [vmem:[#allocation5 + $0x5c] sm:$0xf]
    %v1073 = vld [vmem:[#allocation5 + $0x60] sm:$0xf]
    %v1074 = vld [vmem:[#allocation5 + $0x64] sm:$0xf]
    %v1075 = vld [vmem:[#allocation5 + $0x68] sm:$0xf]
    %v1076 = vld [vmem:[#allocation5 + $0x6c] sm:$0xf]
    %v1077 = vld [vmem:[#allocation5 + $0x70] sm:$0xf]
    %v1078 = vld [vmem:[#allocation5 + $0x74] sm:$0xf]
    %v1079 = vld [vmem:[#allocation5 + $0x78] sm:$0xf]
    %v1080 = vld [vmem:[#allocation5 + $0x7c] sm:$0xf]
    %v1081 = vld [vmem:[#allocation5 + $0x80] sm:$0xf]
    %v1082 = vld [vmem:[#allocation5 + $0x84] sm:$0xf]
    %v1083 = vld [vmem:[#allocation5 + $0x88] sm:$0xf]
    %v1084 = vld [vmem:[#allocation5 + $0x8c] sm:$0xf]
    %v1085 = vld [vmem:[#allocation5 + $0x90] sm:$0xf]
    %v1086 = vld [vmem:[#allocation5 + $0x94] sm:$0xf]
    %v1087 = vld [vmem:[#allocation5 + $0x98] sm:$0xf]
    %v1088 = vld [vmem:[#allocation5 + $0x9c] sm:$0xf]
    %v1089 = vld [vmem:[#allocation5 + $0xa0] sm:$0xf]
    %v1090 = vld [vmem:[#allocation5 + $0xa4] sm:$0xf]
    %v1091 = vld [vmem:[#allocation5 + $0xa8] sm:$0xf]
    %v1092 = vld [vmem:[#allocation5 + $0xac] sm:$0xf]
    %v1093 = vld [vmem:[#allocation5 + $0xb0] sm:$0xf]
    %v1094 = vld [vmem:[#allocation5 + $0xb4] sm:$0xf]
    %v1095 = vld [vmem:[#allocation5 + $0xb8] sm:$0xf]
    %v1096 = vld [vmem:[#allocation5 + $0xbc] sm:$0xf]
    %v1097 = vld [vmem:[#allocation5 + $0xc0] sm:$0xf]
    %v1098 = vld [vmem:[#allocation5 + $0xc4] sm:$0xf]
    %v1099 = vld [vmem:[#allocation5 + $0xc8] sm:$0xf]
    %v1100 = vld [vmem:[#allocation5 + $0xcc] sm:$0xf]
    %v1101 = vld [vmem:[#allocation5 + $0xd0] sm:$0xf]
    %v1102 = vld [vmem:[#allocation5 + $0xd4] sm:$0xf]
    %v1103 = vld [vmem:[#allocation5 + $0xd8] sm:$0xf]
    %v1104 = vld [vmem:[#allocation5 + $0xdc] sm:$0xf]
    %v1105 = vld [vmem:[#allocation5 + $0xe0] sm:$0xf]
    %v1106 = vld [vmem:[#allocation5 + $0xe4] sm:$0xf]
    %v1107 = vld [vmem:[#allocation5 + $0xe8] sm:$0xf]
    %v1108 = vld [vmem:[#allocation5 + $0xec] sm:$0xf]
    %v1109 = vld [vmem:[#allocation5 + $0xf0] sm:$0xf]
    %v1110 = vld [vmem:[#allocation5 + $0xf4] sm:$0xf]
    %v1111 = vld [vmem:[#allocation5 + $0xf8] sm:$0xf]
    %v1112 = vld [vmem:[#allocation5 + $0xfc] sm:$0xf]
    %v1113 = vld [vmem:[#allocation5 + $0x100] sm:$0xf]
    %v1114 = vld [vmem:[#allocation5 + $0x104] sm:$0xf]
    %v1115 = vld [vmem:[#allocation5 + $0x108] sm:$0xf]
    %v1116 = vld [vmem:[#allocation5 + $0x10c] sm:$0xf]
    %v1117 = vld [vmem:[#allocation5 + $0x110] sm:$0xf]
    %v1118 = vld [vmem:[#allocation5 + $0x114] sm:$0xf]
    %v1119 = vld [vmem:[#allocation5 + $0x118] sm:$0xf]
    %v1120 = vld [vmem:[#allocation5 + $0x11c] sm:$0xf]
    %v1121 = vld [vmem:[#allocation5 + $0x120] sm:$0xf]
    %v1122 = vld [vmem:[#allocation5 + $0x124] sm:$0xf]
    %v1123 = vld [vmem:[#allocation5 + $0x128] sm:$0xf]
    %v1124 = vld [vmem:[#allocation5 + $0x12c] sm:$0xf]
    %v1125 = vld [vmem:[#allocation5 + $0x130] sm:$0xf]
    %v1126 = vld [vmem:[#allocation5 + $0x134] sm:$0xf]
    %v1127 = vld [vmem:[#allocation5 + $0x138] sm:$0xf]
    %v1128 = vld [vmem:[#allocation5 + $0x13c] sm:$0xf]
    %v1129 = vld [vmem:[#allocation5 + $0x140] sm:$0xf]
    %v1130 = vld [vmem:[#allocation5 + $0x144] sm:$0xf]
    %v1131 = vld [vmem:[#allocation5 + $0x148] sm:$0xf]
    %v1132 = vld [vmem:[#allocation5 + $0x14c] sm:$0xf]
    %v1133 = vld [vmem:[#allocation5 + $0x150] sm:$0xf]
    %v1134 = vld [vmem:[#allocation5 + $0x154] sm:$0xf]
    %v1135 = vld [vmem:[#allocation5 + $0x158] sm:$0xf]
    %v1136 = vld [vmem:[#allocation5 + $0x15c] sm:$0xf]
    %v1137 = vld [vmem:[#allocation5 + $0x160] sm:$0xf]
    %v1138 = vld [vmem:[#allocation5 + $0x164] sm:$0xf]
    %v1139 = vld [vmem:[#allocation5 + $0x168] sm:$0xf]
    %v1140 = vld [vmem:[#allocation5 + $0x16c] sm:$0xf]
    %v1141 = vld [vmem:[#allocation5 + $0x170] sm:$0xf]
    %v1142 = vld [vmem:[#allocation5 + $0x174] sm:$0xf]
    %v1143 = vld [vmem:[#allocation5 + $0x178] sm:$0xf]
    %v1144 = vld [vmem:[#allocation5 + $0x17c] sm:$0xf]
    %v1145 = vld [vmem:[#allocation5 + $0x180] sm:$0xf]
    %v1146 = vld [vmem:[#allocation5 + $0x184] sm:$0xf]
    %v1147 = vld [vmem:[#allocation5 + $0x188] sm:$0xf]
    %v1148 = vld [vmem:[#allocation5 + $0x18c] sm:$0xf]
    %v1149 = vld [vmem:[#allocation5 + $0x190] sm:$0xf]
    %v1150 = vld [vmem:[#allocation5 + $0x194] sm:$0xf]
    %v1151 = vld [vmem:[#allocation5 + $0x198] sm:$0xf]
    %v1152 = vld [vmem:[#allocation5 + $0x19c] sm:$0xf]
    %v1153 = vld [vmem:[#allocation5 + $0x1a0] sm:$0xf]
    %v1154 = vld [vmem:[#allocation5 + $0x1a4] sm:$0xf]
    %v1155 = vld [vmem:[#allocation5 + $0x1a8] sm:$0xf]
    %v1156 = vld [vmem:[#allocation5 + $0x1ac] sm:$0xf]
    %v1157 = vld [vmem:[#allocation5 + $0x1b0] sm:$0xf]
    %v1158 = vld [vmem:[#allocation5 + $0x1b4] sm:$0xf]
    %v1159 = vld [vmem:[#allocation5 + $0x1b8] sm:$0xf]
    %v1160 = vld [vmem:[#allocation5 + $0x1bc] sm:$0xf]
    %v1161 = vld [vmem:[#allocation5 + $0x1c0] sm:$0xf]
    %v1162 = vld [vmem:[#allocation5 + $0x1c4] sm:$0xf]
    %v1163 = vld [vmem:[#allocation5 + $0x1c8] sm:$0xf]
    %v1164 = vld [vmem:[#allocation5 + $0x1cc] sm:$0xf]
    %v1165 = vld [vmem:[#allocation5 + $0x1d0] sm:$0xf]
    %v1166 = vld [vmem:[#allocation5 + $0x1d4] sm:$0xf]
    %v1167 = vld [vmem:[#allocation5 + $0x1d8] sm:$0xf]
    %v1168 = vld [vmem:[#allocation5 + $0x1dc] sm:$0xf]
    %v1169 = vld [vmem:[#allocation5 + $0x1e0] sm:$0xf]
    %v1170 = vld [vmem:[#allocation5 + $0x1e4] sm:$0xf]
    %v1171 = vld [vmem:[#allocation5 + $0x1e8] sm:$0xf]
    %v1172 = vld [vmem:[#allocation5 + $0x1ec] sm:$0xf]
    %v1173 = vld [vmem:[#allocation5 + $0x1f0] sm:$0xf]
    %v1174 = vld [vmem:[#allocation5 + $0x1f4] sm:$0xf]
    %v1175 = vld [vmem:[#allocation5 + $0x1f8] sm:$0xf]
    %v1176 = vld [vmem:[#allocation5 + $0x1fc] sm:$0xf]
    %v1177 = vld [vmem:[#allocation5 + $0x200] sm:$0xf]
    %v1178 = vld [vmem:[#allocation5 + $0x204] sm:$0xf]
    %v1179 = vld [vmem:[#allocation5 + $0x208] sm:$0xf]
    %v1180 = vld [vmem:[#allocation5 + $0x20c] sm:$0xf]
    %v1181 = vld [vmem:[#allocation5 + $0x210] sm:$0xf]
    %v1182 = vld [vmem:[#allocation5 + $0x214] sm:$0xf]
    %v1183 = vld [vmem:[#allocation5 + $0x218] sm:$0xf]
    %v1184 = vld [vmem:[#allocation5 + $0x21c] sm:$0xf]
    %v1185 = vld [vmem:[#allocation5 + $0x220] sm:$0xf]
    %v1186 = vld [vmem:[#allocation5 + $0x224] sm:$0xf]
    %v1187 = vld [vmem:[#allocation5 + $0x228] sm:$0xf]
    %v1188 = vld [vmem:[#allocation5 + $0x22c] sm:$0xf]
    %v1189 = vld [vmem:[#allocation5 + $0x230] sm:$0xf]
    %v1190 = vld [vmem:[#allocation5 + $0x234] sm:$0xf]
    %v1191 = vld [vmem:[#allocation5 + $0x238] sm:$0xf]
    %v1192 = vld [vmem:[#allocation5 + $0x23c] sm:$0xf]
    %v1193 = vld [vmem:[#allocation5 + $0x240] sm:$0xf]
    %v1194 = vld [vmem:[#allocation5 + $0x244] sm:$0xf]
    %v1195 = vld [vmem:[#allocation5 + $0x248] sm:$0xf]
    %v1196 = vld [vmem:[#allocation5 + $0x24c] sm:$0xf]
    %v1197 = vld [vmem:[#allocation5 + $0x250] sm:$0xf]
    %v1198 = vld [vmem:[#allocation5 + $0x254] sm:$0xf]
    %v1199 = vld [vmem:[#allocation5 + $0x258] sm:$0xf]
    %v1200 = vld [vmem:[#allocation5 + $0x25c] sm:$0xf]
    %v1201 = vld [vmem:[#allocation5 + $0x260] sm:$0xf]
    %v1202 = vld [vmem:[#allocation5 + $0x264] sm:$0xf]
    %v1203 = vld [vmem:[#allocation5 + $0x268] sm:$0xf]
    %v1204 = vld [vmem:[#allocation5 + $0x26c] sm:$0xf]
    %v1205 = vld [vmem:[#allocation5 + $0x270] sm:$0xf]
    %v1206 = vld [vmem:[#allocation5 + $0x274] sm:$0xf]
    %v1207 = vld [vmem:[#allocation5 + $0x278] sm:$0xf]
    %v1208 = vld [vmem:[#allocation5 + $0x27c] sm:$0xf]
    %v1209 = vld [vmem:[#allocation5 + $0x280] sm:$0xf]
    %v1210 = vld [vmem:[#allocation5 + $0x284] sm:$0xf]
    %v1211 = vld [vmem:[#allocation5 + $0x288] sm:$0xf]
    %v1212 = vld [vmem:[#allocation5 + $0x28c] sm:$0xf]
    %v1213 = vld [vmem:[#allocation5 + $0x290] sm:$0xf]
    %v1214 = vld [vmem:[#allocation5 + $0x294] sm:$0xf]
    %v1215 = vld [vmem:[#allocation5 + $0x298] sm:$0xf]
    %v1216 = vld [vmem:[#allocation5 + $0x29c] sm:$0xf]
    %v1217 = vld [vmem:[#allocation5 + $0x2a0] sm:$0xf]
    %v1218 = vld [vmem:[#allocation5 + $0x2a4] sm:$0xf]
    %v1219 = vld [vmem:[#allocation5 + $0x2a8] sm:$0xf]
    %v1220 = vld [vmem:[#allocation5 + $0x2ac] sm:$0xf]
    %v1221 = vld [vmem:[#allocation5 + $0x2b0] sm:$0xf]
    %v1222 = vld [vmem:[#allocation5 + $0x2b4] sm:$0xf]
    %v1223 = vld [vmem:[#allocation5 + $0x2b8] sm:$0xf]
    %v1224 = vld [vmem:[#allocation5 + $0x2bc] sm:$0xf]
    %v1225 = vld [vmem:[#allocation5 + $0x2c0] sm:$0xf]
    %v1226 = vld [vmem:[#allocation5 + $0x2c4] sm:$0xf]
    %v1227 = vld [vmem:[#allocation5 + $0x2c8] sm:$0xf]
    %v1228 = vld [vmem:[#allocation5 + $0x2cc] sm:$0xf]
    %v1229 = vld [vmem:[#allocation5 + $0x2d0] sm:$0xf]
    %v1230 = vld [vmem:[#allocation5 + $0x2d4] sm:$0xf]
    %v1231 = vld [vmem:[#allocation5 + $0x2d8] sm:$0xf]
    %v1232 = vld [vmem:[#allocation5 + $0x2dc] sm:$0xf]
    %v1233 = vld [vmem:[#allocation5 + $0x2e0] sm:$0xf]
    %v1234 = vld [vmem:[#allocation5 + $0x2e4] sm:$0xf]
    %v1235 = vld [vmem:[#allocation5 + $0x2e8] sm:$0xf]
    %v1236 = vld [vmem:[#allocation5 + $0x2ec] sm:$0xf]
    %v1237 = vld [vmem:[#allocation5 + $0x2f0] sm:$0xf]
    %v1238 = vld [vmem:[#allocation5 + $0x2f4] sm:$0xf]
    %v1239 = vld [vmem:[#allocation5 + $0x2f8] sm:$0xf]
    %v1240 = vld [vmem:[#allocation5 + $0x2fc] sm:$0xf]
    %v1241 = vld [vmem:[#allocation5 + $0x300] sm:$0xf]
    %v1242 = vld [vmem:[#allocation5 + $0x304] sm:$0xf]
    %v1243 = vld [vmem:[#allocation5 + $0x308] sm:$0xf]
    %v1244 = vld [vmem:[#allocation5 + $0x30c] sm:$0xf]
    %v1245 = vld [vmem:[#allocation5 + $0x310] sm:$0xf]
    %v1246 = vld [vmem:[#allocation5 + $0x314] sm:$0xf]
    %v1247 = vld [vmem:[#allocation5 + $0x318] sm:$0xf]
    %v1248 = vld [vmem:[#allocation5 + $0x31c] sm:$0xf]
    %v1249 = vld [vmem:[#allocation5 + $0x320] sm:$0xf]
    %v1250 = vld [vmem:[#allocation5 + $0x324] sm:$0xf]
    %v1251 = vld [vmem:[#allocation5 + $0x328] sm:$0xf]
    %v1252 = vld [vmem:[#allocation5 + $0x32c] sm:$0xf]
    %v1253 = vld [vmem:[#allocation5 + $0x330] sm:$0xf]
    %v1254 = vld [vmem:[#allocation5 + $0x334] sm:$0xf]
    %v1255 = vld [vmem:[#allocation5 + $0x338] sm:$0xf]
    %v1256 = vld [vmem:[#allocation5 + $0x33c] sm:$0xf]
    %v1257 = vld [vmem:[#allocation5 + $0x340] sm:$0xf]
    %v1258 = vld [vmem:[#allocation5 + $0x344] sm:$0xf]
    %v1259 = vld [vmem:[#allocation5 + $0x348] sm:$0xf]
    %v1260 = vld [vmem:[#allocation5 + $0x34c] sm:$0xf]
    %v1261 = vld [vmem:[#allocation5 + $0x350] sm:$0xf]
    %v1262 = vld [vmem:[#allocation5 + $0x354] sm:$0xf]
    %v1263 = vld [vmem:[#allocation5 + $0x358] sm:$0xf]
    %v1264 = vld [vmem:[#allocation5 + $0x35c] sm:$0xf]
    %v1265 = vld [vmem:[#allocation5 + $0x360] sm:$0xf]
    %v1266 = vld [vmem:[#allocation5 + $0x364] sm:$0xf]
    %v1267 = vld [vmem:[#allocation5 + $0x368] sm:$0xf]
    %v1268 = vld [vmem:[#allocation5 + $0x36c] sm:$0xf]
    %v1269 = vld [vmem:[#allocation5 + $0x370] sm:$0xf]
    %v1270 = vld [vmem:[#allocation5 + $0x374] sm:$0xf]
    %v1271 = vld [vmem:[#allocation5 + $0x378] sm:$0xf]
    %v1272 = vld [vmem:[#allocation5 + $0x37c] sm:$0xf]
    %v1273 = vld [vmem:[#allocation5 + $0x380] sm:$0xf]
    %v1274 = vld [vmem:[#allocation5 + $0x384] sm:$0xf]
    %v1275 = vld [vmem:[#allocation5 + $0x388] sm:$0xf]
    %v1276 = vld [vmem:[#allocation5 + $0x38c] sm:$0xf]
    %v1277 = vld [vmem:[#allocation5 + $0x390] sm:$0xf]
    %v1278 = vld [vmem:[#allocation5 + $0x394] sm:$0xf]
    %v1279 = vld [vmem:[#allocation5 + $0x398] sm:$0xf]
    %v1280 = vld [vmem:[#allocation5 + $0x39c] sm:$0xf]
    %v1281 = vld [vmem:[#allocation5 + $0x3a0] sm:$0xf]
    %v1282 = vld [vmem:[#allocation5 + $0x3a4] sm:$0xf]
    %v1283 = vld [vmem:[#allocation5 + $0x3a8] sm:$0xf]
    %v1284 = vld [vmem:[#allocation5 + $0x3ac] sm:$0xf]
    %v1285 = vld [vmem:[#allocation5 + $0x3b0] sm:$0xf]
    %v1286 = vld [vmem:[#allocation5 + $0x3b4] sm:$0xf]
    %v1287 = vld [vmem:[#allocation5 + $0x3b8] sm:$0xf]
    %v1288 = vld [vmem:[#allocation5 + $0x3bc] sm:$0xf]
    %v1289 = vld [vmem:[#allocation5 + $0x3c0] sm:$0xf]
    %v1290 = vld [vmem:[#allocation5 + $0x3c4] sm:$0xf]
    %v1291 = vld [vmem:[#allocation5 + $0x3c8] sm:$0xf]
    %v1292 = vld [vmem:[#allocation5 + $0x3cc] sm:$0xf]
    %v1293 = vld [vmem:[#allocation5 + $0x3d0] sm:$0xf]
    %v1294 = vld [vmem:[#allocation5 + $0x3d4] sm:$0xf]
    %v1295 = vld [vmem:[#allocation5 + $0x3d8] sm:$0xf]
    %v1296 = vld [vmem:[#allocation5 + $0x3dc] sm:$0xf]
    %v1297 = vld [vmem:[#allocation5 + $0x3e0] sm:$0xf]
    %v1298 = vld [vmem:[#allocation5 + $0x3e4] sm:$0xf]
    %v1299 = vld [vmem:[#allocation5 + $0x3e8] sm:$0xf]
    %v1300 = vld [vmem:[#allocation5 + $0x3ec] sm:$0xf]
    %v1301 = vld [vmem:[#allocation5 + $0x3f0] sm:$0xf]
    %v1302 = vld [vmem:[#allocation5 + $0x3f4] sm:$0xf]
    %v1303 = vld [vmem:[#allocation5 + $0x3f8] sm:$0xf]
    %v1304 = vld [vmem:[#allocation5 + $0x3fc] sm:$0xf]
    %v1305 = vld [vmem:[#allocation5 + $0x400] sm:$0xf]
    %v1306 = vld [vmem:[#allocation5 + $0x404] sm:$0xf]
    %v1307 = vld [vmem:[#allocation5 + $0x408] sm:$0xf]
    %v1308 = vld [vmem:[#allocation5 + $0x40c] sm:$0xf]
    %v1309 = vld [vmem:[#allocation5 + $0x410] sm:$0xf]
    %v1310 = vld [vmem:[#allocation5 + $0x414] sm:$0xf]
    %v1311 = vld [vmem:[#allocation5 + $0x418] sm:$0xf]
    %v1312 = vld [vmem:[#allocation5 + $0x41c] sm:$0xf]
    %v1313 = vld [vmem:[#allocation5 + $0x420] sm:$0xf]
    %v1314 = vld [vmem:[#allocation5 + $0x424] sm:$0xf]
    %v1315 = vld [vmem:[#allocation5 + $0x428] sm:$0xf]
    %v1316 = vld [vmem:[#allocation5 + $0x42c] sm:$0xf]
    %v1317 = vld [vmem:[#allocation5 + $0x430] sm:$0xf]
    %v1318 = vld [vmem:[#allocation5 + $0x434] sm:$0xf]
    %v1319 = vld [vmem:[#allocation5 + $0x438] sm:$0xf]
    %v1320 = vld [vmem:[#allocation5 + $0x43c] sm:$0xf]
    %v1321 = vld [vmem:[#allocation5 + $0x440] sm:$0xf]
    %v1322 = vld [vmem:[#allocation5 + $0x444] sm:$0xf]
    %v1323 = vld [vmem:[#allocation5 + $0x448] sm:$0xf]
    %v1324 = vld [vmem:[#allocation5 + $0x44c] sm:$0xf]
    %v1325 = vld [vmem:[#allocation5 + $0x450] sm:$0xf]
    %v1326 = vld [vmem:[#allocation5 + $0x454] sm:$0xf]
    %v1327 = vld [vmem:[#allocation5 + $0x458] sm:$0xf]
    %v1328 = vld [vmem:[#allocation5 + $0x45c] sm:$0xf]
    %v1329 = vld [vmem:[#allocation5 + $0x460] sm:$0xf]
    %v1330 = vld [vmem:[#allocation5 + $0x464] sm:$0xf]
    %v1331 = vld [vmem:[#allocation5 + $0x468] sm:$0xf]
    %v1332 = vld [vmem:[#allocation5 + $0x46c] sm:$0xf]
    %v1333 = vld [vmem:[#allocation5 + $0x470] sm:$0xf]
    %v1334 = vld [vmem:[#allocation5 + $0x474] sm:$0xf]
    %v1335 = vld [vmem:[#allocation5 + $0x478] sm:$0xf]
    %v1336 = vld [vmem:[#allocation5 + $0x47c] sm:$0xf]
    %v1337 = vld [vmem:[#allocation5 + $0x480] sm:$0xf]
    %v1338 = vld [vmem:[#allocation5 + $0x484] sm:$0xf]
    %v1339 = vld [vmem:[#allocation5 + $0x488] sm:$0xf]
    %v1340 = vld [vmem:[#allocation5 + $0x48c] sm:$0xf]
    %v1341 = vld [vmem:[#allocation5 + $0x490] sm:$0xf]
    %v1342 = vld [vmem:[#allocation5 + $0x494] sm:$0xf]
    %v1343 = vld [vmem:[#allocation5 + $0x498] sm:$0xf]
    %v1344 = vld [vmem:[#allocation5 + $0x49c] sm:$0xf]
    %v1345 = vld [vmem:[#allocation5 + $0x4a0] sm:$0xf]
    %v1346 = vld [vmem:[#allocation5 + $0x4a4] sm:$0xf]
    %v1347 = vld [vmem:[#allocation5 + $0x4a8] sm:$0xf]
    %v1348 = vld [vmem:[#allocation5 + $0x4ac] sm:$0xf]
    %v1349 = vld [vmem:[#allocation5 + $0x4b0] sm:$0xf]
    %v1350 = vld [vmem:[#allocation5 + $0x4b4] sm:$0xf]
    %v1351 = vld [vmem:[#allocation5 + $0x4b8] sm:$0xf]
    %v1352 = vld [vmem:[#allocation5 + $0x4bc] sm:$0xf]
    %v1353 = vld [vmem:[#allocation5 + $0x4c0] sm:$0xf]
    %v1354 = vld [vmem:[#allocation5 + $0x4c4] sm:$0xf]
    %v1355 = vld [vmem:[#allocation5 + $0x4c8] sm:$0xf]
    %v1356 = vld [vmem:[#allocation5 + $0x4cc] sm:$0xf]
    %v1357 = vld [vmem:[#allocation5 + $0x4d0] sm:$0xf]
    %v1358 = vld [vmem:[#allocation5 + $0x4d4] sm:$0xf]
    %v1359 = vld [vmem:[#allocation5 + $0x4d8] sm:$0xf]
    %v1360 = vld [vmem:[#allocation5 + $0x4dc] sm:$0xf]
    %v1361 = vld [vmem:[#allocation5 + $0x4e0] sm:$0xf]
    %v1362 = vld [vmem:[#allocation5 + $0x4e4] sm:$0xf]
    %v1363 = vld [vmem:[#allocation5 + $0x4e8] sm:$0xf]
    %v1364 = vld [vmem:[#allocation5 + $0x4ec] sm:$0xf]
    %v1365 = vld [vmem:[#allocation5 + $0x4f0] sm:$0xf]
    %v1366 = vld [vmem:[#allocation5 + $0x4f4] sm:$0xf]
    %v1367 = vld [vmem:[#allocation5 + $0x4f8] sm:$0xf]
    %v1368 = vld [vmem:[#allocation5 + $0x4fc] sm:$0xf]
    %v1369 = vld [vmem:[#allocation5 + $0x500] sm:$0xf]
    %v1370 = vld [vmem:[#allocation5 + $0x504] sm:$0xf]
    %v1371 = vld [vmem:[#allocation5 + $0x508] sm:$0xf]
    %v1372 = vld [vmem:[#allocation5 + $0x50c] sm:$0xf]
    %v1373 = vld [vmem:[#allocation5 + $0x510] sm:$0xf]
    %v1374 = vld [vmem:[#allocation5 + $0x514] sm:$0xf]
    %v1375 = vld [vmem:[#allocation5 + $0x518] sm:$0xf]
    %v1376 = vld [vmem:[#allocation5 + $0x51c] sm:$0xf]
    %v1377 = vld [vmem:[#allocation5 + $0x520] sm:$0xf]
    %v1378 = vld [vmem:[#allocation5 + $0x524] sm:$0xf]
    %v1379 = vld [vmem:[#allocation5 + $0x528] sm:$0xf]
    %v1380 = vld [vmem:[#allocation5 + $0x52c] sm:$0xf]
    %v1381 = vld [vmem:[#allocation5 + $0x530] sm:$0xf]
    %v1382 = vld [vmem:[#allocation5 + $0x534] sm:$0xf]
    %v1383 = vld [vmem:[#allocation5 + $0x538] sm:$0xf]
    %v1384 = vld [vmem:[#allocation5 + $0x53c] sm:$0xf]
    %v1385 = vld [vmem:[#allocation5 + $0x540] sm:$0xf]
    %v1386 = vld [vmem:[#allocation5 + $0x544] sm:$0xf]
    %v1387 = vld [vmem:[#allocation5 + $0x548] sm:$0xf]
    %v1388 = vld [vmem:[#allocation5 + $0x54c] sm:$0xf]
    %v1389 = vld [vmem:[#allocation5 + $0x550] sm:$0xf]
    %v1390 = vld [vmem:[#allocation5 + $0x554] sm:$0xf]
    %v1391 = vld [vmem:[#allocation5 + $0x558] sm:$0xf]
    %v1392 = vld [vmem:[#allocation5 + $0x55c] sm:$0xf]
    %v1393 = vld [vmem:[#allocation5 + $0x560] sm:$0xf]
    %v1394 = vld [vmem:[#allocation5 + $0x564] sm:$0xf]
    %v1395 = vld [vmem:[#allocation5 + $0x568] sm:$0xf]
    %v1396 = vld [vmem:[#allocation5 + $0x56c] sm:$0xf]
    %v1397 = vld [vmem:[#allocation5 + $0x570] sm:$0xf]
    %v1398 = vld [vmem:[#allocation5 + $0x574] sm:$0xf]
    %v1399 = vld [vmem:[#allocation5 + $0x578] sm:$0xf]
    %v1400 = vld [vmem:[#allocation5 + $0x57c] sm:$0xf]
    %v1401 = vld [vmem:[#allocation5 + $0x580] sm:$0xf]
    %v1402 = vld [vmem:[#allocation5 + $0x584] sm:$0xf]
    %v1403 = vld [vmem:[#allocation5 + $0x588] sm:$0xf]
    %v1404 = vld [vmem:[#allocation5 + $0x58c] sm:$0xf]
    %v1405 = vld [vmem:[#allocation5 + $0x590] sm:$0xf]
    %v1406 = vld [vmem:[#allocation5 + $0x594] sm:$0xf]
    %v1407 = vld [vmem:[#allocation5 + $0x598] sm:$0xf]
    %v1408 = vld [vmem:[#allocation5 + $0x59c] sm:$0xf]
    %v1409 = vld [vmem:[#allocation5 + $0x5a0] sm:$0xf]
    %v1410 = vld [vmem:[#allocation5 + $0x5a4] sm:$0xf]
    %v1411 = vld [vmem:[#allocation5 + $0x5a8] sm:$0xf]
    %v1412 = vld [vmem:[#allocation5 + $0x5ac] sm:$0xf]
    %v1413 = vld [vmem:[#allocation5 + $0x5b0] sm:$0xf]
    %v1414 = vld [vmem:[#allocation5 + $0x5b4] sm:$0xf]
    %v1415 = vld [vmem:[#allocation5 + $0x5b8] sm:$0xf]
    %v1416 = vld [vmem:[#allocation5 + $0x5bc] sm:$0xf]
    %v1417 = vld [vmem:[#allocation5 + $0x5c0] sm:$0xf]
    %v1418 = vld [vmem:[#allocation5 + $0x5c4] sm:$0xf]
    %v1419 = vld [vmem:[#allocation5 + $0x5c8] sm:$0xf]
    %v1420 = vld [vmem:[#allocation5 + $0x5cc] sm:$0xf]
    %v1421 = vld [vmem:[#allocation5 + $0x5d0] sm:$0xf]
    %v1422 = vld [vmem:[#allocation5 + $0x5d4] sm:$0xf]
    %v1423 = vld [vmem:[#allocation5 + $0x5d8] sm:$0xf]
    %v1424 = vld [vmem:[#allocation5 + $0x5dc] sm:$0xf]
    %v1425 = vld [vmem:[#allocation5 + $0x5e0] sm:$0xf]
    %v1426 = vld [vmem:[#allocation5 + $0x5e4] sm:$0xf]
    %v1427 = vld [vmem:[#allocation5 + $0x5e8] sm:$0xf]
    %v1428 = vld [vmem:[#allocation5 + $0x5ec] sm:$0xf]
    %v1429 = vld [vmem:[#allocation5 + $0x5f0] sm:$0xf]
    %v1430 = vld [vmem:[#allocation5 + $0x5f4] sm:$0xf]
    %v1431 = vld [vmem:[#allocation5 + $0x5f8] sm:$0xf]
    %v1432 = vld [vmem:[#allocation5 + $0x5fc] sm:$0xf]
    %v1433 = vld [vmem:[#allocation5 + $0x600] sm:$0xf]
    %v1434 = vld [vmem:[#allocation5 + $0x604] sm:$0xf]
    %v1435 = vld [vmem:[#allocation5 + $0x608] sm:$0xf]
    %v1436 = vld [vmem:[#allocation5 + $0x60c] sm:$0xf]
    %v1437 = vld [vmem:[#allocation5 + $0x610] sm:$0xf]
    %v1438 = vld [vmem:[#allocation5 + $0x614] sm:$0xf]
    %v1439 = vld [vmem:[#allocation5 + $0x618] sm:$0xf]
    %v1440 = vld [vmem:[#allocation5 + $0x61c] sm:$0xf]
    %v1441 = vld [vmem:[#allocation5 + $0x620] sm:$0xf]
    %v1442 = vld [vmem:[#allocation5 + $0x624] sm:$0xf]
    %v1443 = vld [vmem:[#allocation5 + $0x628] sm:$0xf]
    %v1444 = vld [vmem:[#allocation5 + $0x62c] sm:$0xf]
    %v1445 = vld [vmem:[#allocation5 + $0x630] sm:$0xf]
    %v1446 = vld [vmem:[#allocation5 + $0x634] sm:$0xf]
    %v1447 = vld [vmem:[#allocation5 + $0x638] sm:$0xf]
    %v1448 = vld [vmem:[#allocation5 + $0x63c] sm:$0xf]
    %v1449 = vld [vmem:[#allocation5 + $0x640] sm:$0xf]
    %v1450 = vld [vmem:[#allocation5 + $0x644] sm:$0xf]
    %v1451 = vld [vmem:[#allocation5 + $0x648] sm:$0xf]
    %v1452 = vld [vmem:[#allocation5 + $0x64c] sm:$0xf]
    %v1453 = vld [vmem:[#allocation5 + $0x650] sm:$0xf]
    %v1454 = vld [vmem:[#allocation5 + $0x654] sm:$0xf]
    %v1455 = vld [vmem:[#allocation5 + $0x658] sm:$0xf]
    %v1456 = vld [vmem:[#allocation5 + $0x65c] sm:$0xf]
    %v1457 = vld [vmem:[#allocation5 + $0x660] sm:$0xf]
    %v1458 = vld [vmem:[#allocation5 + $0x664] sm:$0xf]
    %v1459 = vld [vmem:[#allocation5 + $0x668] sm:$0xf]
    %v1460 = vld [vmem:[#allocation5 + $0x66c] sm:$0xf]
    %v1461 = vld [vmem:[#allocation5 + $0x670] sm:$0xf]
    %v1462 = vld [vmem:[#allocation5 + $0x674] sm:$0xf]
    %v1463 = vld [vmem:[#allocation5 + $0x678] sm:$0xf]
    %v1464 = vld [vmem:[#allocation5 + $0x67c] sm:$0xf]
    %v1465 = vld [vmem:[#allocation5 + $0x680] sm:$0xf]
    %v1466 = vld [vmem:[#allocation5 + $0x684] sm:$0xf]
    %v1467 = vld [vmem:[#allocation5 + $0x688] sm:$0xf]
    %v1468 = vld [vmem:[#allocation5 + $0x68c] sm:$0xf]
    %v1469 = vld [vmem:[#allocation5 + $0x690] sm:$0xf]
    %v1470 = vld [vmem:[#allocation5 + $0x694] sm:$0xf]
    %v1471 = vld [vmem:[#allocation5 + $0x698] sm:$0xf]
    %v1472 = vld [vmem:[#allocation5 + $0x69c] sm:$0xf]
    %v1473 = vld [vmem:[#allocation5 + $0x6a0] sm:$0xf]
    %v1474 = vld [vmem:[#allocation5 + $0x6a4] sm:$0xf]
    %v1475 = vld [vmem:[#allocation5 + $0x6a8] sm:$0xf]
    %v1476 = vld [vmem:[#allocation5 + $0x6ac] sm:$0xf]
    %v1477 = vld [vmem:[#allocation5 + $0x6b0] sm:$0xf]
    %v1478 = vld [vmem:[#allocation5 + $0x6b4] sm:$0xf]
    %v1479 = vld [vmem:[#allocation5 + $0x6b8] sm:$0xf]
    %v1480 = vld [vmem:[#allocation5 + $0x6bc] sm:$0xf]
    %v1481 = vld [vmem:[#allocation5 + $0x6c0] sm:$0xf]
    %v1482 = vld [vmem:[#allocation5 + $0x6c4] sm:$0xf]
    %v1483 = vld [vmem:[#allocation5 + $0x6c8] sm:$0xf]
    %v1484 = vld [vmem:[#allocation5 + $0x6cc] sm:$0xf]
    %v1485 = vld [vmem:[#allocation5 + $0x6d0] sm:$0xf]
    %v1486 = vld [vmem:[#allocation5 + $0x6d4] sm:$0xf]
    %v1487 = vld [vmem:[#allocation5 + $0x6d8] sm:$0xf]
    %v1488 = vld [vmem:[#allocation5 + $0x6dc] sm:$0xf]
    %v1489 = vld [vmem:[#allocation5 + $0x6e0] sm:$0xf]
    %v1490 = vld [vmem:[#allocation5 + $0x6e4] sm:$0xf]
    %v1491 = vld [vmem:[#allocation5 + $0x6e8] sm:$0xf]
    %v1492 = vld [vmem:[#allocation5 + $0x6ec] sm:$0xf]
    %v1493 = vld [vmem:[#allocation5 + $0x6f0] sm:$0xf]
    %v1494 = vld [vmem:[#allocation5 + $0x6f4] sm:$0xf]
    %v1495 = vld [vmem:[#allocation5 + $0x6f8] sm:$0xf]
    %v1496 = vld [vmem:[#allocation5 + $0x6fc] sm:$0xf]
    %v1497 = vld [vmem:[#allocation5 + $0x700] sm:$0xf]
    %v1498 = vld [vmem:[#allocation5 + $0x704] sm:$0xf]
    %v1499 = vld [vmem:[#allocation5 + $0x708] sm:$0xf]
    %v1500 = vld [vmem:[#allocation5 + $0x70c] sm:$0xf]
    %v1501 = vld [vmem:[#allocation5 + $0x710] sm:$0xf]
    %v1502 = vld [vmem:[#allocation5 + $0x714] sm:$0xf]
    %v1503 = vld [vmem:[#allocation5 + $0x718] sm:$0xf]
    %v1504 = vld [vmem:[#allocation5 + $0x71c] sm:$0xf]
    %v1505 = vld [vmem:[#allocation5 + $0x720] sm:$0xf]
    %v1506 = vld [vmem:[#allocation5 + $0x724] sm:$0xf]
    %v1507 = vld [vmem:[#allocation5 + $0x728] sm:$0xf]
    %v1508 = vld [vmem:[#allocation5 + $0x72c] sm:$0xf]
    %v1509 = vld [vmem:[#allocation5 + $0x730] sm:$0xf]
    %v1510 = vld [vmem:[#allocation5 + $0x734] sm:$0xf]
    %v1511 = vld [vmem:[#allocation5 + $0x738] sm:$0xf]
    %v1512 = vld [vmem:[#allocation5 + $0x73c] sm:$0xf]
    %v1513 = vld [vmem:[#allocation5 + $0x740] sm:$0xf]
    %v1514 = vld [vmem:[#allocation5 + $0x744] sm:$0xf]
    %v1515 = vld [vmem:[#allocation5 + $0x748] sm:$0xf]
    %v1516 = vld [vmem:[#allocation5 + $0x74c] sm:$0xf]
    %v1517 = vld [vmem:[#allocation5 + $0x750] sm:$0xf]
    %v1518 = vld [vmem:[#allocation5 + $0x754] sm:$0xf]
    %v1519 = vld [vmem:[#allocation5 + $0x758] sm:$0xf]
    %v1520 = vld [vmem:[#allocation5 + $0x75c] sm:$0xf]
    %v1521 = vld [vmem:[#allocation5 + $0x760] sm:$0xf]
    %v1522 = vld [vmem:[#allocation5 + $0x764] sm:$0xf]
    %v1523 = vld [vmem:[#allocation5 + $0x768] sm:$0xf]
    %v1524 = vld [vmem:[#allocation5 + $0x76c] sm:$0xf]
    %v1525 = vld [vmem:[#allocation5 + $0x770] sm:$0xf]
    %v1526 = vld [vmem:[#allocation5 + $0x774] sm:$0xf]
    %v1527 = vld [vmem:[#allocation5 + $0x778] sm:$0xf]
    %v1528 = vld [vmem:[#allocation5 + $0x77c] sm:$0xf]
    %v1529 = vld [vmem:[#allocation5 + $0x780] sm:$0xf]
    %v1530 = vld [vmem:[#allocation5 + $0x784] sm:$0xf]
    %v1531 = vld [vmem:[#allocation5 + $0x788] sm:$0xf]
    %v1532 = vld [vmem:[#allocation5 + $0x78c] sm:$0xf]
    %v1533 = vld [vmem:[#allocation5 + $0x790] sm:$0xf]
    %v1534 = vld [vmem:[#allocation5 + $0x794] sm:$0xf]
    %v1535 = vld [vmem:[#allocation5 + $0x798] sm:$0xf]
    %v1536 = vld [vmem:[#allocation5 + $0x79c] sm:$0xf]
    %v1537 = vld [vmem:[#allocation5 + $0x7a0] sm:$0xf]
    %v1538 = vld [vmem:[#allocation5 + $0x7a4] sm:$0xf]
    %v1539 = vld [vmem:[#allocation5 + $0x7a8] sm:$0xf]
    %v1540 = vld [vmem:[#allocation5 + $0x7ac] sm:$0xf]
    %v1541 = vld [vmem:[#allocation5 + $0x7b0] sm:$0xf]
    %v1542 = vld [vmem:[#allocation5 + $0x7b4] sm:$0xf]
    %v1543 = vld [vmem:[#allocation5 + $0x7b8] sm:$0xf]
    %v1544 = vld [vmem:[#allocation5 + $0x7bc] sm:$0xf]
    %v1545 = vld [vmem:[#allocation5 + $0x7c0] sm:$0xf]
    %v1546 = vld [vmem:[#allocation5 + $0x7c4] sm:$0xf]
    %v1547 = vld [vmem:[#allocation5 + $0x7c8] sm:$0xf]
    %v1548 = vld [vmem:[#allocation5 + $0x7cc] sm:$0xf]
    %v1549 = vld [vmem:[#allocation5 + $0x7d0] sm:$0xf]
    %v1550 = vld [vmem:[#allocation5 + $0x7d4] sm:$0xf]
    %v1551 = vld [vmem:[#allocation5 + $0x7d8] sm:$0xf]
    %v1552 = vld [vmem:[#allocation5 + $0x7dc] sm:$0xf]
    %v1553 = vld [vmem:[#allocation5 + $0x7e0] sm:$0xf]
    %v1554 = vld [vmem:[#allocation5 + $0x7e4] sm:$0xf]
    %v1555 = vld [vmem:[#allocation5 + $0x7e8] sm:$0xf]
    %v1556 = vld [vmem:[#allocation5 + $0x7ec] sm:$0xf]
    %v1557 = vld [vmem:[#allocation5 + $0x7f0] sm:$0xf]
    %v1558 = vld [vmem:[#allocation5 + $0x7f4] sm:$0xf]
    %v1559 = vld [vmem:[#allocation5 + $0x7f8] sm:$0xf]
    %v1560 = vld [vmem:[#allocation5 + $0x7fc] sm:$0xf]
    %v1561 = vld [vmem:[#allocation5 + $0x800] sm:$0xf]
    %v1562 = vld [vmem:[#allocation5 + $0x804] sm:$0xf]
    %v1563 = vld [vmem:[#allocation5 + $0x808] sm:$0xf]
    %v1564 = vld [vmem:[#allocation5 + $0x80c] sm:$0xf]
    %v1565 = vld [vmem:[#allocation5 + $0x810] sm:$0xf]
    %v1566 = vld [vmem:[#allocation5 + $0x814] sm:$0xf]
    %v1567 = vld [vmem:[#allocation5 + $0x818] sm:$0xf]
    %v1568 = vld [vmem:[#allocation5 + $0x81c] sm:$0xf]
    %v1569 = vld [vmem:[#allocation5 + $0x820] sm:$0xf]
    %v1570 = vld [vmem:[#allocation5 + $0x824] sm:$0xf]
    %v1571 = vld [vmem:[#allocation5 + $0x828] sm:$0xf]
    %v1572 = vld [vmem:[#allocation5 + $0x82c] sm:$0xf]
    %v1573 = vld [vmem:[#allocation5 + $0x830] sm:$0xf]
    %v1574 = vld [vmem:[#allocation5 + $0x834] sm:$0xf]
    %v1575 = vld [vmem:[#allocation5 + $0x838] sm:$0xf]
    %v1576 = vld [vmem:[#allocation5 + $0x83c] sm:$0xf]
    %v1577 = vld [vmem:[#allocation5 + $0x840] sm:$0xf]
    %v1578 = vld [vmem:[#allocation5 + $0x844] sm:$0xf]
    %v1579 = vld [vmem:[#allocation5 + $0x848] sm:$0xf]
    %v1580 = vld [vmem:[#allocation5 + $0x84c] sm:$0xf]
    %v1581 = vld [vmem:[#allocation5 + $0x850] sm:$0xf]
    %v1582 = vld [vmem:[#allocation5 + $0x854] sm:$0xf]
    %v1583 = vld [vmem:[#allocation5 + $0x858] sm:$0xf]
    %v1584 = vld [vmem:[#allocation5 + $0x85c] sm:$0xf]
    %v1585 = vld [vmem:[#allocation5 + $0x860] sm:$0xf]
    %v1586 = vld [vmem:[#allocation5 + $0x864] sm:$0xf]
    %v1587 = vld [vmem:[#allocation5 + $0x868] sm:$0xf]
    %v1588 = vld [vmem:[#allocation5 + $0x86c] sm:$0xf]
    %v1589 = vld [vmem:[#allocation5 + $0x870] sm:$0xf]
    %v1590 = vld [vmem:[#allocation5 + $0x874] sm:$0xf]
    %v1591 = vld [vmem:[#allocation5 + $0x878] sm:$0xf]
    %v1592 = vld [vmem:[#allocation5 + $0x87c] sm:$0xf]
    %v1593 = vld [vmem:[#allocation5 + $0x880] sm:$0xf]
    %v1594 = vld [vmem:[#allocation5 + $0x884] sm:$0xf]
    %v1595 = vld [vmem:[#allocation5 + $0x888] sm:$0xf]
    %v1596 = vld [vmem:[#allocation5 + $0x88c] sm:$0xf]
    %v1597 = vld [vmem:[#allocation5 + $0x890] sm:$0xf]
    %v1598 = vld [vmem:[#allocation5 + $0x894] sm:$0xf]
    %v1599 = vld [vmem:[#allocation5 + $0x898] sm:$0xf]
    %v1600 = vld [vmem:[#allocation5 + $0x89c] sm:$0xf]
    %v1601 = vld [vmem:[#allocation5 + $0x8a0] sm:$0xf]
    %v1602 = vld [vmem:[#allocation5 + $0x8a4] sm:$0xf]
    %v1603 = vld [vmem:[#allocation5 + $0x8a8] sm:$0xf]
    %v1604 = vld [vmem:[#allocation5 + $0x8ac] sm:$0xf]
    %v1605 = vld [vmem:[#allocation5 + $0x8b0] sm:$0xf]
    %v1606 = vld [vmem:[#allocation5 + $0x8b4] sm:$0xf]
    %v1607 = vld [vmem:[#allocation5 + $0x8b8] sm:$0xf]
    %v1608 = vld [vmem:[#allocation5 + $0x8bc] sm:$0xf]
    %v1609 = vld [vmem:[#allocation5 + $0x8c0] sm:$0xf]
    %v1610 = vld [vmem:[#allocation5 + $0x8c4] sm:$0xf]
    %v1611 = vld [vmem:[#allocation5 + $0x8c8] sm:$0xf]
    %v1612 = vld [vmem:[#allocation5 + $0x8cc] sm:$0xf]
    %v1613 = vld [vmem:[#allocation5 + $0x8d0] sm:$0xf]
    %v1614 = vld [vmem:[#allocation5 + $0x8d4] sm:$0xf]
    %v1615 = vld [vmem:[#allocation5 + $0x8d8] sm:$0xf]
    %v1616 = vld [vmem:[#allocation5 + $0x8dc] sm:$0xf]
    %v1617 = vld [vmem:[#allocation5 + $0x8e0] sm:$0xf]
    %v1618 = vld [vmem:[#allocation5 + $0x8e4] sm:$0xf]
    %v1619 = vld [vmem:[#allocation5 + $0x8e8] sm:$0xf]
    %v1620 = vld [vmem:[#allocation5 + $0x8ec] sm:$0xf]
    %v1621 = vld [vmem:[#allocation5 + $0x8f0] sm:$0xf]
    %v1622 = vld [vmem:[#allocation5 + $0x8f4] sm:$0xf]
    %v1623 = vld [vmem:[#allocation5 + $0x8f8] sm:$0xf]
    %v1624 = vld [vmem:[#allocation5 + $0x8fc] sm:$0xf]
    %v1625 = vld [vmem:[#allocation5 + $0x900] sm:$0xf]
    %v1626 = vld [vmem:[#allocation5 + $0x904] sm:$0xf]
    %v1627 = vld [vmem:[#allocation5 + $0x908] sm:$0xf]
    %v1628 = vld [vmem:[#allocation5 + $0x90c] sm:$0xf]
    %v1629 = vld [vmem:[#allocation5 + $0x910] sm:$0xf]
    %v1630 = vld [vmem:[#allocation5 + $0x914] sm:$0xf]
    %v1631 = vld [vmem:[#allocation5 + $0x918] sm:$0xf]
    %v1632 = vld [vmem:[#allocation5 + $0x91c] sm:$0xf]
    %v1633 = vld [vmem:[#allocation5 + $0x920] sm:$0xf]
    %v1634 = vld [vmem:[#allocation5 + $0x924] sm:$0xf]
    %v1635 = vld [vmem:[#allocation5 + $0x928] sm:$0xf]
    %v1636 = vld [vmem:[#allocation5 + $0x92c] sm:$0xf]
    %v1637 = vld [vmem:[#allocation5 + $0x930] sm:$0xf]
    %v1638 = vld [vmem:[#allocation5 + $0x934] sm:$0xf]
    %v1639 = vld [vmem:[#allocation5 + $0x938] sm:$0xf]
    %v1640 = vld [vmem:[#allocation5 + $0x93c] sm:$0xf]
    %v1641 = vld [vmem:[#allocation5 + $0x940] sm:$0xf]
    %v1642 = vld [vmem:[#allocation5 + $0x944] sm:$0xf]
    %v1643 = vld [vmem:[#allocation5 + $0x948] sm:$0xf]
    %v1644 = vld [vmem:[#allocation5 + $0x94c] sm:$0xf]
    %v1645 = vld [vmem:[#allocation5 + $0x950] sm:$0xf]
    %v1646 = vld [vmem:[#allocation5 + $0x954] sm:$0xf]
    %v1647 = vld [vmem:[#allocation5 + $0x958] sm:$0xf]
    %v1648 = vld [vmem:[#allocation5 + $0x95c] sm:$0xf]
    %v1649 = vld [vmem:[#allocation5 + $0x960] sm:$0xf]
    %v1650 = vld [vmem:[#allocation5 + $0x964] sm:$0xf]
    %v1651 = vld [vmem:[#allocation5 + $0x968] sm:$0xf]
    %v1652 = vld [vmem:[#allocation5 + $0x96c] sm:$0xf]
    %v1653 = vld [vmem:[#allocation5 + $0x970] sm:$0xf]
    %v1654 = vld [vmem:[#allocation5 + $0x974] sm:$0xf]
    %v1655 = vld [vmem:[#allocation5 + $0x978] sm:$0xf]
    %v1656 = vld [vmem:[#allocation5 + $0x97c] sm:$0xf]
    %v1657 = vld [vmem:[#allocation5 + $0x980] sm:$0xf]
    %v1658 = vld [vmem:[#allocation5 + $0x984] sm:$0xf]
    %v1659 = vld [vmem:[#allocation5 + $0x988] sm:$0xf]
    %v1660 = vld [vmem:[#allocation5 + $0x98c] sm:$0xf]
    %v1661 = vld [vmem:[#allocation5 + $0x990] sm:$0xf]
    %v1662 = vld [vmem:[#allocation5 + $0x994] sm:$0xf]
    %v1663 = vld [vmem:[#allocation5 + $0x998] sm:$0xf]
    %v1664 = vld [vmem:[#allocation5 + $0x99c] sm:$0xf]
    %v1665 = vld [vmem:[#allocation5 + $0x9a0] sm:$0xf]
    %v1666 = vld [vmem:[#allocation5 + $0x9a4] sm:$0xf]
    %v1667 = vld [vmem:[#allocation5 + $0x9a8] sm:$0xf]
    %v1668 = vld [vmem:[#allocation5 + $0x9ac] sm:$0xf]
    %v1669 = vld [vmem:[#allocation5 + $0x9b0] sm:$0xf]
    %v1670 = vld [vmem:[#allocation5 + $0x9b4] sm:$0xf]
    %v1671 = vld [vmem:[#allocation5 + $0x9b8] sm:$0xf]
    %v1672 = vld [vmem:[#allocation5 + $0x9bc] sm:$0xf]
    %v1673 = vld [vmem:[#allocation5 + $0x9c0] sm:$0xf]
    %v1674 = vld [vmem:[#allocation5 + $0x9c4] sm:$0xf]
    %v1675 = vld [vmem:[#allocation5 + $0x9c8] sm:$0xf]
    %v1676 = vld [vmem:[#allocation5 + $0x9cc] sm:$0xf]
    %v1677 = vld [vmem:[#allocation5 + $0x9d0] sm:$0xf]
    %v1678 = vld [vmem:[#allocation5 + $0x9d4] sm:$0xf]
    %v1679 = vld [vmem:[#allocation5 + $0x9d8] sm:$0xf]
    %v1680 = vld [vmem:[#allocation5 + $0x9dc] sm:$0xf]
    %v1681 = vld [vmem:[#allocation5 + $0x9e0] sm:$0xf]
    %v1682 = vld [vmem:[#allocation5 + $0x9e4] sm:$0xf]
    %v1683 = vld [vmem:[#allocation5 + $0x9e8] sm:$0xf]
    %v1684 = vld [vmem:[#allocation5 + $0x9ec] sm:$0xf]
    %v1685 = vld [vmem:[#allocation5 + $0x9f0] sm:$0xf]
    %v1686 = vld [vmem:[#allocation5 + $0x9f4] sm:$0xf]
    %v1687 = vld [vmem:[#allocation5 + $0x9f8] sm:$0xf]
    %v1688 = vld [vmem:[#allocation5 + $0x9fc] sm:$0xf]
    %v1689 = vld [vmem:[#allocation5 + $0xa00] sm:$0xf]
    %v1690 = vld [vmem:[#allocation5 + $0xa04] sm:$0xf]
    %v1691 = vld [vmem:[#allocation5 + $0xa08] sm:$0xf]
    %v1692 = vld [vmem:[#allocation5 + $0xa0c] sm:$0xf]
    %v1693 = vld [vmem:[#allocation5 + $0xa10] sm:$0xf]
    %v1694 = vld [vmem:[#allocation5 + $0xa14] sm:$0xf]
    %v1695 = vld [vmem:[#allocation5 + $0xa18] sm:$0xf]
    %v1696 = vld [vmem:[#allocation5 + $0xa1c] sm:$0xf]
    %v1697 = vld [vmem:[#allocation5 + $0xa20] sm:$0xf]
    %v1698 = vld [vmem:[#allocation5 + $0xa24] sm:$0xf]
    %v1699 = vld [vmem:[#allocation5 + $0xa28] sm:$0xf]
    %v1700 = vld [vmem:[#allocation5 + $0xa2c] sm:$0xf]
    %v1701 = vld [vmem:[#allocation5 + $0xa30] sm:$0xf]
    %v1702 = vld [vmem:[#allocation5 + $0xa34] sm:$0xf]
    %v1703 = vld [vmem:[#allocation5 + $0xa38] sm:$0xf]
    %v1704 = vld [vmem:[#allocation5 + $0xa3c] sm:$0xf]
    %v1705 = vld [vmem:[#allocation5 + $0xa40] sm:$0xf]
    %v1706 = vld [vmem:[#allocation5 + $0xa44] sm:$0xf]
    %v1707 = vld [vmem:[#allocation5 + $0xa48] sm:$0xf]
    %v1708 = vld [vmem:[#allocation5 + $0xa4c] sm:$0xf]
    %v1709 = vld [vmem:[#allocation5 + $0xa50] sm:$0xf]
    %v1710 = vld [vmem:[#allocation5 + $0xa54] sm:$0xf]
    %v1711 = vld [vmem:[#allocation5 + $0xa58] sm:$0xf]
    %v1712 = vld [vmem:[#allocation5 + $0xa5c] sm:$0xf]
    %v1713 = vld [vmem:[#allocation5 + $0xa60] sm:$0xf]
    %v1714 = vld [vmem:[#allocation5 + $0xa64] sm:$0xf]
    %v1715 = vld [vmem:[#allocation5 + $0xa68] sm:$0xf]
    %v1716 = vld [vmem:[#allocation5 + $0xa6c] sm:$0xf]
    %v1717 = vld [vmem:[#allocation5 + $0xa70] sm:$0xf]
    %v1718 = vld [vmem:[#allocation5 + $0xa74] sm:$0xf]
    %v1719 = vld [vmem:[#allocation5 + $0xa78] sm:$0xf]
    %v1720 = vld [vmem:[#allocation5 + $0xa7c] sm:$0xf]
    %v1721 = vld [vmem:[#allocation5 + $0xa80] sm:$0xf]
    %v1722 = vld [vmem:[#allocation5 + $0xa84] sm:$0xf]
    %v1723 = vld [vmem:[#allocation5 + $0xa88] sm:$0xf]
    %v1724 = vld [vmem:[#allocation5 + $0xa8c] sm:$0xf]
    %v1725 = vld [vmem:[#allocation5 + $0xa90] sm:$0xf]
    %v1726 = vld [vmem:[#allocation5 + $0xa94] sm:$0xf]
    %v1727 = vld [vmem:[#allocation5 + $0xa98] sm:$0xf]
    %v1728 = vld [vmem:[#allocation5 + $0xa9c] sm:$0xf]
    %v1729 = vld [vmem:[#allocation5 + $0xaa0] sm:$0xf]
    %v1730 = vld [vmem:[#allocation5 + $0xaa4] sm:$0xf]
    %v1731 = vld [vmem:[#allocation5 + $0xaa8] sm:$0xf]
    %v1732 = vld [vmem:[#allocation5 + $0xaac] sm:$0xf]
    %v1733 = vld [vmem:[#allocation5 + $0xab0] sm:$0xf]
    %v1734 = vld [vmem:[#allocation5 + $0xab4] sm:$0xf]
    %v1735 = vld [vmem:[#allocation5 + $0xab8] sm:$0xf]
    %v1736 = vld [vmem:[#allocation5 + $0xabc] sm:$0xf]
    %v1737 = vld [vmem:[#allocation5 + $0xac0] sm:$0xf]
    %v1738 = vld [vmem:[#allocation5 + $0xac4] sm:$0xf]
    %v1739 = vld [vmem:[#allocation5 + $0xac8] sm:$0xf]
    %v1740 = vld [vmem:[#allocation5 + $0xacc] sm:$0xf]
    %v1741 = vld [vmem:[#allocation5 + $0xad0] sm:$0xf]
    %v1742 = vld [vmem:[#allocation5 + $0xad4] sm:$0xf]
    %v1743 = vld [vmem:[#allocation5 + $0xad8] sm:$0xf]
    %v1744 = vld [vmem:[#allocation5 + $0xadc] sm:$0xf]
    %v1745 = vld [vmem:[#allocation5 + $0xae0] sm:$0xf]
    %v1746 = vld [vmem:[#allocation5 + $0xae4] sm:$0xf]
    %v1747 = vld [vmem:[#allocation5 + $0xae8] sm:$0xf]
    %v1748 = vld [vmem:[#allocation5 + $0xaec] sm:$0xf]
    %v1749 = vld [vmem:[#allocation5 + $0xaf0] sm:$0xf]
    %v1750 = vld [vmem:[#allocation5 + $0xaf4] sm:$0xf]
    %v1751 = vld [vmem:[#allocation5 + $0xaf8] sm:$0xf]
    %v1752 = vld [vmem:[#allocation5 + $0xafc] sm:$0xf]
    %v1753 = vld [vmem:[#allocation5 + $0xb00] sm:$0xf]
    %v1754 = vld [vmem:[#allocation5 + $0xb04] sm:$0xf]
    %v1755 = vld [vmem:[#allocation5 + $0xb08] sm:$0xf]
    %v1756 = vld [vmem:[#allocation5 + $0xb0c] sm:$0xf]
    %v1757 = vld [vmem:[#allocation5 + $0xb10] sm:$0xf]
    %v1758 = vld [vmem:[#allocation5 + $0xb14] sm:$0xf]
    %v1759 = vld [vmem:[#allocation5 + $0xb18] sm:$0xf]
    %v1760 = vld [vmem:[#allocation5 + $0xb1c] sm:$0xf]
    %v1761 = vld [vmem:[#allocation5 + $0xb20] sm:$0xf]
    %v1762 = vld [vmem:[#allocation5 + $0xb24] sm:$0xf]
    %v1763 = vld [vmem:[#allocation5 + $0xb28] sm:$0xf]
    %v1764 = vld [vmem:[#allocation5 + $0xb2c] sm:$0xf]
    %v1765 = vld [vmem:[#allocation5 + $0xb30] sm:$0xf]
    %v1766 = vld [vmem:[#allocation5 + $0xb34] sm:$0xf]
    %v1767 = vld [vmem:[#allocation5 + $0xb38] sm:$0xf]
    %v1768 = vld [vmem:[#allocation5 + $0xb3c] sm:$0xf]
    %v1769 = vld [vmem:[#allocation5 + $0xb40] sm:$0xf]
    %v1770 = vld [vmem:[#allocation5 + $0xb44] sm:$0xf]
    %v1771 = vld [vmem:[#allocation5 + $0xb48] sm:$0xf]
    %v1772 = vld [vmem:[#allocation5 + $0xb4c] sm:$0xf]
    %v1773 = vld [vmem:[#allocation5 + $0xb50] sm:$0xf]
    %v1774 = vld [vmem:[#allocation5 + $0xb54] sm:$0xf]
    %v1775 = vld [vmem:[#allocation5 + $0xb58] sm:$0xf]
    %v1776 = vld [vmem:[#allocation5 + $0xb5c] sm:$0xf]
    %v1777 = vld [vmem:[#allocation5 + $0xb60] sm:$0xf]
    %v1778 = vld [vmem:[#allocation5 + $0xb64] sm:$0xf]
    %v1779 = vld [vmem:[#allocation5 + $0xb68] sm:$0xf]
    %v1780 = vld [vmem:[#allocation5 + $0xb6c] sm:$0xf]
    %v1781 = vld [vmem:[#allocation5 + $0xb70] sm:$0xf]
    %v1782 = vld [vmem:[#allocation5 + $0xb74] sm:$0xf]
    %v1783 = vld [vmem:[#allocation5 + $0xb78] sm:$0xf]
    %v1784 = vld [vmem:[#allocation5 + $0xb7c] sm:$0xf]
    %v1785 = vld [vmem:[#allocation5 + $0xb80] sm:$0xf]
    %v1786 = vld [vmem:[#allocation5 + $0xb84] sm:$0xf]
    %v1787 = vld [vmem:[#allocation5 + $0xb88] sm:$0xf]
    %v1788 = vld [vmem:[#allocation5 + $0xb8c] sm:$0xf]
    %v1789 = vld [vmem:[#allocation5 + $0xb90] sm:$0xf]
    %v1790 = vld [vmem:[#allocation5 + $0xb94] sm:$0xf]
    %v1791 = vld [vmem:[#allocation5 + $0xb98] sm:$0xf]
    %v1792 = vld [vmem:[#allocation5 + $0xb9c] sm:$0xf]
    %v1793 = vld [vmem:[#allocation5 + $0xba0] sm:$0xf]
    %v1794 = vld [vmem:[#allocation5 + $0xba4] sm:$0xf]
    %v1795 = vld [vmem:[#allocation5 + $0xba8] sm:$0xf]
    %v1796 = vld [vmem:[#allocation5 + $0xbac] sm:$0xf]
    %v1797 = vld [vmem:[#allocation5 + $0xbb0] sm:$0xf]
    %v1798 = vld [vmem:[#allocation5 + $0xbb4] sm:$0xf]
    %v1799 = vld [vmem:[#allocation5 + $0xbb8] sm:$0xf]
    %v1800 = vld [vmem:[#allocation5 + $0xbbc] sm:$0xf]
    %v1801 = vld [vmem:[#allocation5 + $0xbc0] sm:$0xf]
    %v1802 = vld [vmem:[#allocation5 + $0xbc4] sm:$0xf]
    %v1803 = vld [vmem:[#allocation5 + $0xbc8] sm:$0xf]
    %v1804 = vld [vmem:[#allocation5 + $0xbcc] sm:$0xf]
    %v1805 = vld [vmem:[#allocation5 + $0xbd0] sm:$0xf]
    %v1806 = vld [vmem:[#allocation5 + $0xbd4] sm:$0xf]
    %v1807 = vld [vmem:[#allocation5 + $0xbd8] sm:$0xf]
    %v1808 = vld [vmem:[#allocation5 + $0xbdc] sm:$0xf]
    %v1809 = vld [vmem:[#allocation5 + $0xbe0] sm:$0xf]
    %v1810 = vld [vmem:[#allocation5 + $0xbe4] sm:$0xf]
    %v1811 = vld [vmem:[#allocation5 + $0xbe8] sm:$0xf]
    %v1812 = vld [vmem:[#allocation5 + $0xbec] sm:$0xf]
    %v1813 = vld [vmem:[#allocation5 + $0xbf0] sm:$0xf]
    %v1814 = vld [vmem:[#allocation5 + $0xbf4] sm:$0xf]
    %v1815 = vld [vmem:[#allocation5 + $0xbf8] sm:$0xf]
    %v1816 = vld [vmem:[#allocation5 + $0xbfc] sm:$0xf]
    %v1817 = vld [vmem:[#allocation5 + $0xc00] sm:$0xf]
    %v1818 = vld [vmem:[#allocation5 + $0xc04] sm:$0xf]
    %v1819 = vld [vmem:[#allocation5 + $0xc08] sm:$0xf]
    %v1820 = vld [vmem:[#allocation5 + $0xc0c] sm:$0xf]
    %v1821 = vld [vmem:[#allocation5 + $0xc10] sm:$0xf]
    %v1822 = vld [vmem:[#allocation5 + $0xc14] sm:$0xf]
    %v1823 = vld [vmem:[#allocation5 + $0xc18] sm:$0xf]
    %v1824 = vld [vmem:[#allocation5 + $0xc1c] sm:$0xf]
    %v1825 = vld [vmem:[#allocation5 + $0xc20] sm:$0xf]
    %v1826 = vld [vmem:[#allocation5 + $0xc24] sm:$0xf]
    %v1827 = vld [vmem:[#allocation5 + $0xc28] sm:$0xf]
    %v1828 = vld [vmem:[#allocation5 + $0xc2c] sm:$0xf]
    %v1829 = vld [vmem:[#allocation5 + $0xc30] sm:$0xf]
    %v1830 = vld [vmem:[#allocation5 + $0xc34] sm:$0xf]
    %v1831 = vld [vmem:[#allocation5 + $0xc38] sm:$0xf]
    %v1832 = vld [vmem:[#allocation5 + $0xc3c] sm:$0xf]
    %v1833 = vld [vmem:[#allocation5 + $0xc40] sm:$0xf]
    %v1834 = vld [vmem:[#allocation5 + $0xc44] sm:$0xf]
    %v1835 = vld [vmem:[#allocation5 + $0xc48] sm:$0xf]
    %v1836 = vld [vmem:[#allocation5 + $0xc4c] sm:$0xf]
    %v1837 = vld [vmem:[#allocation5 + $0xc50] sm:$0xf]
    %v1838 = vld [vmem:[#allocation5 + $0xc54] sm:$0xf]
    %v1839 = vld [vmem:[#allocation5 + $0xc58] sm:$0xf]
    %v1840 = vld [vmem:[#allocation5 + $0xc5c] sm:$0xf]
    %v1841 = vld [vmem:[#allocation5 + $0xc60] sm:$0xf]
    %v1842 = vld [vmem:[#allocation5 + $0xc64] sm:$0xf]
    %v1843 = vld [vmem:[#allocation5 + $0xc68] sm:$0xf]
    %v1844 = vld [vmem:[#allocation5 + $0xc6c] sm:$0xf]
    %v1845 = vld [vmem:[#allocation5 + $0xc70] sm:$0xf]
    %v1846 = vld [vmem:[#allocation5 + $0xc74] sm:$0xf]
    %v1847 = vld [vmem:[#allocation5 + $0xc78] sm:$0xf]
    %v1848 = vld [vmem:[#allocation5 + $0xc7c] sm:$0xf]
    %v1849 = vld [vmem:[#allocation5 + $0xc80] sm:$0xf]
    %v1850 = vld [vmem:[#allocation5 + $0xc84] sm:$0xf]
    %v1851 = vld [vmem:[#allocation5 + $0xc88] sm:$0xf]
    %v1852 = vld [vmem:[#allocation5 + $0xc8c] sm:$0xf]
    %v1853 = vld [vmem:[#allocation5 + $0xc90] sm:$0xf]
    %v1854 = vld [vmem:[#allocation5 + $0xc94] sm:$0xf]
    %v1855 = vld [vmem:[#allocation5 + $0xc98] sm:$0xf]
    %v1856 = vld [vmem:[#allocation5 + $0xc9c] sm:$0xf]
    %v1857 = vld [vmem:[#allocation5 + $0xca0] sm:$0xf]
    %v1858 = vld [vmem:[#allocation5 + $0xca4] sm:$0xf]
    %v1859 = vld [vmem:[#allocation5 + $0xca8] sm:$0xf]
    %v1860 = vld [vmem:[#allocation5 + $0xcac] sm:$0xf]
    %v1861 = vld [vmem:[#allocation5 + $0xcb0] sm:$0xf]
    %v1862 = vld [vmem:[#allocation5 + $0xcb4] sm:$0xf]
    %v1863 = vld [vmem:[#allocation5 + $0xcb8] sm:$0xf]
    %v1864 = vld [vmem:[#allocation5 + $0xcbc] sm:$0xf]
    %v1865 = vld [vmem:[#allocation5 + $0xcc0] sm:$0xf]
    %v1866 = vld [vmem:[#allocation5 + $0xcc4] sm:$0xf]
    %v1867 = vld [vmem:[#allocation5 + $0xcc8] sm:$0xf]
    %v1868 = vld [vmem:[#allocation5 + $0xccc] sm:$0xf]
    %v1869 = vld [vmem:[#allocation5 + $0xcd0] sm:$0xf]
    %v1870 = vld [vmem:[#allocation5 + $0xcd4] sm:$0xf]
    %v1871 = vld [vmem:[#allocation5 + $0xcd8] sm:$0xf]
    %v1872 = vld [vmem:[#allocation5 + $0xcdc] sm:$0xf]
    %v1873 = vld [vmem:[#allocation5 + $0xce0] sm:$0xf]
    %v1874 = vld [vmem:[#allocation5 + $0xce4] sm:$0xf]
    %v1875 = vld [vmem:[#allocation5 + $0xce8] sm:$0xf]
    %v1876 = vld [vmem:[#allocation5 + $0xcec] sm:$0xf]
    %v1877 = vld [vmem:[#allocation5 + $0xcf0] sm:$0xf]
    %v1878 = vld [vmem:[#allocation5 + $0xcf4] sm:$0xf]
    %v1879 = vld [vmem:[#allocation5 + $0xcf8] sm:$0xf]
    %v1880 = vld [vmem:[#allocation5 + $0xcfc] sm:$0xf]
    %v1881 = vld [vmem:[#allocation5 + $0xd00] sm:$0xf]
    %v1882 = vld [vmem:[#allocation5 + $0xd04] sm:$0xf]
    %v1883 = vld [vmem:[#allocation5 + $0xd08] sm:$0xf]
    %v1884 = vld [vmem:[#allocation5 + $0xd0c] sm:$0xf]
    %v1885 = vld [vmem:[#allocation5 + $0xd10] sm:$0xf]
    %v1886 = vld [vmem:[#allocation5 + $0xd14] sm:$0xf]
    %v1887 = vld [vmem:[#allocation5 + $0xd18] sm:$0xf]
    %v1888 = vld [vmem:[#allocation5 + $0xd1c] sm:$0xf]
    %v1889 = vld [vmem:[#allocation5 + $0xd20] sm:$0xf]
    %v1890 = vld [vmem:[#allocation5 + $0xd24] sm:$0xf]
    %v1891 = vld [vmem:[#allocation5 + $0xd28] sm:$0xf]
    %v1892 = vld [vmem:[#allocation5 + $0xd2c] sm:$0xf]
    %v1893 = vld [vmem:[#allocation5 + $0xd30] sm:$0xf]
    %v1894 = vld [vmem:[#allocation5 + $0xd34] sm:$0xf]
    %v1895 = vld [vmem:[#allocation5 + $0xd38] sm:$0xf]
    %v1896 = vld [vmem:[#allocation5 + $0xd3c] sm:$0xf]
    %v1897 = vld [vmem:[#allocation5 + $0xd40] sm:$0xf]
    %v1898 = vld [vmem:[#allocation5 + $0xd44] sm:$0xf]
    %v1899 = vld [vmem:[#allocation5 + $0xd48] sm:$0xf]
    %v1900 = vld [vmem:[#allocation5 + $0xd4c] sm:$0xf]
    %v1901 = vld [vmem:[#allocation5 + $0xd50] sm:$0xf]
    %v1902 = vld [vmem:[#allocation5 + $0xd54] sm:$0xf]
    %v1903 = vld [vmem:[#allocation5 + $0xd58] sm:$0xf]
    %v1904 = vld [vmem:[#allocation5 + $0xd5c] sm:$0xf]
    %v1905 = vld [vmem:[#allocation5 + $0xd60] sm:$0xf]
    %v1906 = vld [vmem:[#allocation5 + $0xd64] sm:$0xf]
    %v1907 = vld [vmem:[#allocation5 + $0xd68] sm:$0xf]
    %v1908 = vld [vmem:[#allocation5 + $0xd6c] sm:$0xf]
    %v1909 = vld [vmem:[#allocation5 + $0xd70] sm:$0xf]
    %v1910 = vld [vmem:[#allocation5 + $0xd74] sm:$0xf]
    %v1911 = vld [vmem:[#allocation5 + $0xd78] sm:$0xf]
    %v1912 = vld [vmem:[#allocation5 + $0xd7c] sm:$0xf]
    %v1913 = vld [vmem:[#allocation5 + $0xd80] sm:$0xf]
    %v1914 = vld [vmem:[#allocation5 + $0xd84] sm:$0xf]
    %v1915 = vld [vmem:[#allocation5 + $0xd88] sm:$0xf]
    %v1916 = vld [vmem:[#allocation5 + $0xd8c] sm:$0xf]
    %v1917 = vld [vmem:[#allocation5 + $0xd90] sm:$0xf]
    %v1918 = vld [vmem:[#allocation5 + $0xd94] sm:$0xf]
    %v1919 = vld [vmem:[#allocation5 + $0xd98] sm:$0xf]
    %v1920 = vld [vmem:[#allocation5 + $0xd9c] sm:$0xf]
    %v1921 = vld [vmem:[#allocation5 + $0xda0] sm:$0xf]
    %v1922 = vld [vmem:[#allocation5 + $0xda4] sm:$0xf]
    %v1923 = vld [vmem:[#allocation5 + $0xda8] sm:$0xf]
    %v1924 = vld [vmem:[#allocation5 + $0xdac] sm:$0xf]
    %v1925 = vld [vmem:[#allocation5 + $0xdb0] sm:$0xf]
    %v1926 = vld [vmem:[#allocation5 + $0xdb4] sm:$0xf]
    %v1927 = vld [vmem:[#allocation5 + $0xdb8] sm:$0xf]
    %v1928 = vld [vmem:[#allocation5 + $0xdbc] sm:$0xf]
    %v1929 = vld [vmem:[#allocation5 + $0xdc0] sm:$0xf]
    %v1930 = vld [vmem:[#allocation5 + $0xdc4] sm:$0xf]
    %v1931 = vld [vmem:[#allocation5 + $0xdc8] sm:$0xf]
    %v1932 = vld [vmem:[#allocation5 + $0xdcc] sm:$0xf]
    %v1933 = vld [vmem:[#allocation5 + $0xdd0] sm:$0xf]
    %v1934 = vld [vmem:[#allocation5 + $0xdd4] sm:$0xf]
    %v1935 = vld [vmem:[#allocation5 + $0xdd8] sm:$0xf]
    %v1936 = vld [vmem:[#allocation5 + $0xddc] sm:$0xf]
    %v1937 = vld [vmem:[#allocation5 + $0xde0] sm:$0xf]
    %v1938 = vld [vmem:[#allocation5 + $0xde4] sm:$0xf]
    %v1939 = vld [vmem:[#allocation5 + $0xde8] sm:$0xf]
    %v1940 = vld [vmem:[#allocation5 + $0xdec] sm:$0xf]
    %v1941 = vld [vmem:[#allocation5 + $0xdf0] sm:$0xf]
    %v1942 = vld [vmem:[#allocation5 + $0xdf4] sm:$0xf]
    %v1943 = vld [vmem:[#allocation5 + $0xdf8] sm:$0xf]
    %v1944 = vld [vmem:[#allocation5 + $0xdfc] sm:$0xf]
    %v1945 = vld [vmem:[#allocation5 + $0xe00] sm:$0xf]
    %v1946 = vld [vmem:[#allocation5 + $0xe04] sm:$0xf]
    %v1947 = vld [vmem:[#allocation5 + $0xe08] sm:$0xf]
    %v1948 = vld [vmem:[#allocation5 + $0xe0c] sm:$0xf]
    %v1949 = vld [vmem:[#allocation5 + $0xe10] sm:$0xf]
    %v1950 = vld [vmem:[#allocation5 + $0xe14] sm:$0xf]
    %v1951 = vld [vmem:[#allocation5 + $0xe18] sm:$0xf]
    %v1952 = vld [vmem:[#allocation5 + $0xe1c] sm:$0xf]
    %v1953 = vld [vmem:[#allocation5 + $0xe20] sm:$0xf]
    %v1954 = vld [vmem:[#allocation5 + $0xe24] sm:$0xf]
    %v1955 = vld [vmem:[#allocation5 + $0xe28] sm:$0xf]
    %v1956 = vld [vmem:[#allocation5 + $0xe2c] sm:$0xf]
    %v1957 = vld [vmem:[#allocation5 + $0xe30] sm:$0xf]
    %v1958 = vld [vmem:[#allocation5 + $0xe34] sm:$0xf]
    %v1959 = vld [vmem:[#allocation5 + $0xe38] sm:$0xf]
    %v1960 = vld [vmem:[#allocation5 + $0xe3c] sm:$0xf]
    %v1961 = vld [vmem:[#allocation5 + $0xe40] sm:$0xf]
    %v1962 = vld [vmem:[#allocation5 + $0xe44] sm:$0xf]
    %v1963 = vld [vmem:[#allocation5 + $0xe48] sm:$0xf]
    %v1964 = vld [vmem:[#allocation5 + $0xe4c] sm:$0xf]
    %v1965 = vld [vmem:[#allocation5 + $0xe50] sm:$0xf]
    %v1966 = vld [vmem:[#allocation5 + $0xe54] sm:$0xf]
    %v1967 = vld [vmem:[#allocation5 + $0xe58] sm:$0xf]
    %v1968 = vld [vmem:[#allocation5 + $0xe5c] sm:$0xf]
    %v1969 = vld [vmem:[#allocation5 + $0xe60] sm:$0xf]
    %v1970 = vld [vmem:[#allocation5 + $0xe64] sm:$0xf]
    %v1971 = vld [vmem:[#allocation5 + $0xe68] sm:$0xf]
    %v1972 = vld [vmem:[#allocation5 + $0xe6c] sm:$0xf]
    %v1973 = vld [vmem:[#allocation5 + $0xe70] sm:$0xf]
    %v1974 = vld [vmem:[#allocation5 + $0xe74] sm:$0xf]
    %v1975 = vld [vmem:[#allocation5 + $0xe78] sm:$0xf]
    %v1976 = vld [vmem:[#allocation5 + $0xe7c] sm:$0xf]
    %v1977 = vld [vmem:[#allocation5 + $0xe80] sm:$0xf]
    %v1978 = vld [vmem:[#allocation5 + $0xe84] sm:$0xf]
    %v1979 = vld [vmem:[#allocation5 + $0xe88] sm:$0xf]
    %v1980 = vld [vmem:[#allocation5 + $0xe8c] sm:$0xf]
    %v1981 = vld [vmem:[#allocation5 + $0xe90] sm:$0xf]
    %v1982 = vld [vmem:[#allocation5 + $0xe94] sm:$0xf]
    %v1983 = vld [vmem:[#allocation5 + $0xe98] sm:$0xf]
    %v1984 = vld [vmem:[#allocation5 + $0xe9c] sm:$0xf]
    %v1985 = vld [vmem:[#allocation5 + $0xea0] sm:$0xf]
    %v1986 = vld [vmem:[#allocation5 + $0xea4] sm:$0xf]
    %v1987 = vld [vmem:[#allocation5 + $0xea8] sm:$0xf]
    %v1988 = vld [vmem:[#allocation5 + $0xeac] sm:$0xf]
    %v1989 = vld [vmem:[#allocation5 + $0xeb0] sm:$0xf]
    %v1990 = vld [vmem:[#allocation5 + $0xeb4] sm:$0xf]
    %v1991 = vld [vmem:[#allocation5 + $0xeb8] sm:$0xf]
    %v1992 = vld [vmem:[#allocation5 + $0xebc] sm:$0xf]
    %v1993 = vld [vmem:[#allocation5 + $0xec0] sm:$0xf]
    %v1994 = vld [vmem:[#allocation5 + $0xec4] sm:$0xf]
    %v1995 = vld [vmem:[#allocation5 + $0xec8] sm:$0xf]
    %v1996 = vld [vmem:[#allocation5 + $0xecc] sm:$0xf]
    %v1997 = vld [vmem:[#allocation5 + $0xed0] sm:$0xf]
    %v1998 = vld [vmem:[#allocation5 + $0xed4] sm:$0xf]
    %v1999 = vld [vmem:[#allocation5 + $0xed8] sm:$0xf]
    %v2000 = vld [vmem:[#allocation5 + $0xedc] sm:$0xf]
    %v2001 = vld [vmem:[#allocation5 + $0xee0] sm:$0xf]
    %v2002 = vld [vmem:[#allocation5 + $0xee4] sm:$0xf]
    %v2003 = vld [vmem:[#allocation5 + $0xee8] sm:$0xf]
    %v2004 = vld [vmem:[#allocation5 + $0xeec] sm:$0xf]
    %v2005 = vld [vmem:[#allocation5 + $0xef0] sm:$0xf]
    %v2006 = vld [vmem:[#allocation5 + $0xef4] sm:$0xf]
    %v2007 = vld [vmem:[#allocation5 + $0xef8] sm:$0xf]
    %v2008 = vld [vmem:[#allocation5 + $0xefc] sm:$0xf]
    %v2009 = vld [vmem:[#allocation5 + $0xf00] sm:$0xf]
    %v2010 = vld [vmem:[#allocation5 + $0xf04] sm:$0xf]
    %v2011 = vld [vmem:[#allocation5 + $0xf08] sm:$0xf]
    %v2012 = vld [vmem:[#allocation5 + $0xf0c] sm:$0xf]
    %v2013 = vld [vmem:[#allocation5 + $0xf10] sm:$0xf]
    %v2014 = vld [vmem:[#allocation5 + $0xf14] sm:$0xf]
    %v2015 = vld [vmem:[#allocation5 + $0xf18] sm:$0xf]
    %v2016 = vld [vmem:[#allocation5 + $0xf1c] sm:$0xf]
    %v2017 = vld [vmem:[#allocation5 + $0xf20] sm:$0xf]
    %v2018 = vld [vmem:[#allocation5 + $0xf24] sm:$0xf]
    %v2019 = vld [vmem:[#allocation5 + $0xf28] sm:$0xf]
    %v2020 = vld [vmem:[#allocation5 + $0xf2c] sm:$0xf]
    %v2021 = vld [vmem:[#allocation5 + $0xf30] sm:$0xf]
    %v2022 = vld [vmem:[#allocation5 + $0xf34] sm:$0xf]
    %v2023 = vld [vmem:[#allocation5 + $0xf38] sm:$0xf]
    %v2024 = vld [vmem:[#allocation5 + $0xf3c] sm:$0xf]
    %v2025 = vld [vmem:[#allocation5 + $0xf40] sm:$0xf]
    %v2026 = vld [vmem:[#allocation5 + $0xf44] sm:$0xf]
    %v2027 = vld [vmem:[#allocation5 + $0xf48] sm:$0xf]
    %v2028 = vld [vmem:[#allocation5 + $0xf4c] sm:$0xf]
    %v2029 = vld [vmem:[#allocation5 + $0xf50] sm:$0xf]
    %v2030 = vld [vmem:[#allocation5 + $0xf54] sm:$0xf]
    %v2031 = vld [vmem:[#allocation5 + $0xf58] sm:$0xf]
    %v2032 = vld [vmem:[#allocation5 + $0xf5c] sm:$0xf]
    %v2033 = vld [vmem:[#allocation5 + $0xf60] sm:$0xf]
    %v2034 = vld [vmem:[#allocation5 + $0xf64] sm:$0xf]
    %v2035 = vld [vmem:[#allocation5 + $0xf68] sm:$0xf]
    %v2036 = vld [vmem:[#allocation5 + $0xf6c] sm:$0xf]
    %v2037 = vld [vmem:[#allocation5 + $0xf70] sm:$0xf]
    %v2038 = vld [vmem:[#allocation5 + $0xf74] sm:$0xf]
    %v2039 = vld [vmem:[#allocation5 + $0xf78] sm:$0xf]
    %v2040 = vld [vmem:[#allocation5 + $0xf7c] sm:$0xf]
    %v2041 = vld [vmem:[#allocation5 + $0xf80] sm:$0xf]
    %v2042 = vld [vmem:[#allocation5 + $0xf84] sm:$0xf]
    %v2043 = vld [vmem:[#allocation5 + $0xf88] sm:$0xf]
    %v2044 = vld [vmem:[#allocation5 + $0xf8c] sm:$0xf]
    %v2045 = vld [vmem:[#allocation5 + $0xf90] sm:$0xf]
    %v2046 = vld [vmem:[#allocation5 + $0xf94] sm:$0xf]
    %v2047 = vld [vmem:[#allocation5 + $0xf98] sm:$0xf]
    %v2048 = vld [vmem:[#allocation5 + $0xf9c] sm:$0xf]
    %v2049 = vld [vmem:[#allocation5 + $0xfa0] sm:$0xf]
    %v2050 = vld [vmem:[#allocation5 + $0xfa4] sm:$0xf]
    %v2051 = vld [vmem:[#allocation5 + $0xfa8] sm:$0xf]
    %v2052 = vld [vmem:[#allocation5 + $0xfac] sm:$0xf]
    %v2053 = vld [vmem:[#allocation5 + $0xfb0] sm:$0xf]
    %v2054 = vld [vmem:[#allocation5 + $0xfb4] sm:$0xf]
    %v2055 = vld [vmem:[#allocation5 + $0xfb8] sm:$0xf]
    %v2056 = vld [vmem:[#allocation5 + $0xfbc] sm:$0xf]
    %v2057 = vld [vmem:[#allocation5 + $0xfc0] sm:$0xf]
    %v2058 = vld [vmem:[#allocation5 + $0xfc4] sm:$0xf]
    %v2059 = vld [vmem:[#allocation5 + $0xfc8] sm:$0xf]
    %v2060 = vld [vmem:[#allocation5 + $0xfcc] sm:$0xf]
    %v2061 = vld [vmem:[#allocation5 + $0xfd0] sm:$0xf]
    %v2062 = vld [vmem:[#allocation5 + $0xfd4] sm:$0xf]
    %v2063 = vld [vmem:[#allocation5 + $0xfd8] sm:$0xf]
    %v2064 = vld [vmem:[#allocation5 + $0xfdc] sm:$0xf]
    %v2065 = vld [vmem:[#allocation5 + $0xfe0] sm:$0xf]
    %v2066 = vld [vmem:[#allocation5 + $0xfe4] sm:$0xf]
    %v2067 = vld [vmem:[#allocation5 + $0xfe8] sm:$0xf]
    %v2068 = vld [vmem:[#allocation5 + $0xfec] sm:$0xf]
    %v2069 = vld [vmem:[#allocation5 + $0xff0] sm:$0xf]
    %v2070 = vld [vmem:[#allocation5 + $0xff4] sm:$0xf]
    %v2071 = vld [vmem:[#allocation5 + $0xff8] sm:$0xf]
    %v2072 = vld [vmem:[#allocation5 + $0xffc] sm:$0xf]
    %v2073 = vld [vmem:[#allocation5 + $0x1000] sm:$0xf]
    %v2074 = vld [vmem:[#allocation5 + $0x1004] sm:$0xf]
    %v2075 = vld [vmem:[#allocation5 + $0x1008] sm:$0xf]
    %v2076 = vld [vmem:[#allocation5 + $0x100c] sm:$0xf]
    %v2077 = vld [vmem:[#allocation5 + $0x1010] sm:$0xf]
    %v2078 = vld [vmem:[#allocation5 + $0x1014] sm:$0xf]
    %v2079 = vld [vmem:[#allocation5 + $0x1018] sm:$0xf]
    %v2080 = vld [vmem:[#allocation5 + $0x101c] sm:$0xf]
    %v2081 = vld [vmem:[#allocation5 + $0x1020] sm:$0xf]
    %v2082 = vld [vmem:[#allocation5 + $0x1024] sm:$0xf]
    %v2083 = vld [vmem:[#allocation5 + $0x1028] sm:$0xf]
    %v2084 = vld [vmem:[#allocation5 + $0x102c] sm:$0xf]
    %v2085 = vld [vmem:[#allocation5 + $0x1030] sm:$0xf]
    %v2086 = vld [vmem:[#allocation5 + $0x1034] sm:$0xf]
    %v2087 = vld [vmem:[#allocation5 + $0x1038] sm:$0xf]
    %v2088 = vld [vmem:[#allocation5 + $0x103c] sm:$0xf]
    %v2089 = vld [vmem:[#allocation5 + $0x1040] sm:$0xf]
    %v2090 = vld [vmem:[#allocation5 + $0x1044] sm:$0xf]
    %v2091 = vld [vmem:[#allocation5 + $0x1048] sm:$0xf]
    %v2092 = vld [vmem:[#allocation5 + $0x104c] sm:$0xf]
    %v2093 = vld [vmem:[#allocation5 + $0x1050] sm:$0xf]
    %v2094 = vld [vmem:[#allocation5 + $0x1054] sm:$0xf]
    %v2095 = vld [vmem:[#allocation5 + $0x1058] sm:$0xf]
    %v2096 = vld [vmem:[#allocation5 + $0x105c] sm:$0xf]
    %v2097 = vld [vmem:[#allocation5 + $0x1060] sm:$0xf]
    %v2098 = vld [vmem:[#allocation5 + $0x1064] sm:$0xf]
    %v2099 = vld [vmem:[#allocation5 + $0x1068] sm:$0xf]
    %v2100 = vld [vmem:[#allocation5 + $0x106c] sm:$0xf]
    %v2101 = vld [vmem:[#allocation5 + $0x1070] sm:$0xf]
    %v2102 = vld [vmem:[#allocation5 + $0x1074] sm:$0xf]
    %v2103 = vld [vmem:[#allocation5 + $0x1078] sm:$0xf]
    %v2104 = vld [vmem:[#allocation5 + $0x107c] sm:$0xf]
    %v2105 = vld [vmem:[#allocation5 + $0x1080] sm:$0xf]
    %v2106 = vld [vmem:[#allocation5 + $0x1084] sm:$0xf]
    %v2107 = vld [vmem:[#allocation5 + $0x1088] sm:$0xf]
    %v2108 = vld [vmem:[#allocation5 + $0x108c] sm:$0xf]
    %v2109 = vld [vmem:[#allocation5 + $0x1090] sm:$0xf]
    %v2110 = vld [vmem:[#allocation5 + $0x1094] sm:$0xf]
    %v2111 = vld [vmem:[#allocation5 + $0x1098] sm:$0xf]
    %v2112 = vld [vmem:[#allocation5 + $0x109c] sm:$0xf]
    %v2113 = vld [vmem:[#allocation5 + $0x10a0] sm:$0xf]
    %v2114 = vld [vmem:[#allocation5 + $0x10a4] sm:$0xf]
    %v2115 = vld [vmem:[#allocation5 + $0x10a8] sm:$0xf]
    %v2116 = vld [vmem:[#allocation5 + $0x10ac] sm:$0xf]
    %v2117 = vld [vmem:[#allocation5 + $0x10b0] sm:$0xf]
    %v2118 = vld [vmem:[#allocation5 + $0x10b4] sm:$0xf]
    %v2119 = vld [vmem:[#allocation5 + $0x10b8] sm:$0xf]
    %v2120 = vld [vmem:[#allocation5 + $0x10bc] sm:$0xf]
    %v2121 = vld [vmem:[#allocation5 + $0x10c0] sm:$0xf]
    %v2122 = vld [vmem:[#allocation5 + $0x10c4] sm:$0xf]
    %v2123 = vld [vmem:[#allocation5 + $0x10c8] sm:$0xf]
    %v2124 = vld [vmem:[#allocation5 + $0x10cc] sm:$0xf]
    %v2125 = vld [vmem:[#allocation5 + $0x10d0] sm:$0xf]
    %v2126 = vld [vmem:[#allocation5 + $0x10d4] sm:$0xf]
    %v2127 = vld [vmem:[#allocation5 + $0x10d8] sm:$0xf]
    %v2128 = vld [vmem:[#allocation5 + $0x10dc] sm:$0xf]
    %v2129 = vld [vmem:[#allocation5 + $0x10e0] sm:$0xf]
    %v2130 = vld [vmem:[#allocation5 + $0x10e4] sm:$0xf]
    %v2131 = vld [vmem:[#allocation5 + $0x10e8] sm:$0xf]
    %v2132 = vld [vmem:[#allocation5 + $0x10ec] sm:$0xf]
    %v2133 = vld [vmem:[#allocation5 + $0x10f0] sm:$0xf]
    %v2134 = vld [vmem:[#allocation5 + $0x10f4] sm:$0xf]
    %v2135 = vld [vmem:[#allocation5 + $0x10f8] sm:$0xf]
    %v2136 = vld [vmem:[#allocation5 + $0x10fc] sm:$0xf]
    %v2137 = vld [vmem:[#allocation5 + $0x1100] sm:$0xf]
    %v2138 = vld [vmem:[#allocation5 + $0x1104] sm:$0xf]
    %v2139 = vld [vmem:[#allocation5 + $0x1108] sm:$0xf]
    %v2140 = vld [vmem:[#allocation5 + $0x110c] sm:$0xf]
    %v2141 = vld [vmem:[#allocation5 + $0x1110] sm:$0xf]
    %v2142 = vld [vmem:[#allocation5 + $0x1114] sm:$0xf]
    %v2143 = vld [vmem:[#allocation5 + $0x1118] sm:$0xf]
    %v2144 = vld [vmem:[#allocation5 + $0x111c] sm:$0xf]
    %v2145 = vld [vmem:[#allocation5 + $0x1120] sm:$0xf]
    %v2146 = vld [vmem:[#allocation5 + $0x1124] sm:$0xf]
    %v2147 = vld [vmem:[#allocation5 + $0x1128] sm:$0xf]
    %v2148 = vld [vmem:[#allocation5 + $0x112c] sm:$0xf]
    %v2149 = vld [vmem:[#allocation5 + $0x1130] sm:$0xf]
    %v2150 = vld [vmem:[#allocation5 + $0x1134] sm:$0xf]
    %v2151 = vld [vmem:[#allocation5 + $0x1138] sm:$0xf]
    %v2152 = vld [vmem:[#allocation5 + $0x113c] sm:$0xf]
    %v2153 = vld [vmem:[#allocation5 + $0x1140] sm:$0xf]
    %v2154 = vld [vmem:[#allocation5 + $0x1144] sm:$0xf]
    %v2155 = vld [vmem:[#allocation5 + $0x1148] sm:$0xf]
    %v2156 = vld [vmem:[#allocation5 + $0x114c] sm:$0xf]
    %v2157 = vld [vmem:[#allocation5 + $0x1150] sm:$0xf]
    %v2158 = vld [vmem:[#allocation5 + $0x1154] sm:$0xf]
    %v2159 = vld [vmem:[#allocation5 + $0x1158] sm:$0xf]
    %v2160 = vld [vmem:[#allocation5 + $0x115c] sm:$0xf]
    %v2161 = vld [vmem:[#allocation5 + $0x1160] sm:$0xf]
    %v2162 = vld [vmem:[#allocation5 + $0x1164] sm:$0xf]
    %v2163 = vld [vmem:[#allocation5 + $0x1168] sm:$0xf]
    %v2164 = vld [vmem:[#allocation5 + $0x116c] sm:$0xf]
    %v2165 = vld [vmem:[#allocation5 + $0x1170] sm:$0xf]
    %v2166 = vld [vmem:[#allocation5 + $0x1174] sm:$0xf]
    %v2167 = vld [vmem:[#allocation5 + $0x1178] sm:$0xf]
    %v2168 = vld [vmem:[#allocation5 + $0x117c] sm:$0xf]
    %v2169 = vld [vmem:[#allocation5 + $0x1180] sm:$0xf]
    %v2170 = vld [vmem:[#allocation5 + $0x1184] sm:$0xf]
    %v2171 = vld [vmem:[#allocation5 + $0x1188] sm:$0xf]
    %v2172 = vld [vmem:[#allocation5 + $0x118c] sm:$0xf]
    %v2173 = vld [vmem:[#allocation5 + $0x1190] sm:$0xf]
    %v2174 = vld [vmem:[#allocation5 + $0x1194] sm:$0xf]
    %v2175 = vld [vmem:[#allocation5 + $0x1198] sm:$0xf]
    %v2176 = vld [vmem:[#allocation5 + $0x119c] sm:$0xf]
    %v2177 = vld [vmem:[#allocation5 + $0x11a0] sm:$0xf]
    %v2178 = vld [vmem:[#allocation5 + $0x11a4] sm:$0xf]
    %v2179 = vld [vmem:[#allocation5 + $0x11a8] sm:$0xf]
    %v2180 = vld [vmem:[#allocation5 + $0x11ac] sm:$0xf]
    %v2181 = vld [vmem:[#allocation5 + $0x11b0] sm:$0xf]
    %v2182 = vld [vmem:[#allocation5 + $0x11b4] sm:$0xf]
    %v2183 = vld [vmem:[#allocation5 + $0x11b8] sm:$0xf]
    %v2184 = vld [vmem:[#allocation5 + $0x11bc] sm:$0xf]
    %v2185 = vld [vmem:[#allocation5 + $0x11c0] sm:$0xf]
    %v2186 = vld [vmem:[#allocation5 + $0x11c4] sm:$0xf]
    %v2187 = vld [vmem:[#allocation5 + $0x11c8] sm:$0xf]
    %v2188 = vld [vmem:[#allocation5 + $0x11cc] sm:$0xf]
    %v2189 = vld [vmem:[#allocation5 + $0x11d0] sm:$0xf]
    %v2190 = vld [vmem:[#allocation5 + $0x11d4] sm:$0xf]
    %v2191 = vld [vmem:[#allocation5 + $0x11d8] sm:$0xf]
    %v2192 = vld [vmem:[#allocation5 + $0x11dc] sm:$0xf]
    %v2193 = vld [vmem:[#allocation5 + $0x11e0] sm:$0xf]
    %v2194 = vld [vmem:[#allocation5 + $0x11e4] sm:$0xf]
    %v2195 = vld [vmem:[#allocation5 + $0x11e8] sm:$0xf]
    %v2196 = vld [vmem:[#allocation5 + $0x11ec] sm:$0xf]
    %v2197 = vld [vmem:[#allocation5 + $0x11f0] sm:$0xf]
    %v2198 = vld [vmem:[#allocation5 + $0x11f4] sm:$0xf]
    %v2199 = vld [vmem:[#allocation5 + $0x11f8] sm:$0xf]
    %v2200 = vld [vmem:[#allocation5 + $0x11fc] sm:$0xf]
    %v3353 = vunpack.c.l.b16 %v1049
    %v3354 = vunpack.c.l.b16 %v1050
    %v3355 = vunpack.c.l.b16 %v1051
    %v3356 = vunpack.c.l.b16 %v1052
    %v3357 = vunpack.c.l.b16 %v1053
    %v3358 = vunpack.c.l.b16 %v1054
    %v3359 = vunpack.c.l.b16 %v1055
    %v3360 = vunpack.c.l.b16 %v1056
    %v3361 = vunpack.c.l.b16 %v1057
    %v3362 = vunpack.c.l.b16 %v1058
    %v3363 = vunpack.c.l.b16 %v1059
    %v3364 = vunpack.c.l.b16 %v1060
    %v3365 = vunpack.c.l.b16 %v1061
    %v3366 = vunpack.c.l.b16 %v1062
    %v3367 = vunpack.c.l.b16 %v1063
    %v3368 = vunpack.c.l.b16 %v1064
    %v3369 = vunpack.c.l.b16 %v1065
    %v3370 = vunpack.c.l.b16 %v1066
    %v3371 = vunpack.c.l.b16 %v1067
    %v3372 = vunpack.c.l.b16 %v1068
    %v3373 = vunpack.c.l.b16 %v1069
    %v3374 = vunpack.c.l.b16 %v1070
    %v3375 = vunpack.c.l.b16 %v1071
    %v3376 = vunpack.c.l.b16 %v1072
    %v3377 = vunpack.c.l.b16 %v1073
    %v3378 = vunpack.c.l.b16 %v1074
    %v3379 = vunpack.c.l.b16 %v1075
    %v3380 = vunpack.c.l.b16 %v1076
    %v3381 = vunpack.c.l.b16 %v1077
    %v3382 = vunpack.c.l.b16 %v1078
    %v3383 = vunpack.c.l.b16 %v1079
    %v3384 = vunpack.c.l.b16 %v1080
    %v3385 = vunpack.c.l.b16 %v1081
    %v3386 = vunpack.c.l.b16 %v1082
    %v3387 = vunpack.c.l.b16 %v1083
    %v3388 = vunpack.c.l.b16 %v1084
    %v3389 = vunpack.c.l.b16 %v1085
    %v3390 = vunpack.c.l.b16 %v1086
    %v3391 = vunpack.c.l.b16 %v1087
    %v3392 = vunpack.c.l.b16 %v1088
    %v3393 = vunpack.c.l.b16 %v1089
    %v3394 = vunpack.c.l.b16 %v1090
    %v3395 = vunpack.c.l.b16 %v1091
    %v3396 = vunpack.c.l.b16 %v1092
    %v3397 = vunpack.c.l.b16 %v1093
    %v3398 = vunpack.c.l.b16 %v1094
    %v3399 = vunpack.c.l.b16 %v1095
    %v3400 = vunpack.c.l.b16 %v1096
    %v3401 = vunpack.c.l.b16 %v1097
    %v3402 = vunpack.c.l.b16 %v1098
    %v3403 = vunpack.c.l.b16 %v1099
    %v3404 = vunpack.c.l.b16 %v1100
    %v3405 = vunpack.c.l.b16 %v1101
    %v3406 = vunpack.c.l.b16 %v1102
    %v3407 = vunpack.c.l.b16 %v1103
    %v3408 = vunpack.c.l.b16 %v1104
    %v3409 = vunpack.c.l.b16 %v1105
    %v3410 = vunpack.c.l.b16 %v1106
    %v3411 = vunpack.c.l.b16 %v1107
    %v3412 = vunpack.c.l.b16 %v1108
    %v3413 = vunpack.c.l.b16 %v1109
    %v3414 = vunpack.c.l.b16 %v1110
    %v3415 = vunpack.c.l.b16 %v1111
    %v3416 = vunpack.c.l.b16 %v1112
    %v3417 = vunpack.c.l.b16 %v1113
    %v3418 = vunpack.c.l.b16 %v1114
    %v3419 = vunpack.c.l.b16 %v1115
    %v3420 = vunpack.c.l.b16 %v1116
    %v3421 = vunpack.c.l.b16 %v1117
    %v3422 = vunpack.c.l.b16 %v1118
    %v3423 = vunpack.c.l.b16 %v1119
    %v3424 = vunpack.c.l.b16 %v1120
    %v3425 = vunpack.c.l.b16 %v1121
    %v3426 = vunpack.c.l.b16 %v1122
    %v3427 = vunpack.c.l.b16 %v1123
    %v3428 = vunpack.c.l.b16 %v1124
    %v3429 = vunpack.c.l.b16 %v1125
    %v3430 = vunpack.c.l.b16 %v1126
    %v3431 = vunpack.c.l.b16 %v1127
    %v3432 = vunpack.c.l.b16 %v1128
    %v3433 = vunpack.c.l.b16 %v1129
    %v3434 = vunpack.c.l.b16 %v1130
    %v3435 = vunpack.c.l.b16 %v1131
    %v3436 = vunpack.c.l.b16 %v1132
    %v3437 = vunpack.c.l.b16 %v1133
    %v3438 = vunpack.c.l.b16 %v1134
    %v3439 = vunpack.c.l.b16 %v1135
    %v3440 = vunpack.c.l.b16 %v1136
    %v3441 = vunpack.c.l.b16 %v1137
    %v3442 = vunpack.c.l.b16 %v1138
    %v3443 = vunpack.c.l.b16 %v1139
    %v3444 = vunpack.c.l.b16 %v1140
    %v3445 = vunpack.c.l.b16 %v1141
    %v3446 = vunpack.c.l.b16 %v1142
    %v3447 = vunpack.c.l.b16 %v1143
    %v3448 = vunpack.c.l.b16 %v1144
    %v3449 = vunpack.c.l.b16 %v1145
    %v3450 = vunpack.c.l.b16 %v1146
    %v3451 = vunpack.c.l.b16 %v1147
    %v3452 = vunpack.c.l.b16 %v1148
    %v3453 = vunpack.c.l.b16 %v1149
    %v3454 = vunpack.c.l.b16 %v1150
    %v3455 = vunpack.c.l.b16 %v1151
    %v3456 = vunpack.c.l.b16 %v1152
    %v3457 = vunpack.c.l.b16 %v1153
    %v3458 = vunpack.c.l.b16 %v1154
    %v3459 = vunpack.c.l.b16 %v1155
    %v3460 = vunpack.c.l.b16 %v1156
    %v3461 = vunpack.c.l.b16 %v1157
    %v3462 = vunpack.c.l.b16 %v1158
    %v3463 = vunpack.c.l.b16 %v1159
    %v3464 = vunpack.c.l.b16 %v1160
    %v3465 = vunpack.c.l.b16 %v1161
    %v3466 = vunpack.c.l.b16 %v1162
    %v3467 = vunpack.c.l.b16 %v1163
    %v3468 = vunpack.c.l.b16 %v1164
    %v3469 = vunpack.c.l.b16 %v1165
    %v3470 = vunpack.c.l.b16 %v1166
    %v3471 = vunpack.c.l.b16 %v1167
    %v3472 = vunpack.c.l.b16 %v1168
    %v3473 = vunpack.c.l.b16 %v1169
    %v3474 = vunpack.c.l.b16 %v1170
    %v3475 = vunpack.c.l.b16 %v1171
    %v3476 = vunpack.c.l.b16 %v1172
    %v3477 = vunpack.c.l.b16 %v1173
    %v3478 = vunpack.c.l.b16 %v1174
    %v3479 = vunpack.c.l.b16 %v1175
    %v3480 = vunpack.c.l.b16 %v1176
    %v3481 = vunpack.c.l.b16 %v1177
    %v3482 = vunpack.c.l.b16 %v1178
    %v3483 = vunpack.c.l.b16 %v1179
    %v3484 = vunpack.c.l.b16 %v1180
    %v3485 = vunpack.c.l.b16 %v1181
    %v3486 = vunpack.c.l.b16 %v1182
    %v3487 = vunpack.c.l.b16 %v1183
    %v3488 = vunpack.c.l.b16 %v1184
    %v3489 = vunpack.c.l.b16 %v1185
    %v3490 = vunpack.c.l.b16 %v1186
    %v3491 = vunpack.c.l.b16 %v1187
    %v3492 = vunpack.c.l.b16 %v1188
    %v3493 = vunpack.c.l.b16 %v1189
    %v3494 = vunpack.c.l.b16 %v1190
    %v3495 = vunpack.c.l.b16 %v1191
    %v3496 = vunpack.c.l.b16 %v1192
    %v3497 = vunpack.c.l.b16 %v1193
    %v3498 = vunpack.c.l.b16 %v1194
    %v3499 = vunpack.c.l.b16 %v1195
    %v3500 = vunpack.c.l.b16 %v1196
    %v3501 = vunpack.c.l.b16 %v1197
    %v3502 = vunpack.c.l.b16 %v1198
    %v3503 = vunpack.c.l.b16 %v1199
    %v3504 = vunpack.c.l.b16 %v1200
    %v3505 = vunpack.c.l.b16 %v1201
    %v3506 = vunpack.c.l.b16 %v1202
    %v3507 = vunpack.c.l.b16 %v1203
    %v3508 = vunpack.c.l.b16 %v1204
    %v3509 = vunpack.c.l.b16 %v1205
    %v3510 = vunpack.c.l.b16 %v1206
    %v3511 = vunpack.c.l.b16 %v1207
    %v3512 = vunpack.c.l.b16 %v1208
    %v3513 = vunpack.c.l.b16 %v1209
    %v3514 = vunpack.c.l.b16 %v1210
    %v3515 = vunpack.c.l.b16 %v1211
    %v3516 = vunpack.c.l.b16 %v1212
    %v3517 = vunpack.c.l.b16 %v1213
    %v3518 = vunpack.c.l.b16 %v1214
    %v3519 = vunpack.c.l.b16 %v1215
    %v3520 = vunpack.c.l.b16 %v1216
    %v3521 = vunpack.c.l.b16 %v1217
    %v3522 = vunpack.c.l.b16 %v1218
    %v3523 = vunpack.c.l.b16 %v1219
    %v3524 = vunpack.c.l.b16 %v1220
    %v3525 = vunpack.c.l.b16 %v1221
    %v3526 = vunpack.c.l.b16 %v1222
    %v3527 = vunpack.c.l.b16 %v1223
    %v3528 = vunpack.c.l.b16 %v1224
    %v3529 = vunpack.c.l.b16 %v1225
    %v3530 = vunpack.c.l.b16 %v1226
    %v3531 = vunpack.c.l.b16 %v1227
    %v3532 = vunpack.c.l.b16 %v1228
    %v3533 = vunpack.c.l.b16 %v1229
    %v3534 = vunpack.c.l.b16 %v1230
    %v3535 = vunpack.c.l.b16 %v1231
    %v3536 = vunpack.c.l.b16 %v1232
    %v3537 = vunpack.c.l.b16 %v1233
    %v3538 = vunpack.c.l.b16 %v1234
    %v3539 = vunpack.c.l.b16 %v1235
    %v3540 = vunpack.c.l.b16 %v1236
    %v3541 = vunpack.c.l.b16 %v1237
    %v3542 = vunpack.c.l.b16 %v1238
    %v3543 = vunpack.c.l.b16 %v1239
    %v3544 = vunpack.c.l.b16 %v1240
    %v3545 = vunpack.c.l.b16 %v1241
    %v3546 = vunpack.c.l.b16 %v1242
    %v3547 = vunpack.c.l.b16 %v1243
    %v3548 = vunpack.c.l.b16 %v1244
    %v3549 = vunpack.c.l.b16 %v1245
    %v3550 = vunpack.c.l.b16 %v1246
    %v3551 = vunpack.c.l.b16 %v1247
    %v3552 = vunpack.c.l.b16 %v1248
    %v3553 = vunpack.c.l.b16 %v1249
    %v3554 = vunpack.c.l.b16 %v1250
    %v3555 = vunpack.c.l.b16 %v1251
    %v3556 = vunpack.c.l.b16 %v1252
    %v3557 = vunpack.c.l.b16 %v1253
    %v3558 = vunpack.c.l.b16 %v1254
    %v3559 = vunpack.c.l.b16 %v1255
    %v3560 = vunpack.c.l.b16 %v1256
    %v3561 = vunpack.c.l.b16 %v1257
    %v3562 = vunpack.c.l.b16 %v1258
    %v3563 = vunpack.c.l.b16 %v1259
    %v3564 = vunpack.c.l.b16 %v1260
    %v3565 = vunpack.c.l.b16 %v1261
    %v3566 = vunpack.c.l.b16 %v1262
    %v3567 = vunpack.c.l.b16 %v1263
    %v3568 = vunpack.c.l.b16 %v1264
    %v3569 = vunpack.c.l.b16 %v1265
    %v3570 = vunpack.c.l.b16 %v1266
    %v3571 = vunpack.c.l.b16 %v1267
    %v3572 = vunpack.c.l.b16 %v1268
    %v3573 = vunpack.c.l.b16 %v1269
    %v3574 = vunpack.c.l.b16 %v1270
    %v3575 = vunpack.c.l.b16 %v1271
    %v3576 = vunpack.c.l.b16 %v1272
    %v3577 = vunpack.c.l.b16 %v1273
    %v3578 = vunpack.c.l.b16 %v1274
    %v3579 = vunpack.c.l.b16 %v1275
    %v3580 = vunpack.c.l.b16 %v1276
    %v3581 = vunpack.c.l.b16 %v1277
    %v3582 = vunpack.c.l.b16 %v1278
    %v3583 = vunpack.c.l.b16 %v1279
    %v3584 = vunpack.c.l.b16 %v1280
    %v3585 = vunpack.c.l.b16 %v1281
    %v3586 = vunpack.c.l.b16 %v1282
    %v3587 = vunpack.c.l.b16 %v1283
    %v3588 = vunpack.c.l.b16 %v1284
    %v3589 = vunpack.c.l.b16 %v1285
    %v3590 = vunpack.c.l.b16 %v1286
    %v3591 = vunpack.c.l.b16 %v1287
    %v3592 = vunpack.c.l.b16 %v1288
    %v3593 = vunpack.c.l.b16 %v1289
    %v3594 = vunpack.c.l.b16 %v1290
    %v3595 = vunpack.c.l.b16 %v1291
    %v3596 = vunpack.c.l.b16 %v1292
    %v3597 = vunpack.c.l.b16 %v1293
    %v3598 = vunpack.c.l.b16 %v1294
    %v3599 = vunpack.c.l.b16 %v1295
    %v3600 = vunpack.c.l.b16 %v1296
    %v3601 = vunpack.c.l.b16 %v1297
    %v3602 = vunpack.c.l.b16 %v1298
    %v3603 = vunpack.c.l.b16 %v1299
    %v3604 = vunpack.c.l.b16 %v1300
    %v3605 = vunpack.c.l.b16 %v1301
    %v3606 = vunpack.c.l.b16 %v1302
    %v3607 = vunpack.c.l.b16 %v1303
    %v3608 = vunpack.c.l.b16 %v1304
    %v3609 = vunpack.c.l.b16 %v1305
    %v3610 = vunpack.c.l.b16 %v1306
    %v3611 = vunpack.c.l.b16 %v1307
    %v3612 = vunpack.c.l.b16 %v1308
    %v3613 = vunpack.c.l.b16 %v1309
    %v3614 = vunpack.c.l.b16 %v1310
    %v3615 = vunpack.c.l.b16 %v1311
    %v3616 = vunpack.c.l.b16 %v1312
    %v3617 = vunpack.c.l.b16 %v1313
    %v3618 = vunpack.c.l.b16 %v1314
    %v3619 = vunpack.c.l.b16 %v1315
    %v3620 = vunpack.c.l.b16 %v1316
    %v3621 = vunpack.c.l.b16 %v1317
    %v3622 = vunpack.c.l.b16 %v1318
    %v3623 = vunpack.c.l.b16 %v1319
    %v3624 = vunpack.c.l.b16 %v1320
    %v3625 = vunpack.c.l.b16 %v1321
    %v3626 = vunpack.c.l.b16 %v1322
    %v3627 = vunpack.c.l.b16 %v1323
    %v3628 = vunpack.c.l.b16 %v1324
    %v3629 = vunpack.c.l.b16 %v1325
    %v3630 = vunpack.c.l.b16 %v1326
    %v3631 = vunpack.c.l.b16 %v1327
    %v3632 = vunpack.c.l.b16 %v1328
    %v3633 = vunpack.c.l.b16 %v1329
    %v3634 = vunpack.c.l.b16 %v1330
    %v3635 = vunpack.c.l.b16 %v1331
    %v3636 = vunpack.c.l.b16 %v1332
    %v3637 = vunpack.c.l.b16 %v1333
    %v3638 = vunpack.c.l.b16 %v1334
    %v3639 = vunpack.c.l.b16 %v1335
    %v3640 = vunpack.c.l.b16 %v1336
    %v3641 = vunpack.c.l.b16 %v1337
    %v3642 = vunpack.c.l.b16 %v1338
    %v3643 = vunpack.c.l.b16 %v1339
    %v3644 = vunpack.c.l.b16 %v1340
    %v3645 = vunpack.c.l.b16 %v1341
    %v3646 = vunpack.c.l.b16 %v1342
    %v3647 = vunpack.c.l.b16 %v1343
    %v3648 = vunpack.c.l.b16 %v1344
    %v3649 = vunpack.c.l.b16 %v1345
    %v3650 = vunpack.c.l.b16 %v1346
    %v3651 = vunpack.c.l.b16 %v1347
    %v3652 = vunpack.c.l.b16 %v1348
    %v3653 = vunpack.c.l.b16 %v1349
    %v3654 = vunpack.c.l.b16 %v1350
    %v3655 = vunpack.c.l.b16 %v1351
    %v3656 = vunpack.c.l.b16 %v1352
    %v3657 = vunpack.c.l.b16 %v1353
    %v3658 = vunpack.c.l.b16 %v1354
    %v3659 = vunpack.c.l.b16 %v1355
    %v3660 = vunpack.c.l.b16 %v1356
    %v3661 = vunpack.c.l.b16 %v1357
    %v3662 = vunpack.c.l.b16 %v1358
    %v3663 = vunpack.c.l.b16 %v1359
    %v3664 = vunpack.c.l.b16 %v1360
    %v3665 = vunpack.c.l.b16 %v1361
    %v3666 = vunpack.c.l.b16 %v1362
    %v3667 = vunpack.c.l.b16 %v1363
    %v3668 = vunpack.c.l.b16 %v1364
    %v3669 = vunpack.c.l.b16 %v1365
    %v3670 = vunpack.c.l.b16 %v1366
    %v3671 = vunpack.c.l.b16 %v1367
    %v3672 = vunpack.c.l.b16 %v1368
    %v3673 = vunpack.c.l.b16 %v1369
    %v3674 = vunpack.c.l.b16 %v1370
    %v3675 = vunpack.c.l.b16 %v1371
    %v3676 = vunpack.c.l.b16 %v1372
    %v3677 = vunpack.c.l.b16 %v1373
    %v3678 = vunpack.c.l.b16 %v1374
    %v3679 = vunpack.c.l.b16 %v1375
    %v3680 = vunpack.c.l.b16 %v1376
    %v3681 = vunpack.c.l.b16 %v1377
    %v3682 = vunpack.c.l.b16 %v1378
    %v3683 = vunpack.c.l.b16 %v1379
    %v3684 = vunpack.c.l.b16 %v1380
    %v3685 = vunpack.c.l.b16 %v1381
    %v3686 = vunpack.c.l.b16 %v1382
    %v3687 = vunpack.c.l.b16 %v1383
    %v3688 = vunpack.c.l.b16 %v1384
    %v3689 = vunpack.c.l.b16 %v1385
    %v3690 = vunpack.c.l.b16 %v1386
    %v3691 = vunpack.c.l.b16 %v1387
    %v3692 = vunpack.c.l.b16 %v1388
    %v3693 = vunpack.c.l.b16 %v1389
    %v3694 = vunpack.c.l.b16 %v1390
    %v3695 = vunpack.c.l.b16 %v1391
    %v3696 = vunpack.c.l.b16 %v1392
    %v3697 = vunpack.c.l.b16 %v1393
    %v3698 = vunpack.c.l.b16 %v1394
    %v3699 = vunpack.c.l.b16 %v1395
    %v3700 = vunpack.c.l.b16 %v1396
    %v3701 = vunpack.c.l.b16 %v1397
    %v3702 = vunpack.c.l.b16 %v1398
    %v3703 = vunpack.c.l.b16 %v1399
    %v3704 = vunpack.c.l.b16 %v1400
    %v3705 = vunpack.c.l.b16 %v1401
    %v3706 = vunpack.c.l.b16 %v1402
    %v3707 = vunpack.c.l.b16 %v1403
    %v3708 = vunpack.c.l.b16 %v1404
    %v3709 = vunpack.c.l.b16 %v1405
    %v3710 = vunpack.c.l.b16 %v1406
    %v3711 = vunpack.c.l.b16 %v1407
    %v3712 = vunpack.c.l.b16 %v1408
    %v3713 = vunpack.c.l.b16 %v1409
    %v3714 = vunpack.c.l.b16 %v1410
    %v3715 = vunpack.c.l.b16 %v1411
    %v3716 = vunpack.c.l.b16 %v1412
    %v3717 = vunpack.c.l.b16 %v1413
    %v3718 = vunpack.c.l.b16 %v1414
    %v3719 = vunpack.c.l.b16 %v1415
    %v3720 = vunpack.c.l.b16 %v1416
    %v3721 = vunpack.c.l.b16 %v1417
    %v3722 = vunpack.c.l.b16 %v1418
    %v3723 = vunpack.c.l.b16 %v1419
    %v3724 = vunpack.c.l.b16 %v1420
    %v3725 = vunpack.c.l.b16 %v1421
    %v3726 = vunpack.c.l.b16 %v1422
    %v3727 = vunpack.c.l.b16 %v1423
    %v3728 = vunpack.c.l.b16 %v1424
    %v3729 = vunpack.c.l.b16 %v1425
    %v3730 = vunpack.c.l.b16 %v1426
    %v3731 = vunpack.c.l.b16 %v1427
    %v3732 = vunpack.c.l.b16 %v1428
    %v3733 = vunpack.c.l.b16 %v1429
    %v3734 = vunpack.c.l.b16 %v1430
    %v3735 = vunpack.c.l.b16 %v1431
    %v3736 = vunpack.c.l.b16 %v1432
    %v3737 = vunpack.c.l.b16 %v1433
    %v3738 = vunpack.c.l.b16 %v1434
    %v3739 = vunpack.c.l.b16 %v1435
    %v3740 = vunpack.c.l.b16 %v1436
    %v3741 = vunpack.c.l.b16 %v1437
    %v3742 = vunpack.c.l.b16 %v1438
    %v3743 = vunpack.c.l.b16 %v1439
    %v3744 = vunpack.c.l.b16 %v1440
    %v3745 = vunpack.c.l.b16 %v1441
    %v3746 = vunpack.c.l.b16 %v1442
    %v3747 = vunpack.c.l.b16 %v1443
    %v3748 = vunpack.c.l.b16 %v1444
    %v3749 = vunpack.c.l.b16 %v1445
    %v3750 = vunpack.c.l.b16 %v1446
    %v3751 = vunpack.c.l.b16 %v1447
    %v3752 = vunpack.c.l.b16 %v1448
    %v3753 = vunpack.c.l.b16 %v1449
    %v3754 = vunpack.c.l.b16 %v1450
    %v3755 = vunpack.c.l.b16 %v1451
    %v3756 = vunpack.c.l.b16 %v1452
    %v3757 = vunpack.c.l.b16 %v1453
    %v3758 = vunpack.c.l.b16 %v1454
    %v3759 = vunpack.c.l.b16 %v1455
    %v3760 = vunpack.c.l.b16 %v1456
    %v3761 = vunpack.c.l.b16 %v1457
    %v3762 = vunpack.c.l.b16 %v1458
    %v3763 = vunpack.c.l.b16 %v1459
    %v3764 = vunpack.c.l.b16 %v1460
    %v3765 = vunpack.c.l.b16 %v1461
    %v3766 = vunpack.c.l.b16 %v1462
    %v3767 = vunpack.c.l.b16 %v1463
    %v3768 = vunpack.c.l.b16 %v1464
    %v3769 = vunpack.c.l.b16 %v1465
    %v3770 = vunpack.c.l.b16 %v1466
    %v3771 = vunpack.c.l.b16 %v1467
    %v3772 = vunpack.c.l.b16 %v1468
    %v3773 = vunpack.c.l.b16 %v1469
    %v3774 = vunpack.c.l.b16 %v1470
    %v3775 = vunpack.c.l.b16 %v1471
    %v3776 = vunpack.c.l.b16 %v1472
    %v3777 = vunpack.c.l.b16 %v1473
    %v3778 = vunpack.c.l.b16 %v1474
    %v3779 = vunpack.c.l.b16 %v1475
    %v3780 = vunpack.c.l.b16 %v1476
    %v3781 = vunpack.c.l.b16 %v1477
    %v3782 = vunpack.c.l.b16 %v1478
    %v3783 = vunpack.c.l.b16 %v1479
    %v3784 = vunpack.c.l.b16 %v1480
    %v3785 = vunpack.c.l.b16 %v1481
    %v3786 = vunpack.c.l.b16 %v1482
    %v3787 = vunpack.c.l.b16 %v1483
    %v3788 = vunpack.c.l.b16 %v1484
    %v3789 = vunpack.c.l.b16 %v1485
    %v3790 = vunpack.c.l.b16 %v1486
    %v3791 = vunpack.c.l.b16 %v1487
    %v3792 = vunpack.c.l.b16 %v1488
    %v3793 = vunpack.c.l.b16 %v1489
    %v3794 = vunpack.c.l.b16 %v1490
    %v3795 = vunpack.c.l.b16 %v1491
    %v3796 = vunpack.c.l.b16 %v1492
    %v3797 = vunpack.c.l.b16 %v1493
    %v3798 = vunpack.c.l.b16 %v1494
    %v3799 = vunpack.c.l.b16 %v1495
    %v3800 = vunpack.c.l.b16 %v1496
    %v3801 = vunpack.c.l.b16 %v1497
    %v3802 = vunpack.c.l.b16 %v1498
    %v3803 = vunpack.c.l.b16 %v1499
    %v3804 = vunpack.c.l.b16 %v1500
    %v3805 = vunpack.c.l.b16 %v1501
    %v3806 = vunpack.c.l.b16 %v1502
    %v3807 = vunpack.c.l.b16 %v1503
    %v3808 = vunpack.c.l.b16 %v1504
    %v3809 = vunpack.c.l.b16 %v1505
    %v3810 = vunpack.c.l.b16 %v1506
    %v3811 = vunpack.c.l.b16 %v1507
    %v3812 = vunpack.c.l.b16 %v1508
    %v3813 = vunpack.c.l.b16 %v1509
    %v3814 = vunpack.c.l.b16 %v1510
    %v3815 = vunpack.c.l.b16 %v1511
    %v3816 = vunpack.c.l.b16 %v1512
    %v3817 = vunpack.c.l.b16 %v1513
    %v3818 = vunpack.c.l.b16 %v1514
    %v3819 = vunpack.c.l.b16 %v1515
    %v3820 = vunpack.c.l.b16 %v1516
    %v3821 = vunpack.c.l.b16 %v1517
    %v3822 = vunpack.c.l.b16 %v1518
    %v3823 = vunpack.c.l.b16 %v1519
    %v3824 = vunpack.c.l.b16 %v1520
    %v3825 = vunpack.c.l.b16 %v1521
    %v3826 = vunpack.c.l.b16 %v1522
    %v3827 = vunpack.c.l.b16 %v1523
    %v3828 = vunpack.c.l.b16 %v1524
    %v3829 = vunpack.c.l.b16 %v1525
    %v3830 = vunpack.c.l.b16 %v1526
    %v3831 = vunpack.c.l.b16 %v1527
    %v3832 = vunpack.c.l.b16 %v1528
    %v3833 = vunpack.c.l.b16 %v1529
    %v3834 = vunpack.c.l.b16 %v1530
    %v3835 = vunpack.c.l.b16 %v1531
    %v3836 = vunpack.c.l.b16 %v1532
    %v3837 = vunpack.c.l.b16 %v1533
    %v3838 = vunpack.c.l.b16 %v1534
    %v3839 = vunpack.c.l.b16 %v1535
    %v3840 = vunpack.c.l.b16 %v1536
    %v3841 = vunpack.c.l.b16 %v1537
    %v3842 = vunpack.c.l.b16 %v1538
    %v3843 = vunpack.c.l.b16 %v1539
    %v3844 = vunpack.c.l.b16 %v1540
    %v3845 = vunpack.c.l.b16 %v1541
    %v3846 = vunpack.c.l.b16 %v1542
    %v3847 = vunpack.c.l.b16 %v1543
    %v3848 = vunpack.c.l.b16 %v1544
    %v3849 = vunpack.c.l.b16 %v1545
    %v3850 = vunpack.c.l.b16 %v1546
    %v3851 = vunpack.c.l.b16 %v1547
    %v3852 = vunpack.c.l.b16 %v1548
    %v3853 = vunpack.c.l.b16 %v1549
    %v3854 = vunpack.c.l.b16 %v1550
    %v3855 = vunpack.c.l.b16 %v1551
    %v3856 = vunpack.c.l.b16 %v1552
    %v3857 = vunpack.c.l.b16 %v1553
    %v3858 = vunpack.c.l.b16 %v1554
    %v3859 = vunpack.c.l.b16 %v1555
    %v3860 = vunpack.c.l.b16 %v1556
    %v3861 = vunpack.c.l.b16 %v1557
    %v3862 = vunpack.c.l.b16 %v1558
    %v3863 = vunpack.c.l.b16 %v1559
    %v3864 = vunpack.c.l.b16 %v1560
    %v3865 = vunpack.c.l.b16 %v1561
    %v3866 = vunpack.c.l.b16 %v1562
    %v3867 = vunpack.c.l.b16 %v1563
    %v3868 = vunpack.c.l.b16 %v1564
    %v3869 = vunpack.c.l.b16 %v1565
    %v3870 = vunpack.c.l.b16 %v1566
    %v3871 = vunpack.c.l.b16 %v1567
    %v3872 = vunpack.c.l.b16 %v1568
    %v3873 = vunpack.c.l.b16 %v1569
    %v3874 = vunpack.c.l.b16 %v1570
    %v3875 = vunpack.c.l.b16 %v1571
    %v3876 = vunpack.c.l.b16 %v1572
    %v3877 = vunpack.c.l.b16 %v1573
    %v3878 = vunpack.c.l.b16 %v1574
    %v3879 = vunpack.c.l.b16 %v1575
    %v3880 = vunpack.c.l.b16 %v1576
    %v3881 = vunpack.c.l.b16 %v1577
    %v3882 = vunpack.c.l.b16 %v1578
    %v3883 = vunpack.c.l.b16 %v1579
    %v3884 = vunpack.c.l.b16 %v1580
    %v3885 = vunpack.c.l.b16 %v1581
    %v3886 = vunpack.c.l.b16 %v1582
    %v3887 = vunpack.c.l.b16 %v1583
    %v3888 = vunpack.c.l.b16 %v1584
    %v3889 = vunpack.c.l.b16 %v1585
    %v3890 = vunpack.c.l.b16 %v1586
    %v3891 = vunpack.c.l.b16 %v1587
    %v3892 = vunpack.c.l.b16 %v1588
    %v3893 = vunpack.c.l.b16 %v1589
    %v3894 = vunpack.c.l.b16 %v1590
    %v3895 = vunpack.c.l.b16 %v1591
    %v3896 = vunpack.c.l.b16 %v1592
    %v3897 = vunpack.c.l.b16 %v1593
    %v3898 = vunpack.c.l.b16 %v1594
    %v3899 = vunpack.c.l.b16 %v1595
    %v3900 = vunpack.c.l.b16 %v1596
    %v3901 = vunpack.c.l.b16 %v1597
    %v3902 = vunpack.c.l.b16 %v1598
    %v3903 = vunpack.c.l.b16 %v1599
    %v3904 = vunpack.c.l.b16 %v1600
    %v3905 = vunpack.c.l.b16 %v1601
    %v3906 = vunpack.c.l.b16 %v1602
    %v3907 = vunpack.c.l.b16 %v1603
    %v3908 = vunpack.c.l.b16 %v1604
    %v3909 = vunpack.c.l.b16 %v1605
    %v3910 = vunpack.c.l.b16 %v1606
    %v3911 = vunpack.c.l.b16 %v1607
    %v3912 = vunpack.c.l.b16 %v1608
    %v3913 = vunpack.c.l.b16 %v1609
    %v3914 = vunpack.c.l.b16 %v1610
    %v3915 = vunpack.c.l.b16 %v1611
    %v3916 = vunpack.c.l.b16 %v1612
    %v3917 = vunpack.c.l.b16 %v1613
    %v3918 = vunpack.c.l.b16 %v1614
    %v3919 = vunpack.c.l.b16 %v1615
    %v3920 = vunpack.c.l.b16 %v1616
    %v3921 = vunpack.c.l.b16 %v1617
    %v3922 = vunpack.c.l.b16 %v1618
    %v3923 = vunpack.c.l.b16 %v1619
    %v3924 = vunpack.c.l.b16 %v1620
    %v3925 = vunpack.c.l.b16 %v1621
    %v3926 = vunpack.c.l.b16 %v1622
    %v3927 = vunpack.c.l.b16 %v1623
    %v3928 = vunpack.c.l.b16 %v1624
    %v3929 = vunpack.c.l.b16 %v1625
    %v3930 = vunpack.c.l.b16 %v1626
    %v3931 = vunpack.c.l.b16 %v1627
    %v3932 = vunpack.c.l.b16 %v1628
    %v3933 = vunpack.c.l.b16 %v1629
    %v3934 = vunpack.c.l.b16 %v1630
    %v3935 = vunpack.c.l.b16 %v1631
    %v3936 = vunpack.c.l.b16 %v1632
    %v3937 = vunpack.c.l.b16 %v1633
    %v3938 = vunpack.c.l.b16 %v1634
    %v3939 = vunpack.c.l.b16 %v1635
    %v3940 = vunpack.c.l.b16 %v1636
    %v3941 = vunpack.c.l.b16 %v1637
    %v3942 = vunpack.c.l.b16 %v1638
    %v3943 = vunpack.c.l.b16 %v1639
    %v3944 = vunpack.c.l.b16 %v1640
    %v3945 = vunpack.c.l.b16 %v1641
    %v3946 = vunpack.c.l.b16 %v1642
    %v3947 = vunpack.c.l.b16 %v1643
    %v3948 = vunpack.c.l.b16 %v1644
    %v3949 = vunpack.c.l.b16 %v1645
    %v3950 = vunpack.c.l.b16 %v1646
    %v3951 = vunpack.c.l.b16 %v1647
    %v3952 = vunpack.c.l.b16 %v1648
    %v3953 = vunpack.c.l.b16 %v1649
    %v3954 = vunpack.c.l.b16 %v1650
    %v3955 = vunpack.c.l.b16 %v1651
    %v3956 = vunpack.c.l.b16 %v1652
    %v3957 = vunpack.c.l.b16 %v1653
    %v3958 = vunpack.c.l.b16 %v1654
    %v3959 = vunpack.c.l.b16 %v1655
    %v3960 = vunpack.c.l.b16 %v1656
    %v3961 = vunpack.c.l.b16 %v1657
    %v3962 = vunpack.c.l.b16 %v1658
    %v3963 = vunpack.c.l.b16 %v1659
    %v3964 = vunpack.c.l.b16 %v1660
    %v3965 = vunpack.c.l.b16 %v1661
    %v3966 = vunpack.c.l.b16 %v1662
    %v3967 = vunpack.c.l.b16 %v1663
    %v3968 = vunpack.c.l.b16 %v1664
    %v3969 = vunpack.c.l.b16 %v1665
    %v3970 = vunpack.c.l.b16 %v1666
    %v3971 = vunpack.c.l.b16 %v1667
    %v3972 = vunpack.c.l.b16 %v1668
    %v3973 = vunpack.c.l.b16 %v1669
    %v3974 = vunpack.c.l.b16 %v1670
    %v3975 = vunpack.c.l.b16 %v1671
    %v3976 = vunpack.c.l.b16 %v1672
    %v3977 = vunpack.c.l.b16 %v1673
    %v3978 = vunpack.c.l.b16 %v1674
    %v3979 = vunpack.c.l.b16 %v1675
    %v3980 = vunpack.c.l.b16 %v1676
    %v3981 = vunpack.c.l.b16 %v1677
    %v3982 = vunpack.c.l.b16 %v1678
    %v3983 = vunpack.c.l.b16 %v1679
    %v3984 = vunpack.c.l.b16 %v1680
    %v3985 = vunpack.c.l.b16 %v1681
    %v3986 = vunpack.c.l.b16 %v1682
    %v3987 = vunpack.c.l.b16 %v1683
    %v3988 = vunpack.c.l.b16 %v1684
    %v3989 = vunpack.c.l.b16 %v1685
    %v3990 = vunpack.c.l.b16 %v1686
    %v3991 = vunpack.c.l.b16 %v1687
    %v3992 = vunpack.c.l.b16 %v1688
    %v3993 = vunpack.c.l.b16 %v1689
    %v3994 = vunpack.c.l.b16 %v1690
    %v3995 = vunpack.c.l.b16 %v1691
    %v3996 = vunpack.c.l.b16 %v1692
    %v3997 = vunpack.c.l.b16 %v1693
    %v3998 = vunpack.c.l.b16 %v1694
    %v3999 = vunpack.c.l.b16 %v1695
    %v4000 = vunpack.c.l.b16 %v1696
    %v4001 = vunpack.c.l.b16 %v1697
    %v4002 = vunpack.c.l.b16 %v1698
    %v4003 = vunpack.c.l.b16 %v1699
    %v4004 = vunpack.c.l.b16 %v1700
    %v4005 = vunpack.c.l.b16 %v1701
    %v4006 = vunpack.c.l.b16 %v1702
    %v4007 = vunpack.c.l.b16 %v1703
    %v4008 = vunpack.c.l.b16 %v1704
    %v4009 = vunpack.c.l.b16 %v1705
    %v4010 = vunpack.c.l.b16 %v1706
    %v4011 = vunpack.c.l.b16 %v1707
    %v4012 = vunpack.c.l.b16 %v1708
    %v4013 = vunpack.c.l.b16 %v1709
    %v4014 = vunpack.c.l.b16 %v1710
    %v4015 = vunpack.c.l.b16 %v1711
    %v4016 = vunpack.c.l.b16 %v1712
    %v4017 = vunpack.c.l.b16 %v1713
    %v4018 = vunpack.c.l.b16 %v1714
    %v4019 = vunpack.c.l.b16 %v1715
    %v4020 = vunpack.c.l.b16 %v1716
    %v4021 = vunpack.c.l.b16 %v1717
    %v4022 = vunpack.c.l.b16 %v1718
    %v4023 = vunpack.c.l.b16 %v1719
    %v4024 = vunpack.c.l.b16 %v1720
    %v4025 = vunpack.c.l.b16 %v1721
    %v4026 = vunpack.c.l.b16 %v1722
    %v4027 = vunpack.c.l.b16 %v1723
    %v4028 = vunpack.c.l.b16 %v1724
    %v4029 = vunpack.c.l.b16 %v1725
    %v4030 = vunpack.c.l.b16 %v1726
    %v4031 = vunpack.c.l.b16 %v1727
    %v4032 = vunpack.c.l.b16 %v1728
    %v4033 = vunpack.c.l.b16 %v1729
    %v4034 = vunpack.c.l.b16 %v1730
    %v4035 = vunpack.c.l.b16 %v1731
    %v4036 = vunpack.c.l.b16 %v1732
    %v4037 = vunpack.c.l.b16 %v1733
    %v4038 = vunpack.c.l.b16 %v1734
    %v4039 = vunpack.c.l.b16 %v1735
    %v4040 = vunpack.c.l.b16 %v1736
    %v4041 = vunpack.c.l.b16 %v1737
    %v4042 = vunpack.c.l.b16 %v1738
    %v4043 = vunpack.c.l.b16 %v1739
    %v4044 = vunpack.c.l.b16 %v1740
    %v4045 = vunpack.c.l.b16 %v1741
    %v4046 = vunpack.c.l.b16 %v1742
    %v4047 = vunpack.c.l.b16 %v1743
    %v4048 = vunpack.c.l.b16 %v1744
    %v4049 = vunpack.c.l.b16 %v1745
    %v4050 = vunpack.c.l.b16 %v1746
    %v4051 = vunpack.c.l.b16 %v1747
    %v4052 = vunpack.c.l.b16 %v1748
    %v4053 = vunpack.c.l.b16 %v1749
    %v4054 = vunpack.c.l.b16 %v1750
    %v4055 = vunpack.c.l.b16 %v1751
    %v4056 = vunpack.c.l.b16 %v1752
    %v4057 = vunpack.c.l.b16 %v1753
    %v4058 = vunpack.c.l.b16 %v1754
    %v4059 = vunpack.c.l.b16 %v1755
    %v4060 = vunpack.c.l.b16 %v1756
    %v4061 = vunpack.c.l.b16 %v1757
    %v4062 = vunpack.c.l.b16 %v1758
    %v4063 = vunpack.c.l.b16 %v1759
    %v4064 = vunpack.c.l.b16 %v1760
    %v4065 = vunpack.c.l.b16 %v1761
    %v4066 = vunpack.c.l.b16 %v1762
    %v4067 = vunpack.c.l.b16 %v1763
    %v4068 = vunpack.c.l.b16 %v1764
    %v4069 = vunpack.c.l.b16 %v1765
    %v4070 = vunpack.c.l.b16 %v1766
    %v4071 = vunpack.c.l.b16 %v1767
    %v4072 = vunpack.c.l.b16 %v1768
    %v4073 = vunpack.c.l.b16 %v1769
    %v4074 = vunpack.c.l.b16 %v1770
    %v4075 = vunpack.c.l.b16 %v1771
    %v4076 = vunpack.c.l.b16 %v1772
    %v4077 = vunpack.c.l.b16 %v1773
    %v4078 = vunpack.c.l.b16 %v1774
    %v4079 = vunpack.c.l.b16 %v1775
    %v4080 = vunpack.c.l.b16 %v1776
    %v4081 = vunpack.c.l.b16 %v1777
    %v4082 = vunpack.c.l.b16 %v1778
    %v4083 = vunpack.c.l.b16 %v1779
    %v4084 = vunpack.c.l.b16 %v1780
    %v4085 = vunpack.c.l.b16 %v1781
    %v4086 = vunpack.c.l.b16 %v1782
    %v4087 = vunpack.c.l.b16 %v1783
    %v4088 = vunpack.c.l.b16 %v1784
    %v4089 = vunpack.c.l.b16 %v1785
    %v4090 = vunpack.c.l.b16 %v1786
    %v4091 = vunpack.c.l.b16 %v1787
    %v4092 = vunpack.c.l.b16 %v1788
    %v4093 = vunpack.c.l.b16 %v1789
    %v4094 = vunpack.c.l.b16 %v1790
    %v4095 = vunpack.c.l.b16 %v1791
    %v4096 = vunpack.c.l.b16 %v1792
    %v4097 = vunpack.c.l.b16 %v1793
    %v4098 = vunpack.c.l.b16 %v1794
    %v4099 = vunpack.c.l.b16 %v1795
    %v4100 = vunpack.c.l.b16 %v1796
    %v4101 = vunpack.c.l.b16 %v1797
    %v4102 = vunpack.c.l.b16 %v1798
    %v4103 = vunpack.c.l.b16 %v1799
    %v4104 = vunpack.c.l.b16 %v1800
    %v4105 = vunpack.c.l.b16 %v1801
    %v4106 = vunpack.c.l.b16 %v1802
    %v4107 = vunpack.c.l.b16 %v1803
    %v4108 = vunpack.c.l.b16 %v1804
    %v4109 = vunpack.c.l.b16 %v1805
    %v4110 = vunpack.c.l.b16 %v1806
    %v4111 = vunpack.c.l.b16 %v1807
    %v4112 = vunpack.c.l.b16 %v1808
    %v4113 = vunpack.c.l.b16 %v1809
    %v4114 = vunpack.c.l.b16 %v1810
    %v4115 = vunpack.c.l.b16 %v1811
    %v4116 = vunpack.c.l.b16 %v1812
    %v4117 = vunpack.c.l.b16 %v1813
    %v4118 = vunpack.c.l.b16 %v1814
    %v4119 = vunpack.c.l.b16 %v1815
    %v4120 = vunpack.c.l.b16 %v1816
    %v4121 = vunpack.c.l.b16 %v1817
    %v4122 = vunpack.c.l.b16 %v1818
    %v4123 = vunpack.c.l.b16 %v1819
    %v4124 = vunpack.c.l.b16 %v1820
    %v4125 = vunpack.c.l.b16 %v1821
    %v4126 = vunpack.c.l.b16 %v1822
    %v4127 = vunpack.c.l.b16 %v1823
    %v4128 = vunpack.c.l.b16 %v1824
    %v4129 = vunpack.c.l.b16 %v1825
    %v4130 = vunpack.c.l.b16 %v1826
    %v4131 = vunpack.c.l.b16 %v1827
    %v4132 = vunpack.c.l.b16 %v1828
    %v4133 = vunpack.c.l.b16 %v1829
    %v4134 = vunpack.c.l.b16 %v1830
    %v4135 = vunpack.c.l.b16 %v1831
    %v4136 = vunpack.c.l.b16 %v1832
    %v4137 = vunpack.c.l.b16 %v1833
    %v4138 = vunpack.c.l.b16 %v1834
    %v4139 = vunpack.c.l.b16 %v1835
    %v4140 = vunpack.c.l.b16 %v1836
    %v4141 = vunpack.c.l.b16 %v1837
    %v4142 = vunpack.c.l.b16 %v1838
    %v4143 = vunpack.c.l.b16 %v1839
    %v4144 = vunpack.c.l.b16 %v1840
    %v4145 = vunpack.c.l.b16 %v1841
    %v4146 = vunpack.c.l.b16 %v1842
    %v4147 = vunpack.c.l.b16 %v1843
    %v4148 = vunpack.c.l.b16 %v1844
    %v4149 = vunpack.c.l.b16 %v1845
    %v4150 = vunpack.c.l.b16 %v1846
    %v4151 = vunpack.c.l.b16 %v1847
    %v4152 = vunpack.c.l.b16 %v1848
    %v4153 = vunpack.c.l.b16 %v1849
    %v4154 = vunpack.c.l.b16 %v1850
    %v4155 = vunpack.c.l.b16 %v1851
    %v4156 = vunpack.c.l.b16 %v1852
    %v4157 = vunpack.c.l.b16 %v1853
    %v4158 = vunpack.c.l.b16 %v1854
    %v4159 = vunpack.c.l.b16 %v1855
    %v4160 = vunpack.c.l.b16 %v1856
    %v4161 = vunpack.c.l.b16 %v1857
    %v4162 = vunpack.c.l.b16 %v1858
    %v4163 = vunpack.c.l.b16 %v1859
    %v4164 = vunpack.c.l.b16 %v1860
    %v4165 = vunpack.c.l.b16 %v1861
    %v4166 = vunpack.c.l.b16 %v1862
    %v4167 = vunpack.c.l.b16 %v1863
    %v4168 = vunpack.c.l.b16 %v1864
    %v4169 = vunpack.c.l.b16 %v1865
    %v4170 = vunpack.c.l.b16 %v1866
    %v4171 = vunpack.c.l.b16 %v1867
    %v4172 = vunpack.c.l.b16 %v1868
    %v4173 = vunpack.c.l.b16 %v1869
    %v4174 = vunpack.c.l.b16 %v1870
    %v4175 = vunpack.c.l.b16 %v1871
    %v4176 = vunpack.c.l.b16 %v1872
    %v4177 = vunpack.c.l.b16 %v1873
    %v4178 = vunpack.c.l.b16 %v1874
    %v4179 = vunpack.c.l.b16 %v1875
    %v4180 = vunpack.c.l.b16 %v1876
    %v4181 = vunpack.c.l.b16 %v1877
    %v4182 = vunpack.c.l.b16 %v1878
    %v4183 = vunpack.c.l.b16 %v1879
    %v4184 = vunpack.c.l.b16 %v1880
    %v4185 = vunpack.c.l.b16 %v1881
    %v4186 = vunpack.c.l.b16 %v1882
    %v4187 = vunpack.c.l.b16 %v1883
    %v4188 = vunpack.c.l.b16 %v1884
    %v4189 = vunpack.c.l.b16 %v1885
    %v4190 = vunpack.c.l.b16 %v1886
    %v4191 = vunpack.c.l.b16 %v1887
    %v4192 = vunpack.c.l.b16 %v1888
    %v4193 = vunpack.c.l.b16 %v1889
    %v4194 = vunpack.c.l.b16 %v1890
    %v4195 = vunpack.c.l.b16 %v1891
    %v4196 = vunpack.c.l.b16 %v1892
    %v4197 = vunpack.c.l.b16 %v1893
    %v4198 = vunpack.c.l.b16 %v1894
    %v4199 = vunpack.c.l.b16 %v1895
    %v4200 = vunpack.c.l.b16 %v1896
    %v4201 = vunpack.c.l.b16 %v1897
    %v4202 = vunpack.c.l.b16 %v1898
    %v4203 = vunpack.c.l.b16 %v1899
    %v4204 = vunpack.c.l.b16 %v1900
    %v4205 = vunpack.c.l.b16 %v1901
    %v4206 = vunpack.c.l.b16 %v1902
    %v4207 = vunpack.c.l.b16 %v1903
    %v4208 = vunpack.c.l.b16 %v1904
    %v4209 = vunpack.c.l.b16 %v1905
    %v4210 = vunpack.c.l.b16 %v1906
    %v4211 = vunpack.c.l.b16 %v1907
    %v4212 = vunpack.c.l.b16 %v1908
    %v4213 = vunpack.c.l.b16 %v1909
    %v4214 = vunpack.c.l.b16 %v1910
    %v4215 = vunpack.c.l.b16 %v1911
    %v4216 = vunpack.c.l.b16 %v1912
    %v4217 = vunpack.c.l.b16 %v1913
    %v4218 = vunpack.c.l.b16 %v1914
    %v4219 = vunpack.c.l.b16 %v1915
    %v4220 = vunpack.c.l.b16 %v1916
    %v4221 = vunpack.c.l.b16 %v1917
    %v4222 = vunpack.c.l.b16 %v1918
    %v4223 = vunpack.c.l.b16 %v1919
    %v4224 = vunpack.c.l.b16 %v1920
    %v4225 = vunpack.c.l.b16 %v1921
    %v4226 = vunpack.c.l.b16 %v1922
    %v4227 = vunpack.c.l.b16 %v1923
    %v4228 = vunpack.c.l.b16 %v1924
    %v4229 = vunpack.c.l.b16 %v1925
    %v4230 = vunpack.c.l.b16 %v1926
    %v4231 = vunpack.c.l.b16 %v1927
    %v4232 = vunpack.c.l.b16 %v1928
    %v4233 = vunpack.c.l.b16 %v1929
    %v4234 = vunpack.c.l.b16 %v1930
    %v4235 = vunpack.c.l.b16 %v1931
    %v4236 = vunpack.c.l.b16 %v1932
    %v4237 = vunpack.c.l.b16 %v1933
    %v4238 = vunpack.c.l.b16 %v1934
    %v4239 = vunpack.c.l.b16 %v1935
    %v4240 = vunpack.c.l.b16 %v1936
    %v4241 = vunpack.c.l.b16 %v1937
    %v4242 = vunpack.c.l.b16 %v1938
    %v4243 = vunpack.c.l.b16 %v1939
    %v4244 = vunpack.c.l.b16 %v1940
    %v4245 = vunpack.c.l.b16 %v1941
    %v4246 = vunpack.c.l.b16 %v1942
    %v4247 = vunpack.c.l.b16 %v1943
    %v4248 = vunpack.c.l.b16 %v1944
    %v4249 = vunpack.c.l.b16 %v1945
    %v4250 = vunpack.c.l.b16 %v1946
    %v4251 = vunpack.c.l.b16 %v1947
    %v4252 = vunpack.c.l.b16 %v1948
    %v4253 = vunpack.c.l.b16 %v1949
    %v4254 = vunpack.c.l.b16 %v1950
    %v4255 = vunpack.c.l.b16 %v1951
    %v4256 = vunpack.c.l.b16 %v1952
    %v4257 = vunpack.c.l.b16 %v1953
    %v4258 = vunpack.c.l.b16 %v1954
    %v4259 = vunpack.c.l.b16 %v1955
    %v4260 = vunpack.c.l.b16 %v1956
    %v4261 = vunpack.c.l.b16 %v1957
    %v4262 = vunpack.c.l.b16 %v1958
    %v4263 = vunpack.c.l.b16 %v1959
    %v4264 = vunpack.c.l.b16 %v1960
    %v4265 = vunpack.c.l.b16 %v1961
    %v4266 = vunpack.c.l.b16 %v1962
    %v4267 = vunpack.c.l.b16 %v1963
    %v4268 = vunpack.c.l.b16 %v1964
    %v4269 = vunpack.c.l.b16 %v1965
    %v4270 = vunpack.c.l.b16 %v1966
    %v4271 = vunpack.c.l.b16 %v1967
    %v4272 = vunpack.c.l.b16 %v1968
    %v4273 = vunpack.c.l.b16 %v1969
    %v4274 = vunpack.c.l.b16 %v1970
    %v4275 = vunpack.c.l.b16 %v1971
    %v4276 = vunpack.c.l.b16 %v1972
    %v4277 = vunpack.c.l.b16 %v1973
    %v4278 = vunpack.c.l.b16 %v1974
    %v4279 = vunpack.c.l.b16 %v1975
    %v4280 = vunpack.c.l.b16 %v1976
    %v4281 = vunpack.c.l.b16 %v1977
    %v4282 = vunpack.c.l.b16 %v1978
    %v4283 = vunpack.c.l.b16 %v1979
    %v4284 = vunpack.c.l.b16 %v1980
    %v4285 = vunpack.c.l.b16 %v1981
    %v4286 = vunpack.c.l.b16 %v1982
    %v4287 = vunpack.c.l.b16 %v1983
    %v4288 = vunpack.c.l.b16 %v1984
    %v4289 = vunpack.c.l.b16 %v1985
    %v4290 = vunpack.c.l.b16 %v1986
    %v4291 = vunpack.c.l.b16 %v1987
    %v4292 = vunpack.c.l.b16 %v1988
    %v4293 = vunpack.c.l.b16 %v1989
    %v4294 = vunpack.c.l.b16 %v1990
    %v4295 = vunpack.c.l.b16 %v1991
    %v4296 = vunpack.c.l.b16 %v1992
    %v4297 = vunpack.c.l.b16 %v1993
    %v4298 = vunpack.c.l.b16 %v1994
    %v4299 = vunpack.c.l.b16 %v1995
    %v4300 = vunpack.c.l.b16 %v1996
    %v4301 = vunpack.c.l.b16 %v1997
    %v4302 = vunpack.c.l.b16 %v1998
    %v4303 = vunpack.c.l.b16 %v1999
    %v4304 = vunpack.c.l.b16 %v2000
    %v4305 = vunpack.c.l.b16 %v2001
    %v4306 = vunpack.c.l.b16 %v2002
    %v4307 = vunpack.c.l.b16 %v2003
    %v4308 = vunpack.c.l.b16 %v2004
    %v4309 = vunpack.c.l.b16 %v2005
    %v4310 = vunpack.c.l.b16 %v2006
    %v4311 = vunpack.c.l.b16 %v2007
    %v4312 = vunpack.c.l.b16 %v2008
    %v4313 = vunpack.c.l.b16 %v2009
    %v4314 = vunpack.c.l.b16 %v2010
    %v4315 = vunpack.c.l.b16 %v2011
    %v4316 = vunpack.c.l.b16 %v2012
    %v4317 = vunpack.c.l.b16 %v2013
    %v4318 = vunpack.c.l.b16 %v2014
    %v4319 = vunpack.c.l.b16 %v2015
    %v4320 = vunpack.c.l.b16 %v2016
    %v4321 = vunpack.c.l.b16 %v2017
    %v4322 = vunpack.c.l.b16 %v2018
    %v4323 = vunpack.c.l.b16 %v2019
    %v4324 = vunpack.c.l.b16 %v2020
    %v4325 = vunpack.c.l.b16 %v2021
    %v4326 = vunpack.c.l.b16 %v2022
    %v4327 = vunpack.c.l.b16 %v2023
    %v4328 = vunpack.c.l.b16 %v2024
    %v4329 = vunpack.c.l.b16 %v2025
    %v4330 = vunpack.c.l.b16 %v2026
    %v4331 = vunpack.c.l.b16 %v2027
    %v4332 = vunpack.c.l.b16 %v2028
    %v4333 = vunpack.c.l.b16 %v2029
    %v4334 = vunpack.c.l.b16 %v2030
    %v4335 = vunpack.c.l.b16 %v2031
    %v4336 = vunpack.c.l.b16 %v2032
    %v4337 = vunpack.c.l.b16 %v2033
    %v4338 = vunpack.c.l.b16 %v2034
    %v4339 = vunpack.c.l.b16 %v2035
    %v4340 = vunpack.c.l.b16 %v2036
    %v4341 = vunpack.c.l.b16 %v2037
    %v4342 = vunpack.c.l.b16 %v2038
    %v4343 = vunpack.c.l.b16 %v2039
    %v4344 = vunpack.c.l.b16 %v2040
    %v4345 = vunpack.c.l.b16 %v2041
    %v4346 = vunpack.c.l.b16 %v2042
    %v4347 = vunpack.c.l.b16 %v2043
    %v4348 = vunpack.c.l.b16 %v2044
    %v4349 = vunpack.c.l.b16 %v2045
    %v4350 = vunpack.c.l.b16 %v2046
    %v4351 = vunpack.c.l.b16 %v2047
    %v4352 = vunpack.c.l.b16 %v2048
    %v4353 = vunpack.c.l.b16 %v2049
    %v4354 = vunpack.c.l.b16 %v2050
    %v4355 = vunpack.c.l.b16 %v2051
    %v4356 = vunpack.c.l.b16 %v2052
    %v4357 = vunpack.c.l.b16 %v2053
    %v4358 = vunpack.c.l.b16 %v2054
    %v4359 = vunpack.c.l.b16 %v2055
    %v4360 = vunpack.c.l.b16 %v2056
    %v4361 = vunpack.c.l.b16 %v2057
    %v4362 = vunpack.c.l.b16 %v2058
    %v4363 = vunpack.c.l.b16 %v2059
    %v4364 = vunpack.c.l.b16 %v2060
    %v4365 = vunpack.c.l.b16 %v2061
    %v4366 = vunpack.c.l.b16 %v2062
    %v4367 = vunpack.c.l.b16 %v2063
    %v4368 = vunpack.c.l.b16 %v2064
    %v4369 = vunpack.c.l.b16 %v2065
    %v4370 = vunpack.c.l.b16 %v2066
    %v4371 = vunpack.c.l.b16 %v2067
    %v4372 = vunpack.c.l.b16 %v2068
    %v4373 = vunpack.c.l.b16 %v2069
    %v4374 = vunpack.c.l.b16 %v2070
    %v4375 = vunpack.c.l.b16 %v2071
    %v4376 = vunpack.c.l.b16 %v2072
    %v4377 = vunpack.c.l.b16 %v2073
    %v4378 = vunpack.c.l.b16 %v2074
    %v4379 = vunpack.c.l.b16 %v2075
    %v4380 = vunpack.c.l.b16 %v2076
    %v4381 = vunpack.c.l.b16 %v2077
    %v4382 = vunpack.c.l.b16 %v2078
    %v4383 = vunpack.c.l.b16 %v2079
    %v4384 = vunpack.c.l.b16 %v2080
    %v4385 = vunpack.c.l.b16 %v2081
    %v4386 = vunpack.c.l.b16 %v2082
    %v4387 = vunpack.c.l.b16 %v2083
    %v4388 = vunpack.c.l.b16 %v2084
    %v4389 = vunpack.c.l.b16 %v2085
    %v4390 = vunpack.c.l.b16 %v2086
    %v4391 = vunpack.c.l.b16 %v2087
    %v4392 = vunpack.c.l.b16 %v2088
    %v4393 = vunpack.c.l.b16 %v2089
    %v4394 = vunpack.c.l.b16 %v2090
    %v4395 = vunpack.c.l.b16 %v2091
    %v4396 = vunpack.c.l.b16 %v2092
    %v4397 = vunpack.c.l.b16 %v2093
    %v4398 = vunpack.c.l.b16 %v2094
    %v4399 = vunpack.c.l.b16 %v2095
    %v4400 = vunpack.c.l.b16 %v2096
    %v4401 = vunpack.c.l.b16 %v2097
    %v4402 = vunpack.c.l.b16 %v2098
    %v4403 = vunpack.c.l.b16 %v2099
    %v4404 = vunpack.c.l.b16 %v2100
    %v4405 = vunpack.c.l.b16 %v2101
    %v4406 = vunpack.c.l.b16 %v2102
    %v4407 = vunpack.c.l.b16 %v2103
    %v4408 = vunpack.c.l.b16 %v2104
    %v4409 = vunpack.c.l.b16 %v2105
    %v4410 = vunpack.c.l.b16 %v2106
    %v4411 = vunpack.c.l.b16 %v2107
    %v4412 = vunpack.c.l.b16 %v2108
    %v4413 = vunpack.c.l.b16 %v2109
    %v4414 = vunpack.c.l.b16 %v2110
    %v4415 = vunpack.c.l.b16 %v2111
    %v4416 = vunpack.c.l.b16 %v2112
    %v4417 = vunpack.c.l.b16 %v2113
    %v4418 = vunpack.c.l.b16 %v2114
    %v4419 = vunpack.c.l.b16 %v2115
    %v4420 = vunpack.c.l.b16 %v2116
    %v4421 = vunpack.c.l.b16 %v2117
    %v4422 = vunpack.c.l.b16 %v2118
    %v4423 = vunpack.c.l.b16 %v2119
    %v4424 = vunpack.c.l.b16 %v2120
    %v4425 = vunpack.c.l.b16 %v2121
    %v4426 = vunpack.c.l.b16 %v2122
    %v4427 = vunpack.c.l.b16 %v2123
    %v4428 = vunpack.c.l.b16 %v2124
    %v4429 = vunpack.c.l.b16 %v2125
    %v4430 = vunpack.c.l.b16 %v2126
    %v4431 = vunpack.c.l.b16 %v2127
    %v4432 = vunpack.c.l.b16 %v2128
    %v4433 = vunpack.c.l.b16 %v2129
    %v4434 = vunpack.c.l.b16 %v2130
    %v4435 = vunpack.c.l.b16 %v2131
    %v4436 = vunpack.c.l.b16 %v2132
    %v4437 = vunpack.c.l.b16 %v2133
    %v4438 = vunpack.c.l.b16 %v2134
    %v4439 = vunpack.c.l.b16 %v2135
    %v4440 = vunpack.c.l.b16 %v2136
    %v4441 = vunpack.c.l.b16 %v2137
    %v4442 = vunpack.c.l.b16 %v2138
    %v4443 = vunpack.c.l.b16 %v2139
    %v4444 = vunpack.c.l.b16 %v2140
    %v4445 = vunpack.c.l.b16 %v2141
    %v4446 = vunpack.c.l.b16 %v2142
    %v4447 = vunpack.c.l.b16 %v2143
    %v4448 = vunpack.c.l.b16 %v2144
    %v4449 = vunpack.c.l.b16 %v2145
    %v4450 = vunpack.c.l.b16 %v2146
    %v4451 = vunpack.c.l.b16 %v2147
    %v4452 = vunpack.c.l.b16 %v2148
    %v4453 = vunpack.c.l.b16 %v2149
    %v4454 = vunpack.c.l.b16 %v2150
    %v4455 = vunpack.c.l.b16 %v2151
    %v4456 = vunpack.c.l.b16 %v2152
    %v4457 = vunpack.c.l.b16 %v2153
    %v4458 = vunpack.c.l.b16 %v2154
    %v4459 = vunpack.c.l.b16 %v2155
    %v4460 = vunpack.c.l.b16 %v2156
    %v4461 = vunpack.c.l.b16 %v2157
    %v4462 = vunpack.c.l.b16 %v2158
    %v4463 = vunpack.c.l.b16 %v2159
    %v4464 = vunpack.c.l.b16 %v2160
    %v4465 = vunpack.c.l.b16 %v2161
    %v4466 = vunpack.c.l.b16 %v2162
    %v4467 = vunpack.c.l.b16 %v2163
    %v4468 = vunpack.c.l.b16 %v2164
    %v4469 = vunpack.c.l.b16 %v2165
    %v4470 = vunpack.c.l.b16 %v2166
    %v4471 = vunpack.c.l.b16 %v2167
    %v4472 = vunpack.c.l.b16 %v2168
    %v4473 = vunpack.c.l.b16 %v2169
    %v4474 = vunpack.c.l.b16 %v2170
    %v4475 = vunpack.c.l.b16 %v2171
    %v4476 = vunpack.c.l.b16 %v2172
    %v4477 = vunpack.c.l.b16 %v2173
    %v4478 = vunpack.c.l.b16 %v2174
    %v4479 = vunpack.c.l.b16 %v2175
    %v4480 = vunpack.c.l.b16 %v2176
    %v4481 = vunpack.c.l.b16 %v2177
    %v4482 = vunpack.c.l.b16 %v2178
    %v4483 = vunpack.c.l.b16 %v2179
    %v4484 = vunpack.c.l.b16 %v2180
    %v4485 = vunpack.c.l.b16 %v2181
    %v4486 = vunpack.c.l.b16 %v2182
    %v4487 = vunpack.c.l.b16 %v2183
    %v4488 = vunpack.c.l.b16 %v2184
    %v4489 = vunpack.c.l.b16 %v2185
    %v4490 = vunpack.c.l.b16 %v2186
    %v4491 = vunpack.c.l.b16 %v2187
    %v4492 = vunpack.c.l.b16 %v2188
    %v4493 = vunpack.c.l.b16 %v2189
    %v4494 = vunpack.c.l.b16 %v2190
    %v4495 = vunpack.c.l.b16 %v2191
    %v4496 = vunpack.c.l.b16 %v2192
    %v4497 = vunpack.c.l.b16 %v2193
    %v4498 = vunpack.c.l.b16 %v2194
    %v4499 = vunpack.c.l.b16 %v2195
    %v4500 = vunpack.c.l.b16 %v2196
    %v4501 = vunpack.c.l.b16 %v2197
    %v4502 = vunpack.c.l.b16 %v2198
    %v4503 = vunpack.c.l.b16 %v2199
    %v4504 = vunpack.c.l.b16 %v2200
    %v4505 = vpack.c.b16 %v3354, %v3353
    %v4506 = vpack.c.b16 %v3356, %v3355
    %v4507 = vpack.c.b16 %v3358, %v3357
    %v4508 = vpack.c.b16 %v3360, %v3359
    %v4509 = vpack.c.b16 %v3362, %v3361
    %v4510 = vpack.c.b16 %v3364, %v3363
    %v4511 = vpack.c.b16 %v3366, %v3365
    %v4512 = vpack.c.b16 %v3368, %v3367
    %v4513 = vpack.c.b16 %v3370, %v3369
    %v4514 = vpack.c.b16 %v3372, %v3371
    %v4515 = vpack.c.b16 %v3374, %v3373
    %v4516 = vpack.c.b16 %v3376, %v3375
    %v4517 = vpack.c.b16 %v3378, %v3377
    %v4518 = vpack.c.b16 %v3380, %v3379
    %v4519 = vpack.c.b16 %v3382, %v3381
    %v4520 = vpack.c.b16 %v3384, %v3383
    %v4521 = vpack.c.b16 %v3386, %v3385
    %v4522 = vpack.c.b16 %v3388, %v3387
    %v4523 = vpack.c.b16 %v3390, %v3389
    %v4524 = vpack.c.b16 %v3392, %v3391
    %v4525 = vpack.c.b16 %v3394, %v3393
    %v4526 = vpack.c.b16 %v3396, %v3395
    %v4527 = vpack.c.b16 %v3398, %v3397
    %v4528 = vpack.c.b16 %v3400, %v3399
    %v4529 = vpack.c.b16 %v3402, %v3401
    %v4530 = vpack.c.b16 %v3404, %v3403
    %v4531 = vpack.c.b16 %v3406, %v3405
    %v4532 = vpack.c.b16 %v3408, %v3407
    %v4533 = vpack.c.b16 %v3410, %v3409
    %v4534 = vpack.c.b16 %v3412, %v3411
    %v4535 = vpack.c.b16 %v3414, %v3413
    %v4536 = vpack.c.b16 %v3416, %v3415
    %v4537 = vpack.c.b16 %v3418, %v3417
    %v4538 = vpack.c.b16 %v3420, %v3419
    %v4539 = vpack.c.b16 %v3422, %v3421
    %v4540 = vpack.c.b16 %v3424, %v3423
    %v4541 = vpack.c.b16 %v3426, %v3425
    %v4542 = vpack.c.b16 %v3428, %v3427
    %v4543 = vpack.c.b16 %v3430, %v3429
    %v4544 = vpack.c.b16 %v3432, %v3431
    %v4545 = vpack.c.b16 %v3434, %v3433
    %v4546 = vpack.c.b16 %v3436, %v3435
    %v4547 = vpack.c.b16 %v3438, %v3437
    %v4548 = vpack.c.b16 %v3440, %v3439
    %v4549 = vpack.c.b16 %v3442, %v3441
    %v4550 = vpack.c.b16 %v3444, %v3443
    %v4551 = vpack.c.b16 %v3446, %v3445
    %v4552 = vpack.c.b16 %v3448, %v3447
    %v4553 = vpack.c.b16 %v3450, %v3449
    %v4554 = vpack.c.b16 %v3452, %v3451
    %v4555 = vpack.c.b16 %v3454, %v3453
    %v4556 = vpack.c.b16 %v3456, %v3455
    %v4557 = vpack.c.b16 %v3458, %v3457
    %v4558 = vpack.c.b16 %v3460, %v3459
    %v4559 = vpack.c.b16 %v3462, %v3461
    %v4560 = vpack.c.b16 %v3464, %v3463
    %v4561 = vpack.c.b16 %v3466, %v3465
    %v4562 = vpack.c.b16 %v3468, %v3467
    %v4563 = vpack.c.b16 %v3470, %v3469
    %v4564 = vpack.c.b16 %v3472, %v3471
    %v4565 = vpack.c.b16 %v3474, %v3473
    %v4566 = vpack.c.b16 %v3476, %v3475
    %v4567 = vpack.c.b16 %v3478, %v3477
    %v4568 = vpack.c.b16 %v3480, %v3479
    %v4569 = vpack.c.b16 %v3482, %v3481
    %v4570 = vpack.c.b16 %v3484, %v3483
    %v4571 = vpack.c.b16 %v3486, %v3485
    %v4572 = vpack.c.b16 %v3488, %v3487
    %v4573 = vpack.c.b16 %v3490, %v3489
    %v4574 = vpack.c.b16 %v3492, %v3491
    %v4575 = vpack.c.b16 %v3494, %v3493
    %v4576 = vpack.c.b16 %v3496, %v3495
    %v4577 = vpack.c.b16 %v3498, %v3497
    %v4578 = vpack.c.b16 %v3500, %v3499
    %v4579 = vpack.c.b16 %v3502, %v3501
    %v4580 = vpack.c.b16 %v3504, %v3503
    %v4581 = vpack.c.b16 %v3506, %v3505
    %v4582 = vpack.c.b16 %v3508, %v3507
    %v4583 = vpack.c.b16 %v3510, %v3509
    %v4584 = vpack.c.b16 %v3512, %v3511
    %v4585 = vpack.c.b16 %v3514, %v3513
    %v4586 = vpack.c.b16 %v3516, %v3515
    %v4587 = vpack.c.b16 %v3518, %v3517
    %v4588 = vpack.c.b16 %v3520, %v3519
    %v4589 = vpack.c.b16 %v3522, %v3521
    %v4590 = vpack.c.b16 %v3524, %v3523
    %v4591 = vpack.c.b16 %v3526, %v3525
    %v4592 = vpack.c.b16 %v3528, %v3527
    %v4593 = vpack.c.b16 %v3530, %v3529
    %v4594 = vpack.c.b16 %v3532, %v3531
    %v4595 = vpack.c.b16 %v3534, %v3533
    %v4596 = vpack.c.b16 %v3536, %v3535
    %v4597 = vpack.c.b16 %v3538, %v3537
    %v4598 = vpack.c.b16 %v3540, %v3539
    %v4599 = vpack.c.b16 %v3542, %v3541
    %v4600 = vpack.c.b16 %v3544, %v3543
    %v4601 = vpack.c.b16 %v3546, %v3545
    %v4602 = vpack.c.b16 %v3548, %v3547
    %v4603 = vpack.c.b16 %v3550, %v3549
    %v4604 = vpack.c.b16 %v3552, %v3551
    %v4605 = vpack.c.b16 %v3554, %v3553
    %v4606 = vpack.c.b16 %v3556, %v3555
    %v4607 = vpack.c.b16 %v3558, %v3557
    %v4608 = vpack.c.b16 %v3560, %v3559
    %v4609 = vpack.c.b16 %v3562, %v3561
    %v4610 = vpack.c.b16 %v3564, %v3563
    %v4611 = vpack.c.b16 %v3566, %v3565
    %v4612 = vpack.c.b16 %v3568, %v3567
    %v4613 = vpack.c.b16 %v3570, %v3569
    %v4614 = vpack.c.b16 %v3572, %v3571
    %v4615 = vpack.c.b16 %v3574, %v3573
    %v4616 = vpack.c.b16 %v3576, %v3575
    %v4617 = vpack.c.b16 %v3578, %v3577
    %v4618 = vpack.c.b16 %v3580, %v3579
    %v4619 = vpack.c.b16 %v3582, %v3581
    %v4620 = vpack.c.b16 %v3584, %v3583
    %v4621 = vpack.c.b16 %v3586, %v3585
    %v4622 = vpack.c.b16 %v3588, %v3587
    %v4623 = vpack.c.b16 %v3590, %v3589
    %v4624 = vpack.c.b16 %v3592, %v3591
    %v4625 = vpack.c.b16 %v3594, %v3593
    %v4626 = vpack.c.b16 %v3596, %v3595
    %v4627 = vpack.c.b16 %v3598, %v3597
    %v4628 = vpack.c.b16 %v3600, %v3599
    %v4629 = vpack.c.b16 %v3602, %v3601
    %v4630 = vpack.c.b16 %v3604, %v3603
    %v4631 = vpack.c.b16 %v3606, %v3605
    %v4632 = vpack.c.b16 %v3608, %v3607
    %v4633 = vpack.c.b16 %v3610, %v3609
    %v4634 = vpack.c.b16 %v3612, %v3611
    %v4635 = vpack.c.b16 %v3614, %v3613
    %v4636 = vpack.c.b16 %v3616, %v3615
    %v4637 = vpack.c.b16 %v3618, %v3617
    %v4638 = vpack.c.b16 %v3620, %v3619
    %v4639 = vpack.c.b16 %v3622, %v3621
    %v4640 = vpack.c.b16 %v3624, %v3623
    %v4641 = vpack.c.b16 %v3626, %v3625
    %v4642 = vpack.c.b16 %v3628, %v3627
    %v4643 = vpack.c.b16 %v3630, %v3629
    %v4644 = vpack.c.b16 %v3632, %v3631
    %v4645 = vpack.c.b16 %v3634, %v3633
    %v4646 = vpack.c.b16 %v3636, %v3635
    %v4647 = vpack.c.b16 %v3638, %v3637
    %v4648 = vpack.c.b16 %v3640, %v3639
    %v4649 = vpack.c.b16 %v3642, %v3641
    %v4650 = vpack.c.b16 %v3644, %v3643
    %v4651 = vpack.c.b16 %v3646, %v3645
    %v4652 = vpack.c.b16 %v3648, %v3647
    %v4653 = vpack.c.b16 %v3650, %v3649
    %v4654 = vpack.c.b16 %v3652, %v3651
    %v4655 = vpack.c.b16 %v3654, %v3653
    %v4656 = vpack.c.b16 %v3656, %v3655
    %v4657 = vpack.c.b16 %v3658, %v3657
    %v4658 = vpack.c.b16 %v3660, %v3659
    %v4659 = vpack.c.b16 %v3662, %v3661
    %v4660 = vpack.c.b16 %v3664, %v3663
    %v4661 = vpack.c.b16 %v3666, %v3665
    %v4662 = vpack.c.b16 %v3668, %v3667
    %v4663 = vpack.c.b16 %v3670, %v3669
    %v4664 = vpack.c.b16 %v3672, %v3671
    %v4665 = vpack.c.b16 %v3674, %v3673
    %v4666 = vpack.c.b16 %v3676, %v3675
    %v4667 = vpack.c.b16 %v3678, %v3677
    %v4668 = vpack.c.b16 %v3680, %v3679
    %v4669 = vpack.c.b16 %v3682, %v3681
    %v4670 = vpack.c.b16 %v3684, %v3683
    %v4671 = vpack.c.b16 %v3686, %v3685
    %v4672 = vpack.c.b16 %v3688, %v3687
    %v4673 = vpack.c.b16 %v3690, %v3689
    %v4674 = vpack.c.b16 %v3692, %v3691
    %v4675 = vpack.c.b16 %v3694, %v3693
    %v4676 = vpack.c.b16 %v3696, %v3695
    %v4677 = vpack.c.b16 %v3698, %v3697
    %v4678 = vpack.c.b16 %v3700, %v3699
    %v4679 = vpack.c.b16 %v3702, %v3701
    %v4680 = vpack.c.b16 %v3704, %v3703
    %v4681 = vpack.c.b16 %v3706, %v3705
    %v4682 = vpack.c.b16 %v3708, %v3707
    %v4683 = vpack.c.b16 %v3710, %v3709
    %v4684 = vpack.c.b16 %v3712, %v3711
    %v4685 = vpack.c.b16 %v3714, %v3713
    %v4686 = vpack.c.b16 %v3716, %v3715
    %v4687 = vpack.c.b16 %v3718, %v3717
    %v4688 = vpack.c.b16 %v3720, %v3719
    %v4689 = vpack.c.b16 %v3722, %v3721
    %v4690 = vpack.c.b16 %v3724, %v3723
    %v4691 = vpack.c.b16 %v3726, %v3725
    %v4692 = vpack.c.b16 %v3728, %v3727
    %v4693 = vpack.c.b16 %v3730, %v3729
    %v4694 = vpack.c.b16 %v3732, %v3731
    %v4695 = vpack.c.b16 %v3734, %v3733
    %v4696 = vpack.c.b16 %v3736, %v3735
    %v4697 = vpack.c.b16 %v3738, %v3737
    %v4698 = vpack.c.b16 %v3740, %v3739
    %v4699 = vpack.c.b16 %v3742, %v3741
    %v4700 = vpack.c.b16 %v3744, %v3743
    %v4701 = vpack.c.b16 %v3746, %v3745
    %v4702 = vpack.c.b16 %v3748, %v3747
    %v4703 = vpack.c.b16 %v3750, %v3749
    %v4704 = vpack.c.b16 %v3752, %v3751
    %v4705 = vpack.c.b16 %v3754, %v3753
    %v4706 = vpack.c.b16 %v3756, %v3755
    %v4707 = vpack.c.b16 %v3758, %v3757
    %v4708 = vpack.c.b16 %v3760, %v3759
    %v4709 = vpack.c.b16 %v3762, %v3761
    %v4710 = vpack.c.b16 %v3764, %v3763
    %v4711 = vpack.c.b16 %v3766, %v3765
    %v4712 = vpack.c.b16 %v3768, %v3767
    %v4713 = vpack.c.b16 %v3770, %v3769
    %v4714 = vpack.c.b16 %v3772, %v3771
    %v4715 = vpack.c.b16 %v3774, %v3773
    %v4716 = vpack.c.b16 %v3776, %v3775
    %v4717 = vpack.c.b16 %v3778, %v3777
    %v4718 = vpack.c.b16 %v3780, %v3779
    %v4719 = vpack.c.b16 %v3782, %v3781
    %v4720 = vpack.c.b16 %v3784, %v3783
    %v4721 = vpack.c.b16 %v3786, %v3785
    %v4722 = vpack.c.b16 %v3788, %v3787
    %v4723 = vpack.c.b16 %v3790, %v3789
    %v4724 = vpack.c.b16 %v3792, %v3791
    %v4725 = vpack.c.b16 %v3794, %v3793
    %v4726 = vpack.c.b16 %v3796, %v3795
    %v4727 = vpack.c.b16 %v3798, %v3797
    %v4728 = vpack.c.b16 %v3800, %v3799
    %v4729 = vpack.c.b16 %v3802, %v3801
    %v4730 = vpack.c.b16 %v3804, %v3803
    %v4731 = vpack.c.b16 %v3806, %v3805
    %v4732 = vpack.c.b16 %v3808, %v3807
    %v4733 = vpack.c.b16 %v3810, %v3809
    %v4734 = vpack.c.b16 %v3812, %v3811
    %v4735 = vpack.c.b16 %v3814, %v3813
    %v4736 = vpack.c.b16 %v3816, %v3815
    %v4737 = vpack.c.b16 %v3818, %v3817
    %v4738 = vpack.c.b16 %v3820, %v3819
    %v4739 = vpack.c.b16 %v3822, %v3821
    %v4740 = vpack.c.b16 %v3824, %v3823
    %v4741 = vpack.c.b16 %v3826, %v3825
    %v4742 = vpack.c.b16 %v3828, %v3827
    %v4743 = vpack.c.b16 %v3830, %v3829
    %v4744 = vpack.c.b16 %v3832, %v3831
    %v4745 = vpack.c.b16 %v3834, %v3833
    %v4746 = vpack.c.b16 %v3836, %v3835
    %v4747 = vpack.c.b16 %v3838, %v3837
    %v4748 = vpack.c.b16 %v3840, %v3839
    %v4749 = vpack.c.b16 %v3842, %v3841
    %v4750 = vpack.c.b16 %v3844, %v3843
    %v4751 = vpack.c.b16 %v3846, %v3845
    %v4752 = vpack.c.b16 %v3848, %v3847
    %v4753 = vpack.c.b16 %v3850, %v3849
    %v4754 = vpack.c.b16 %v3852, %v3851
    %v4755 = vpack.c.b16 %v3854, %v3853
    %v4756 = vpack.c.b16 %v3856, %v3855
    %v4757 = vpack.c.b16 %v3858, %v3857
    %v4758 = vpack.c.b16 %v3860, %v3859
    %v4759 = vpack.c.b16 %v3862, %v3861
    %v4760 = vpack.c.b16 %v3864, %v3863
    %v4761 = vpack.c.b16 %v3866, %v3865
    %v4762 = vpack.c.b16 %v3868, %v3867
    %v4763 = vpack.c.b16 %v3870, %v3869
    %v4764 = vpack.c.b16 %v3872, %v3871
    %v4765 = vpack.c.b16 %v3874, %v3873
    %v4766 = vpack.c.b16 %v3876, %v3875
    %v4767 = vpack.c.b16 %v3878, %v3877
    %v4768 = vpack.c.b16 %v3880, %v3879
    %v4769 = vpack.c.b16 %v3882, %v3881
    %v4770 = vpack.c.b16 %v3884, %v3883
    %v4771 = vpack.c.b16 %v3886, %v3885
    %v4772 = vpack.c.b16 %v3888, %v3887
    %v4773 = vpack.c.b16 %v3890, %v3889
    %v4774 = vpack.c.b16 %v3892, %v3891
    %v4775 = vpack.c.b16 %v3894, %v3893
    %v4776 = vpack.c.b16 %v3896, %v3895
    %v4777 = vpack.c.b16 %v3898, %v3897
    %v4778 = vpack.c.b16 %v3900, %v3899
    %v4779 = vpack.c.b16 %v3902, %v3901
    %v4780 = vpack.c.b16 %v3904, %v3903
    %v4781 = vpack.c.b16 %v3906, %v3905
    %v4782 = vpack.c.b16 %v3908, %v3907
    %v4783 = vpack.c.b16 %v3910, %v3909
    %v4784 = vpack.c.b16 %v3912, %v3911
    %v4785 = vpack.c.b16 %v3914, %v3913
    %v4786 = vpack.c.b16 %v3916, %v3915
    %v4787 = vpack.c.b16 %v3918, %v3917
    %v4788 = vpack.c.b16 %v3920, %v3919
    %v4789 = vpack.c.b16 %v3922, %v3921
    %v4790 = vpack.c.b16 %v3924, %v3923
    %v4791 = vpack.c.b16 %v3926, %v3925
    %v4792 = vpack.c.b16 %v3928, %v3927
    %v4793 = vpack.c.b16 %v3930, %v3929
    %v4794 = vpack.c.b16 %v3932, %v3931
    %v4795 = vpack.c.b16 %v3934, %v3933
    %v4796 = vpack.c.b16 %v3936, %v3935
    %v4797 = vpack.c.b16 %v3938, %v3937
    %v4798 = vpack.c.b16 %v3940, %v3939
    %v4799 = vpack.c.b16 %v3942, %v3941
    %v4800 = vpack.c.b16 %v3944, %v3943
    %v4801 = vpack.c.b16 %v3946, %v3945
    %v4802 = vpack.c.b16 %v3948, %v3947
    %v4803 = vpack.c.b16 %v3950, %v3949
    %v4804 = vpack.c.b16 %v3952, %v3951
    %v4805 = vpack.c.b16 %v3954, %v3953
    %v4806 = vpack.c.b16 %v3956, %v3955
    %v4807 = vpack.c.b16 %v3958, %v3957
    %v4808 = vpack.c.b16 %v3960, %v3959
    %v4809 = vpack.c.b16 %v3962, %v3961
    %v4810 = vpack.c.b16 %v3964, %v3963
    %v4811 = vpack.c.b16 %v3966, %v3965
    %v4812 = vpack.c.b16 %v3968, %v3967
    %v4813 = vpack.c.b16 %v3970, %v3969
    %v4814 = vpack.c.b16 %v3972, %v3971
    %v4815 = vpack.c.b16 %v3974, %v3973
    %v4816 = vpack.c.b16 %v3976, %v3975
    %v4817 = vpack.c.b16 %v3978, %v3977
    %v4818 = vpack.c.b16 %v3980, %v3979
    %v4819 = vpack.c.b16 %v3982, %v3981
    %v4820 = vpack.c.b16 %v3984, %v3983
    %v4821 = vpack.c.b16 %v3986, %v3985
    %v4822 = vpack.c.b16 %v3988, %v3987
    %v4823 = vpack.c.b16 %v3990, %v3989
    %v4824 = vpack.c.b16 %v3992, %v3991
    %v4825 = vpack.c.b16 %v3994, %v3993
    %v4826 = vpack.c.b16 %v3996, %v3995
    %v4827 = vpack.c.b16 %v3998, %v3997
    %v4828 = vpack.c.b16 %v4000, %v3999
    %v4829 = vpack.c.b16 %v4002, %v4001
    %v4830 = vpack.c.b16 %v4004, %v4003
    %v4831 = vpack.c.b16 %v4006, %v4005
    %v4832 = vpack.c.b16 %v4008, %v4007
    %v4833 = vpack.c.b16 %v4010, %v4009
    %v4834 = vpack.c.b16 %v4012, %v4011
    %v4835 = vpack.c.b16 %v4014, %v4013
    %v4836 = vpack.c.b16 %v4016, %v4015
    %v4837 = vpack.c.b16 %v4018, %v4017
    %v4838 = vpack.c.b16 %v4020, %v4019
    %v4839 = vpack.c.b16 %v4022, %v4021
    %v4840 = vpack.c.b16 %v4024, %v4023
    %v4841 = vpack.c.b16 %v4026, %v4025
    %v4842 = vpack.c.b16 %v4028, %v4027
    %v4843 = vpack.c.b16 %v4030, %v4029
    %v4844 = vpack.c.b16 %v4032, %v4031
    %v4845 = vpack.c.b16 %v4034, %v4033
    %v4846 = vpack.c.b16 %v4036, %v4035
    %v4847 = vpack.c.b16 %v4038, %v4037
    %v4848 = vpack.c.b16 %v4040, %v4039
    %v4849 = vpack.c.b16 %v4042, %v4041
    %v4850 = vpack.c.b16 %v4044, %v4043
    %v4851 = vpack.c.b16 %v4046, %v4045
    %v4852 = vpack.c.b16 %v4048, %v4047
    %v4853 = vpack.c.b16 %v4050, %v4049
    %v4854 = vpack.c.b16 %v4052, %v4051
    %v4855 = vpack.c.b16 %v4054, %v4053
    %v4856 = vpack.c.b16 %v4056, %v4055
    %v4857 = vpack.c.b16 %v4058, %v4057
    %v4858 = vpack.c.b16 %v4060, %v4059
    %v4859 = vpack.c.b16 %v4062, %v4061
    %v4860 = vpack.c.b16 %v4064, %v4063
    %v4861 = vpack.c.b16 %v4066, %v4065
    %v4862 = vpack.c.b16 %v4068, %v4067
    %v4863 = vpack.c.b16 %v4070, %v4069
    %v4864 = vpack.c.b16 %v4072, %v4071
    %v4865 = vpack.c.b16 %v4074, %v4073
    %v4866 = vpack.c.b16 %v4076, %v4075
    %v4867 = vpack.c.b16 %v4078, %v4077
    %v4868 = vpack.c.b16 %v4080, %v4079
    %v4869 = vpack.c.b16 %v4082, %v4081
    %v4870 = vpack.c.b16 %v4084, %v4083
    %v4871 = vpack.c.b16 %v4086, %v4085
    %v4872 = vpack.c.b16 %v4088, %v4087
    %v4873 = vpack.c.b16 %v4090, %v4089
    %v4874 = vpack.c.b16 %v4092, %v4091
    %v4875 = vpack.c.b16 %v4094, %v4093
    %v4876 = vpack.c.b16 %v4096, %v4095
    %v4877 = vpack.c.b16 %v4098, %v4097
    %v4878 = vpack.c.b16 %v4100, %v4099
    %v4879 = vpack.c.b16 %v4102, %v4101
    %v4880 = vpack.c.b16 %v4104, %v4103
    %v4881 = vpack.c.b16 %v4106, %v4105
    %v4882 = vpack.c.b16 %v4108, %v4107
    %v4883 = vpack.c.b16 %v4110, %v4109
    %v4884 = vpack.c.b16 %v4112, %v4111
    %v4885 = vpack.c.b16 %v4114, %v4113
    %v4886 = vpack.c.b16 %v4116, %v4115
    %v4887 = vpack.c.b16 %v4118, %v4117
    %v4888 = vpack.c.b16 %v4120, %v4119
    %v4889 = vpack.c.b16 %v4122, %v4121
    %v4890 = vpack.c.b16 %v4124, %v4123
    %v4891 = vpack.c.b16 %v4126, %v4125
    %v4892 = vpack.c.b16 %v4128, %v4127
    %v4893 = vpack.c.b16 %v4130, %v4129
    %v4894 = vpack.c.b16 %v4132, %v4131
    %v4895 = vpack.c.b16 %v4134, %v4133
    %v4896 = vpack.c.b16 %v4136, %v4135
    %v4897 = vpack.c.b16 %v4138, %v4137
    %v4898 = vpack.c.b16 %v4140, %v4139
    %v4899 = vpack.c.b16 %v4142, %v4141
    %v4900 = vpack.c.b16 %v4144, %v4143
    %v4901 = vpack.c.b16 %v4146, %v4145
    %v4902 = vpack.c.b16 %v4148, %v4147
    %v4903 = vpack.c.b16 %v4150, %v4149
    %v4904 = vpack.c.b16 %v4152, %v4151
    %v4905 = vpack.c.b16 %v4154, %v4153
    %v4906 = vpack.c.b16 %v4156, %v4155
    %v4907 = vpack.c.b16 %v4158, %v4157
    %v4908 = vpack.c.b16 %v4160, %v4159
    %v4909 = vpack.c.b16 %v4162, %v4161
    %v4910 = vpack.c.b16 %v4164, %v4163
    %v4911 = vpack.c.b16 %v4166, %v4165
    %v4912 = vpack.c.b16 %v4168, %v4167
    %v4913 = vpack.c.b16 %v4170, %v4169
    %v4914 = vpack.c.b16 %v4172, %v4171
    %v4915 = vpack.c.b16 %v4174, %v4173
    %v4916 = vpack.c.b16 %v4176, %v4175
    %v4917 = vpack.c.b16 %v4178, %v4177
    %v4918 = vpack.c.b16 %v4180, %v4179
    %v4919 = vpack.c.b16 %v4182, %v4181
    %v4920 = vpack.c.b16 %v4184, %v4183
    %v4921 = vpack.c.b16 %v4186, %v4185
    %v4922 = vpack.c.b16 %v4188, %v4187
    %v4923 = vpack.c.b16 %v4190, %v4189
    %v4924 = vpack.c.b16 %v4192, %v4191
    %v4925 = vpack.c.b16 %v4194, %v4193
    %v4926 = vpack.c.b16 %v4196, %v4195
    %v4927 = vpack.c.b16 %v4198, %v4197
    %v4928 = vpack.c.b16 %v4200, %v4199
    %v4929 = vpack.c.b16 %v4202, %v4201
    %v4930 = vpack.c.b16 %v4204, %v4203
    %v4931 = vpack.c.b16 %v4206, %v4205
    %v4932 = vpack.c.b16 %v4208, %v4207
    %v4933 = vpack.c.b16 %v4210, %v4209
    %v4934 = vpack.c.b16 %v4212, %v4211
    %v4935 = vpack.c.b16 %v4214, %v4213
    %v4936 = vpack.c.b16 %v4216, %v4215
    %v4937 = vpack.c.b16 %v4218, %v4217
    %v4938 = vpack.c.b16 %v4220, %v4219
    %v4939 = vpack.c.b16 %v4222, %v4221
    %v4940 = vpack.c.b16 %v4224, %v4223
    %v4941 = vpack.c.b16 %v4226, %v4225
    %v4942 = vpack.c.b16 %v4228, %v4227
    %v4943 = vpack.c.b16 %v4230, %v4229
    %v4944 = vpack.c.b16 %v4232, %v4231
    %v4945 = vpack.c.b16 %v4234, %v4233
    %v4946 = vpack.c.b16 %v4236, %v4235
    %v4947 = vpack.c.b16 %v4238, %v4237
    %v4948 = vpack.c.b16 %v4240, %v4239
    %v4949 = vpack.c.b16 %v4242, %v4241
    %v4950 = vpack.c.b16 %v4244, %v4243
    %v4951 = vpack.c.b16 %v4246, %v4245
    %v4952 = vpack.c.b16 %v4248, %v4247
    %v4953 = vpack.c.b16 %v4250, %v4249
    %v4954 = vpack.c.b16 %v4252, %v4251
    %v4955 = vpack.c.b16 %v4254, %v4253
    %v4956 = vpack.c.b16 %v4256, %v4255
    %v4957 = vpack.c.b16 %v4258, %v4257
    %v4958 = vpack.c.b16 %v4260, %v4259
    %v4959 = vpack.c.b16 %v4262, %v4261
    %v4960 = vpack.c.b16 %v4264, %v4263
    %v4961 = vpack.c.b16 %v4266, %v4265
    %v4962 = vpack.c.b16 %v4268, %v4267
    %v4963 = vpack.c.b16 %v4270, %v4269
    %v4964 = vpack.c.b16 %v4272, %v4271
    %v4965 = vpack.c.b16 %v4274, %v4273
    %v4966 = vpack.c.b16 %v4276, %v4275
    %v4967 = vpack.c.b16 %v4278, %v4277
    %v4968 = vpack.c.b16 %v4280, %v4279
    %v4969 = vpack.c.b16 %v4282, %v4281
    %v4970 = vpack.c.b16 %v4284, %v4283
    %v4971 = vpack.c.b16 %v4286, %v4285
    %v4972 = vpack.c.b16 %v4288, %v4287
    %v4973 = vpack.c.b16 %v4290, %v4289
    %v4974 = vpack.c.b16 %v4292, %v4291
    %v4975 = vpack.c.b16 %v4294, %v4293
    %v4976 = vpack.c.b16 %v4296, %v4295
    %v4977 = vpack.c.b16 %v4298, %v4297
    %v4978 = vpack.c.b16 %v4300, %v4299
    %v4979 = vpack.c.b16 %v4302, %v4301
    %v4980 = vpack.c.b16 %v4304, %v4303
    %v4981 = vpack.c.b16 %v4306, %v4305
    %v4982 = vpack.c.b16 %v4308, %v4307
    %v4983 = vpack.c.b16 %v4310, %v4309
    %v4984 = vpack.c.b16 %v4312, %v4311
    %v4985 = vpack.c.b16 %v4314, %v4313
    %v4986 = vpack.c.b16 %v4316, %v4315
    %v4987 = vpack.c.b16 %v4318, %v4317
    %v4988 = vpack.c.b16 %v4320, %v4319
    %v4989 = vpack.c.b16 %v4322, %v4321
    %v4990 = vpack.c.b16 %v4324, %v4323
    %v4991 = vpack.c.b16 %v4326, %v4325
    %v4992 = vpack.c.b16 %v4328, %v4327
    %v4993 = vpack.c.b16 %v4330, %v4329
    %v4994 = vpack.c.b16 %v4332, %v4331
    %v4995 = vpack.c.b16 %v4334, %v4333
    %v4996 = vpack.c.b16 %v4336, %v4335
    %v4997 = vpack.c.b16 %v4338, %v4337
    %v4998 = vpack.c.b16 %v4340, %v4339
    %v4999 = vpack.c.b16 %v4342, %v4341
    %v5000 = vpack.c.b16 %v4344, %v4343
    %v5001 = vpack.c.b16 %v4346, %v4345
    %v5002 = vpack.c.b16 %v4348, %v4347
    %v5003 = vpack.c.b16 %v4350, %v4349
    %v5004 = vpack.c.b16 %v4352, %v4351
    %v5005 = vpack.c.b16 %v4354, %v4353
    %v5006 = vpack.c.b16 %v4356, %v4355
    %v5007 = vpack.c.b16 %v4358, %v4357
    %v5008 = vpack.c.b16 %v4360, %v4359
    %v5009 = vpack.c.b16 %v4362, %v4361
    %v5010 = vpack.c.b16 %v4364, %v4363
    %v5011 = vpack.c.b16 %v4366, %v4365
    %v5012 = vpack.c.b16 %v4368, %v4367
    %v5013 = vpack.c.b16 %v4370, %v4369
    %v5014 = vpack.c.b16 %v4372, %v4371
    %v5015 = vpack.c.b16 %v4374, %v4373
    %v5016 = vpack.c.b16 %v4376, %v4375
    %v5017 = vpack.c.b16 %v4378, %v4377
    %v5018 = vpack.c.b16 %v4380, %v4379
    %v5019 = vpack.c.b16 %v4382, %v4381
    %v5020 = vpack.c.b16 %v4384, %v4383
    %v5021 = vpack.c.b16 %v4386, %v4385
    %v5022 = vpack.c.b16 %v4388, %v4387
    %v5023 = vpack.c.b16 %v4390, %v4389
    %v5024 = vpack.c.b16 %v4392, %v4391
    %v5025 = vpack.c.b16 %v4394, %v4393
    %v5026 = vpack.c.b16 %v4396, %v4395
    %v5027 = vpack.c.b16 %v4398, %v4397
    %v5028 = vpack.c.b16 %v4400, %v4399
    %v5029 = vpack.c.b16 %v4402, %v4401
    %v5030 = vpack.c.b16 %v4404, %v4403
    %v5031 = vpack.c.b16 %v4406, %v4405
    %v5032 = vpack.c.b16 %v4408, %v4407
    %v5033 = vpack.c.b16 %v4410, %v4409
    %v5034 = vpack.c.b16 %v4412, %v4411
    %v5035 = vpack.c.b16 %v4414, %v4413
    %v5036 = vpack.c.b16 %v4416, %v4415
    %v5037 = vpack.c.b16 %v4418, %v4417
    %v5038 = vpack.c.b16 %v4420, %v4419
    %v5039 = vpack.c.b16 %v4422, %v4421
    %v5040 = vpack.c.b16 %v4424, %v4423
    %v5041 = vpack.c.b16 %v4426, %v4425
    %v5042 = vpack.c.b16 %v4428, %v4427
    %v5043 = vpack.c.b16 %v4430, %v4429
    %v5044 = vpack.c.b16 %v4432, %v4431
    %v5045 = vpack.c.b16 %v4434, %v4433
    %v5046 = vpack.c.b16 %v4436, %v4435
    %v5047 = vpack.c.b16 %v4438, %v4437
    %v5048 = vpack.c.b16 %v4440, %v4439
    %v5049 = vpack.c.b16 %v4442, %v4441
    %v5050 = vpack.c.b16 %v4444, %v4443
    %v5051 = vpack.c.b16 %v4446, %v4445
    %v5052 = vpack.c.b16 %v4448, %v4447
    %v5053 = vpack.c.b16 %v4450, %v4449
    %v5054 = vpack.c.b16 %v4452, %v4451
    %v5055 = vpack.c.b16 %v4454, %v4453
    %v5056 = vpack.c.b16 %v4456, %v4455
    %v5057 = vpack.c.b16 %v4458, %v4457
    %v5058 = vpack.c.b16 %v4460, %v4459
    %v5059 = vpack.c.b16 %v4462, %v4461
    %v5060 = vpack.c.b16 %v4464, %v4463
    %v5061 = vpack.c.b16 %v4466, %v4465
    %v5062 = vpack.c.b16 %v4468, %v4467
    %v5063 = vpack.c.b16 %v4470, %v4469
    %v5064 = vpack.c.b16 %v4472, %v4471
    %v5065 = vpack.c.b16 %v4474, %v4473
    %v5066 = vpack.c.b16 %v4476, %v4475
    %v5067 = vpack.c.b16 %v4478, %v4477
    %v5068 = vpack.c.b16 %v4480, %v4479
    %v5069 = vpack.c.b16 %v4482, %v4481
    %v5070 = vpack.c.b16 %v4484, %v4483
    %v5071 = vpack.c.b16 %v4486, %v4485
    %v5072 = vpack.c.b16 %v4488, %v4487
    %v5073 = vpack.c.b16 %v4490, %v4489
    %v5074 = vpack.c.b16 %v4492, %v4491
    %v5075 = vpack.c.b16 %v4494, %v4493
    %v5076 = vpack.c.b16 %v4496, %v4495
    %v5077 = vpack.c.b16 %v4498, %v4497
    %v5078 = vpack.c.b16 %v4500, %v4499
    %v5079 = vpack.c.b16 %v4502, %v4501
    %v5080 = vpack.c.b16 %v4504, %v4503
    %5657 = vmatpush.bf16.msra.mxu0 %v4512
    %5658 = vmatpush.bf16.msra.mxu0 %v4511
    %5659 = vmatpush.bf16.msra.mxu0 %v4510
    %5660 = vmatpush.bf16.msra.mxu0 %v4509
    %5661 = vmatpush.bf16.msra.mxu0 %v4508
    %5662 = vmatpush.bf16.msra.mxu0 %v4507
    %5663 = vmatpush.bf16.msra.mxu0 %v4506
    %5664 = vmatpush.bf16.msra.mxu0 %v4505
    %5665 = vmatmul.bf16.gmra.mxu0 %v977
    %v5666 = vpop.f32.mrf.mxu0
    %v5667 = vadd.f32 0.0, %v5666
    %v5668 = vpop.f32.mrf.mxu0
    %5669 = vdwg.mxu0
    %5670 = vmatpush.bf16.msra.mxu0 %v4520
    %5671 = vmatpush.bf16.msra.mxu0 %v4519
    %5672 = vmatpush.bf16.msra.mxu0 %v4518
    %5673 = vmatpush.bf16.msra.mxu0 %v4517
    %5674 = vmatpush.bf16.msra.mxu0 %v4516
    %5675 = vmatpush.bf16.msra.mxu0 %v4515
    %5676 = vmatpush.bf16.msra.mxu0 %v4514
    %5677 = vmatpush.bf16.msra.mxu0 %v4513
    %5678 = vmatmul.bf16.gmra.mxu0 %v978
    %v5679 = vpop.f32.mrf.mxu0
    %v5680 = vadd.f32 %v5667, %v5679
    %v5681 = vpop.f32.mrf.mxu0
    %5682 = vdwg.mxu0
    %5683 = vmatpush.bf16.msra.mxu0 %v4528
    %5684 = vmatpush.bf16.msra.mxu0 %v4527
    %5685 = vmatpush.bf16.msra.mxu0 %v4526
    %5686 = vmatpush.bf16.msra.mxu0 %v4525
    %5687 = vmatpush.bf16.msra.mxu0 %v4524
    %5688 = vmatpush.bf16.msra.mxu0 %v4523
    %5689 = vmatpush.bf16.msra.mxu0 %v4522
    %5690 = vmatpush.bf16.msra.mxu0 %v4521
    %5691 = vmatmul.bf16.gmra.mxu0 %v979
    %v5692 = vpop.f32.mrf.mxu0
    %v5693 = vadd.f32 %v5680, %v5692
    %v5694 = vpop.f32.mrf.mxu0
    %5695 = vdwg.mxu0
    %5696 = vmatpush.bf16.msra.mxu0 %v4536
    %5697 = vmatpush.bf16.msra.mxu0 %v4535
    %5698 = vmatpush.bf16.msra.mxu0 %v4534
    %5699 = vmatpush.bf16.msra.mxu0 %v4533
    %5700 = vmatpush.bf16.msra.mxu0 %v4532
    %5701 = vmatpush.bf16.msra.mxu0 %v4531
    %5702 = vmatpush.bf16.msra.mxu0 %v4530
    %5703 = vmatpush.bf16.msra.mxu0 %v4529
    %5704 = vmatmul.bf16.gmra.mxu0 %v980
    %v5705 = vpop.f32.mrf.mxu0
    %v5706 = vadd.f32 %v5693, %v5705
    %v5707 = vpop.f32.mrf.mxu0
    %5708 = vdwg.mxu0
    %5709 = vmatpush.bf16.msra.mxu0 %v4544
    %5710 = vmatpush.bf16.msra.mxu0 %v4543
    %5711 = vmatpush.bf16.msra.mxu0 %v4542
    %5712 = vmatpush.bf16.msra.mxu0 %v4541
    %5713 = vmatpush.bf16.msra.mxu0 %v4540
    %5714 = vmatpush.bf16.msra.mxu0 %v4539
    %5715 = vmatpush.bf16.msra.mxu0 %v4538
    %5716 = vmatpush.bf16.msra.mxu0 %v4537
    %5717 = vmatmul.bf16.gmra.mxu0 %v981
    %v5718 = vpop.f32.mrf.mxu0
    %v5719 = vadd.f32 %v5706, %v5718
    %v5720 = vpop.f32.mrf.mxu0
    %5721 = vdwg.mxu0
    %5722 = vmatpush.bf16.msra.mxu0 %v4552
    %5723 = vmatpush.bf16.msra.mxu0 %v4551
    %5724 = vmatpush.bf16.msra.mxu0 %v4550
    %5725 = vmatpush.bf16.msra.mxu0 %v4549
    %5726 = vmatpush.bf16.msra.mxu0 %v4548
    %5727 = vmatpush.bf16.msra.mxu0 %v4547
    %5728 = vmatpush.bf16.msra.mxu0 %v4546
    %5729 = vmatpush.bf16.msra.mxu0 %v4545
    %5730 = vmatmul.bf16.gmra.mxu0 %v982
    %v5731 = vpop.f32.mrf.mxu0
    %v5732 = vadd.f32 %v5719, %v5731
    %v5733 = vpop.f32.mrf.mxu0
    %5734 = vdwg.mxu0
    %5735 = vmatpush.bf16.msra.mxu0 %v4560
    %5736 = vmatpush.bf16.msra.mxu0 %v4559
    %5737 = vmatpush.bf16.msra.mxu0 %v4558
    %5738 = vmatpush.bf16.msra.mxu0 %v4557
    %5739 = vmatpush.bf16.msra.mxu0 %v4556
    %5740 = vmatpush.bf16.msra.mxu0 %v4555
    %5741 = vmatpush.bf16.msra.mxu0 %v4554
    %5742 = vmatpush.bf16.msra.mxu0 %v4553
    %5743 = vmatmul.bf16.gmra.mxu0 %v983
    %v5744 = vpop.f32.mrf.mxu0
    %v5745 = vadd.f32 %v5732, %v5744
    %v5746 = vpop.f32.mrf.mxu0
    %5747 = vdwg.mxu0
    %5748 = vmatpush.bf16.msra.mxu0 %v4568
    %5749 = vmatpush.bf16.msra.mxu0 %v4567
    %5750 = vmatpush.bf16.msra.mxu0 %v4566
    %5751 = vmatpush.bf16.msra.mxu0 %v4565
    %5752 = vmatpush.bf16.msra.mxu0 %v4564
    %5753 = vmatpush.bf16.msra.mxu0 %v4563
    %5754 = vmatpush.bf16.msra.mxu0 %v4562
    %5755 = vmatpush.bf16.msra.mxu0 %v4561
    %5756 = vmatmul.bf16.gmra.mxu0 %v984
    %v5757 = vpop.f32.mrf.mxu0
    %v5758 = vadd.f32 %v5745, %v5757
    %v5759 = vpop.f32.mrf.mxu0
    %5760 = vdwg.mxu0
    %5761 = vmatpush.bf16.msra.mxu0 %v4576
    %5762 = vmatpush.bf16.msra.mxu0 %v4575
    %5763 = vmatpush.bf16.msra.mxu0 %v4574
    %5764 = vmatpush.bf16.msra.mxu0 %v4573
    %5765 = vmatpush.bf16.msra.mxu0 %v4572
    %5766 = vmatpush.bf16.msra.mxu0 %v4571
    %5767 = vmatpush.bf16.msra.mxu0 %v4570
    %5768 = vmatpush.bf16.msra.mxu0 %v4569
    %5769 = vmatmul.bf16.gmra.mxu0 %v985
    %v5770 = vpop.f32.mrf.mxu0
    %v5771 = vadd.f32 %v5758, %v5770
    %v5772 = vpop.f32.mrf.mxu0
    %5773 = vdwg.mxu0
    %5774 = vmatpush.bf16.msra.mxu0 %v4584
    %5775 = vmatpush.bf16.msra.mxu0 %v4583
    %5776 = vmatpush.bf16.msra.mxu0 %v4582
    %5777 = vmatpush.bf16.msra.mxu0 %v4581
    %5778 = vmatpush.bf16.msra.mxu0 %v4580
    %5779 = vmatpush.bf16.msra.mxu0 %v4579
    %5780 = vmatpush.bf16.msra.mxu0 %v4578
    %5781 = vmatpush.bf16.msra.mxu0 %v4577
    %5782 = vmatmul.bf16.gmra.mxu0 %v986
    %v5783 = vpop.f32.mrf.mxu0
    %v5784 = vadd.f32 %v5771, %v5783
    %v5785 = vpop.f32.mrf.mxu0
    %5786 = vdwg.mxu0
    %5787 = vmatpush.bf16.msra.mxu0 %v4592
    %5788 = vmatpush.bf16.msra.mxu0 %v4591
    %5789 = vmatpush.bf16.msra.mxu0 %v4590
    %5790 = vmatpush.bf16.msra.mxu0 %v4589
    %5791 = vmatpush.bf16.msra.mxu0 %v4588
    %5792 = vmatpush.bf16.msra.mxu0 %v4587
    %5793 = vmatpush.bf16.msra.mxu0 %v4586
    %5794 = vmatpush.bf16.msra.mxu0 %v4585
    %5795 = vmatmul.bf16.gmra.mxu0 %v987
    %v5796 = vpop.f32.mrf.mxu0
    %v5797 = vadd.f32 %v5784, %v5796
    %v5798 = vpop.f32.mrf.mxu0
    %5799 = vdwg.mxu0
    %5800 = vmatpush.bf16.msra.mxu0 %v4600
    %5801 = vmatpush.bf16.msra.mxu0 %v4599
    %5802 = vmatpush.bf16.msra.mxu0 %v4598
    %5803 = vmatpush.bf16.msra.mxu0 %v4597
    %5804 = vmatpush.bf16.msra.mxu0 %v4596
    %5805 = vmatpush.bf16.msra.mxu0 %v4595
    %5806 = vmatpush.bf16.msra.mxu0 %v4594
    %5807 = vmatpush.bf16.msra.mxu0 %v4593
    %5808 = vmatmul.bf16.gmra.mxu0 %v988
    %v5809 = vpop.f32.mrf.mxu0
    %v5810 = vadd.f32 %v5797, %v5809
    %v5811 = vpop.f32.mrf.mxu0
    %5812 = vdwg.mxu0
    %5813 = vmatpush.bf16.msra.mxu0 %v4608
    %5814 = vmatpush.bf16.msra.mxu0 %v4607
    %5815 = vmatpush.bf16.msra.mxu0 %v4606
    %5816 = vmatpush.bf16.msra.mxu0 %v4605
    %5817 = vmatpush.bf16.msra.mxu0 %v4604
    %5818 = vmatpush.bf16.msra.mxu0 %v4603
    %5819 = vmatpush.bf16.msra.mxu0 %v4602
    %5820 = vmatpush.bf16.msra.mxu0 %v4601
    %5821 = vmatmul.bf16.gmra.mxu0 %v989
    %v5822 = vpop.f32.mrf.mxu0
    %v5823 = vadd.f32 %v5810, %v5822
    %v5824 = vpop.f32.mrf.mxu0
    %5825 = vdwg.mxu0
    %5826 = vmatpush.bf16.msra.mxu0 %v4616
    %5827 = vmatpush.bf16.msra.mxu0 %v4615
    %5828 = vmatpush.bf16.msra.mxu0 %v4614
    %5829 = vmatpush.bf16.msra.mxu0 %v4613
    %5830 = vmatpush.bf16.msra.mxu0 %v4612
    %5831 = vmatpush.bf16.msra.mxu0 %v4611
    %5832 = vmatpush.bf16.msra.mxu0 %v4610
    %5833 = vmatpush.bf16.msra.mxu0 %v4609
    %5834 = vmatmul.bf16.gmra.mxu0 %v990
    %v5835 = vpop.f32.mrf.mxu0
    %v5836 = vadd.f32 %v5823, %v5835
    %v5837 = vpop.f32.mrf.mxu0
    %5838 = vdwg.mxu0
    %5839 = vmatpush.bf16.msra.mxu0 %v4624
    %5840 = vmatpush.bf16.msra.mxu0 %v4623
    %5841 = vmatpush.bf16.msra.mxu0 %v4622
    %5842 = vmatpush.bf16.msra.mxu0 %v4621
    %5843 = vmatpush.bf16.msra.mxu0 %v4620
    %5844 = vmatpush.bf16.msra.mxu0 %v4619
    %5845 = vmatpush.bf16.msra.mxu0 %v4618
    %5846 = vmatpush.bf16.msra.mxu0 %v4617
    %5847 = vmatmul.bf16.gmra.mxu0 %v991
    %v5848 = vpop.f32.mrf.mxu0
    %v5849 = vadd.f32 %v5836, %v5848
    %v5850 = vpop.f32.mrf.mxu0
    %5851 = vdwg.mxu0
    %5852 = vmatpush.bf16.msra.mxu0 %v4632
    %5853 = vmatpush.bf16.msra.mxu0 %v4631
    %5854 = vmatpush.bf16.msra.mxu0 %v4630
    %5855 = vmatpush.bf16.msra.mxu0 %v4629
    %5856 = vmatpush.bf16.msra.mxu0 %v4628
    %5857 = vmatpush.bf16.msra.mxu0 %v4627
    %5858 = vmatpush.bf16.msra.mxu0 %v4626
    %5859 = vmatpush.bf16.msra.mxu0 %v4625
    %5860 = vmatmul.bf16.gmra.mxu0 %v992
    %v5861 = vpop.f32.mrf.mxu0
    %v5862 = vadd.f32 %v5849, %v5861
    %v5863 = vpop.f32.mrf.mxu0
    %5864 = vdwg.mxu0
    %5865 = vmatpush.bf16.msra.mxu0 %v4640
    %5866 = vmatpush.bf16.msra.mxu0 %v4639
    %5867 = vmatpush.bf16.msra.mxu0 %v4638
    %5868 = vmatpush.bf16.msra.mxu0 %v4637
    %5869 = vmatpush.bf16.msra.mxu0 %v4636
    %5870 = vmatpush.bf16.msra.mxu0 %v4635
    %5871 = vmatpush.bf16.msra.mxu0 %v4634
    %5872 = vmatpush.bf16.msra.mxu0 %v4633
    %5873 = vmatmul.bf16.gmra.mxu0 %v993
    %v5874 = vpop.f32.mrf.mxu0
    %v5875 = vadd.f32 %v5862, %v5874
    %v5876 = vpop.f32.mrf.mxu0
    %5877 = vdwg.mxu0
    %5878 = vmatpush.bf16.msra.mxu0 %v4648
    %5879 = vmatpush.bf16.msra.mxu0 %v4647
    %5880 = vmatpush.bf16.msra.mxu0 %v4646
    %5881 = vmatpush.bf16.msra.mxu0 %v4645
    %5882 = vmatpush.bf16.msra.mxu0 %v4644
    %5883 = vmatpush.bf16.msra.mxu0 %v4643
    %5884 = vmatpush.bf16.msra.mxu0 %v4642
    %5885 = vmatpush.bf16.msra.mxu0 %v4641
    %5886 = vmatmul.bf16.gmra.mxu0 %v994
    %v5887 = vpop.f32.mrf.mxu0
    %v5888 = vadd.f32 %v5875, %v5887
    %v5889 = vpop.f32.mrf.mxu0
    %5890 = vdwg.mxu0
    %5891 = vmatpush.bf16.msra.mxu0 %v4656
    %5892 = vmatpush.bf16.msra.mxu0 %v4655
    %5893 = vmatpush.bf16.msra.mxu0 %v4654
    %5894 = vmatpush.bf16.msra.mxu0 %v4653
    %5895 = vmatpush.bf16.msra.mxu0 %v4652
    %5896 = vmatpush.bf16.msra.mxu0 %v4651
    %5897 = vmatpush.bf16.msra.mxu0 %v4650
    %5898 = vmatpush.bf16.msra.mxu0 %v4649
    %5899 = vmatmul.bf16.gmra.mxu0 %v995
    %v5900 = vpop.f32.mrf.mxu0
    %v5901 = vadd.f32 %v5888, %v5900
    %v5902 = vpop.f32.mrf.mxu0
    %5903 = vdwg.mxu0
    %5904 = vmatpush.bf16.msra.mxu0 %v4664
    %5905 = vmatpush.bf16.msra.mxu0 %v4663
    %5906 = vmatpush.bf16.msra.mxu0 %v4662
    %5907 = vmatpush.bf16.msra.mxu0 %v4661
    %5908 = vmatpush.bf16.msra.mxu0 %v4660
    %5909 = vmatpush.bf16.msra.mxu0 %v4659
    %5910 = vmatpush.bf16.msra.mxu0 %v4658
    %5911 = vmatpush.bf16.msra.mxu0 %v4657
    %5912 = vmatmul.bf16.gmra.mxu0 %v996
    %v5913 = vpop.f32.mrf.mxu0
    %v5914 = vadd.f32 %v5901, %v5913
    %v5915 = vpop.f32.mrf.mxu0
    %5916 = vdwg.mxu0
    %5917 = vmatpush.bf16.msra.mxu0 %v4672
    %5918 = vmatpush.bf16.msra.mxu0 %v4671
    %5919 = vmatpush.bf16.msra.mxu0 %v4670
    %5920 = vmatpush.bf16.msra.mxu0 %v4669
    %5921 = vmatpush.bf16.msra.mxu0 %v4668
    %5922 = vmatpush.bf16.msra.mxu0 %v4667
    %5923 = vmatpush.bf16.msra.mxu0 %v4666
    %5924 = vmatpush.bf16.msra.mxu0 %v4665
    %5925 = vmatmul.bf16.gmra.mxu0 %v997
    %v5926 = vpop.f32.mrf.mxu0
    %v5927 = vadd.f32 %v5914, %v5926
    %v5928 = vpop.f32.mrf.mxu0
    %5929 = vdwg.mxu0
    %5930 = vmatpush.bf16.msra.mxu0 %v4680
    %5931 = vmatpush.bf16.msra.mxu0 %v4679
    %5932 = vmatpush.bf16.msra.mxu0 %v4678
    %5933 = vmatpush.bf16.msra.mxu0 %v4677
    %5934 = vmatpush.bf16.msra.mxu0 %v4676
    %5935 = vmatpush.bf16.msra.mxu0 %v4675
    %5936 = vmatpush.bf16.msra.mxu0 %v4674
    %5937 = vmatpush.bf16.msra.mxu0 %v4673
    %5938 = vmatmul.bf16.gmra.mxu0 %v998
    %v5939 = vpop.f32.mrf.mxu0
    %v5940 = vadd.f32 %v5927, %v5939
    %v5941 = vpop.f32.mrf.mxu0
    %5942 = vdwg.mxu0
    %5943 = vmatpush.bf16.msra.mxu0 %v4688
    %5944 = vmatpush.bf16.msra.mxu0 %v4687
    %5945 = vmatpush.bf16.msra.mxu0 %v4686
    %5946 = vmatpush.bf16.msra.mxu0 %v4685
    %5947 = vmatpush.bf16.msra.mxu0 %v4684
    %5948 = vmatpush.bf16.msra.mxu0 %v4683
    %5949 = vmatpush.bf16.msra.mxu0 %v4682
    %5950 = vmatpush.bf16.msra.mxu0 %v4681
    %5951 = vmatmul.bf16.gmra.mxu0 %v999
    %v5952 = vpop.f32.mrf.mxu0
    %v5953 = vadd.f32 %v5940, %v5952
    %v5954 = vpop.f32.mrf.mxu0
    %5955 = vdwg.mxu0
    %5956 = vmatpush.bf16.msra.mxu0 %v4696
    %5957 = vmatpush.bf16.msra.mxu0 %v4695
    %5958 = vmatpush.bf16.msra.mxu0 %v4694
    %5959 = vmatpush.bf16.msra.mxu0 %v4693
    %5960 = vmatpush.bf16.msra.mxu0 %v4692
    %5961 = vmatpush.bf16.msra.mxu0 %v4691
    %5962 = vmatpush.bf16.msra.mxu0 %v4690
    %5963 = vmatpush.bf16.msra.mxu0 %v4689
    %5964 = vmatmul.bf16.gmra.mxu0 %v1000
    %v5965 = vpop.f32.mrf.mxu0
    %v5966 = vadd.f32 %v5953, %v5965
    %v5967 = vpop.f32.mrf.mxu0
    %5968 = vdwg.mxu0
    %5969 = vmatpush.bf16.msra.mxu0 %v4704
    %5970 = vmatpush.bf16.msra.mxu0 %v4703
    %5971 = vmatpush.bf16.msra.mxu0 %v4702
    %5972 = vmatpush.bf16.msra.mxu0 %v4701
    %5973 = vmatpush.bf16.msra.mxu0 %v4700
    %5974 = vmatpush.bf16.msra.mxu0 %v4699
    %5975 = vmatpush.bf16.msra.mxu0 %v4698
    %5976 = vmatpush.bf16.msra.mxu0 %v4697
    %5977 = vmatmul.bf16.gmra.mxu0 %v1001
    %v5978 = vpop.f32.mrf.mxu0
    %v5979 = vadd.f32 %v5966, %v5978
    %v5980 = vpop.f32.mrf.mxu0
    %5981 = vdwg.mxu0
    %5982 = vmatpush.bf16.msra.mxu0 %v4712
    %5983 = vmatpush.bf16.msra.mxu0 %v4711
    %5984 = vmatpush.bf16.msra.mxu0 %v4710
    %5985 = vmatpush.bf16.msra.mxu0 %v4709
    %5986 = vmatpush.bf16.msra.mxu0 %v4708
    %5987 = vmatpush.bf16.msra.mxu0 %v4707
    %5988 = vmatpush.bf16.msra.mxu0 %v4706
    %5989 = vmatpush.bf16.msra.mxu0 %v4705
    %5990 = vmatmul.bf16.gmra.mxu0 %v1002
    %v5991 = vpop.f32.mrf.mxu0
    %v5992 = vadd.f32 %v5979, %v5991
    %v5993 = vpop.f32.mrf.mxu0
    %5994 = vdwg.mxu0
    %5995 = vmatpush.bf16.msra.mxu0 %v4720
    %5996 = vmatpush.bf16.msra.mxu0 %v4719
    %5997 = vmatpush.bf16.msra.mxu0 %v4718
    %5998 = vmatpush.bf16.msra.mxu0 %v4717
    %5999 = vmatpush.bf16.msra.mxu0 %v4716
    %6000 = vmatpush.bf16.msra.mxu0 %v4715
    %6001 = vmatpush.bf16.msra.mxu0 %v4714
    %6002 = vmatpush.bf16.msra.mxu0 %v4713
    %6003 = vmatmul.bf16.gmra.mxu0 %v1003
    %v6004 = vpop.f32.mrf.mxu0
    %v6005 = vadd.f32 %v5992, %v6004
    %v6006 = vpop.f32.mrf.mxu0
    %6007 = vdwg.mxu0
    %6008 = vmatpush.bf16.msra.mxu0 %v4728
    %6009 = vmatpush.bf16.msra.mxu0 %v4727
    %6010 = vmatpush.bf16.msra.mxu0 %v4726
    %6011 = vmatpush.bf16.msra.mxu0 %v4725
    %6012 = vmatpush.bf16.msra.mxu0 %v4724
    %6013 = vmatpush.bf16.msra.mxu0 %v4723
    %6014 = vmatpush.bf16.msra.mxu0 %v4722
    %6015 = vmatpush.bf16.msra.mxu0 %v4721
    %6016 = vmatmul.bf16.gmra.mxu0 %v1004
    %v6017 = vpop.f32.mrf.mxu0
    %v6018 = vadd.f32 %v6005, %v6017
    %v6019 = vpop.f32.mrf.mxu0
    %6020 = vdwg.mxu0
    %6021 = vmatpush.bf16.msra.mxu0 %v4736
    %6022 = vmatpush.bf16.msra.mxu0 %v4735
    %6023 = vmatpush.bf16.msra.mxu0 %v4734
    %6024 = vmatpush.bf16.msra.mxu0 %v4733
    %6025 = vmatpush.bf16.msra.mxu0 %v4732
    %6026 = vmatpush.bf16.msra.mxu0 %v4731
    %6027 = vmatpush.bf16.msra.mxu0 %v4730
    %6028 = vmatpush.bf16.msra.mxu0 %v4729
    %6029 = vmatmul.bf16.gmra.mxu0 %v1005
    %v6030 = vpop.f32.mrf.mxu0
    %v6031 = vadd.f32 %v6018, %v6030
    %v6032 = vpop.f32.mrf.mxu0
    %6033 = vdwg.mxu0
    %6034 = vmatpush.bf16.msra.mxu0 %v4744
    %6035 = vmatpush.bf16.msra.mxu0 %v4743
    %6036 = vmatpush.bf16.msra.mxu0 %v4742
    %6037 = vmatpush.bf16.msra.mxu0 %v4741
    %6038 = vmatpush.bf16.msra.mxu0 %v4740
    %6039 = vmatpush.bf16.msra.mxu0 %v4739
    %6040 = vmatpush.bf16.msra.mxu0 %v4738
    %6041 = vmatpush.bf16.msra.mxu0 %v4737
    %6042 = vmatmul.bf16.gmra.mxu0 %v1006
    %v6043 = vpop.f32.mrf.mxu0
    %v6044 = vadd.f32 %v6031, %v6043
    %v6045 = vpop.f32.mrf.mxu0
    %6046 = vdwg.mxu0
    %6047 = vmatpush.bf16.msra.mxu0 %v4752
    %6048 = vmatpush.bf16.msra.mxu0 %v4751
    %6049 = vmatpush.bf16.msra.mxu0 %v4750
    %6050 = vmatpush.bf16.msra.mxu0 %v4749
    %6051 = vmatpush.bf16.msra.mxu0 %v4748
    %6052 = vmatpush.bf16.msra.mxu0 %v4747
    %6053 = vmatpush.bf16.msra.mxu0 %v4746
    %6054 = vmatpush.bf16.msra.mxu0 %v4745
    %6055 = vmatmul.bf16.gmra.mxu0 %v1007
    %v6056 = vpop.f32.mrf.mxu0
    %v6057 = vadd.f32 %v6044, %v6056
    %v6058 = vpop.f32.mrf.mxu0
    %6059 = vdwg.mxu0
    %6060 = vmatpush.bf16.msra.mxu0 %v4760
    %6061 = vmatpush.bf16.msra.mxu0 %v4759
    %6062 = vmatpush.bf16.msra.mxu0 %v4758
    %6063 = vmatpush.bf16.msra.mxu0 %v4757
    %6064 = vmatpush.bf16.msra.mxu0 %v4756
    %6065 = vmatpush.bf16.msra.mxu0 %v4755
    %6066 = vmatpush.bf16.msra.mxu0 %v4754
    %6067 = vmatpush.bf16.msra.mxu0 %v4753
    %6068 = vmatmul.bf16.gmra.mxu0 %v1008
    %v6069 = vpop.f32.mrf.mxu0
    %v6070 = vadd.f32 %v6057, %v6069
    %v6071 = vpop.f32.mrf.mxu0
    %6072 = vdwg.mxu0
    %6073 = vmatpush.bf16.msra.mxu0 %v4768
    %6074 = vmatpush.bf16.msra.mxu0 %v4767
    %6075 = vmatpush.bf16.msra.mxu0 %v4766
    %6076 = vmatpush.bf16.msra.mxu0 %v4765
    %6077 = vmatpush.bf16.msra.mxu0 %v4764
    %6078 = vmatpush.bf16.msra.mxu0 %v4763
    %6079 = vmatpush.bf16.msra.mxu0 %v4762
    %6080 = vmatpush.bf16.msra.mxu0 %v4761
    %6081 = vmatmul.bf16.gmra.mxu0 %v1009
    %v6082 = vpop.f32.mrf.mxu0
    %v6083 = vadd.f32 %v6070, %v6082
    %v6084 = vpop.f32.mrf.mxu0
    %6085 = vdwg.mxu0
    %6086 = vmatpush.bf16.msra.mxu0 %v4776
    %6087 = vmatpush.bf16.msra.mxu0 %v4775
    %6088 = vmatpush.bf16.msra.mxu0 %v4774
    %6089 = vmatpush.bf16.msra.mxu0 %v4773
    %6090 = vmatpush.bf16.msra.mxu0 %v4772
    %6091 = vmatpush.bf16.msra.mxu0 %v4771
    %6092 = vmatpush.bf16.msra.mxu0 %v4770
    %6093 = vmatpush.bf16.msra.mxu0 %v4769
    %6094 = vmatmul.bf16.gmra.mxu0 %v1010
    %v6095 = vpop.f32.mrf.mxu0
    %v6096 = vadd.f32 %v6083, %v6095
    %v6097 = vpop.f32.mrf.mxu0
    %6098 = vdwg.mxu0
    %6099 = vmatpush.bf16.msra.mxu0 %v4784
    %6100 = vmatpush.bf16.msra.mxu0 %v4783
    %6101 = vmatpush.bf16.msra.mxu0 %v4782
    %6102 = vmatpush.bf16.msra.mxu0 %v4781
    %6103 = vmatpush.bf16.msra.mxu0 %v4780
    %6104 = vmatpush.bf16.msra.mxu0 %v4779
    %6105 = vmatpush.bf16.msra.mxu0 %v4778
    %6106 = vmatpush.bf16.msra.mxu0 %v4777
    %6107 = vmatmul.bf16.gmra.mxu0 %v1011
    %v6108 = vpop.f32.mrf.mxu0
    %v6109 = vadd.f32 %v6096, %v6108
    %v6110 = vpop.f32.mrf.mxu0
    %6111 = vdwg.mxu0
    %6112 = vmatpush.bf16.msra.mxu0 %v4792
    %6113 = vmatpush.bf16.msra.mxu0 %v4791
    %6114 = vmatpush.bf16.msra.mxu0 %v4790
    %6115 = vmatpush.bf16.msra.mxu0 %v4789
    %6116 = vmatpush.bf16.msra.mxu0 %v4788
    %6117 = vmatpush.bf16.msra.mxu0 %v4787
    %6118 = vmatpush.bf16.msra.mxu0 %v4786
    %6119 = vmatpush.bf16.msra.mxu0 %v4785
    %6120 = vmatmul.bf16.gmra.mxu0 %v1012
    %v6121 = vpop.f32.mrf.mxu0
    %v6122 = vadd.f32 %v6109, %v6121
    %v6123 = vpop.f32.mrf.mxu0
    %6124 = vdwg.mxu0
    %6125 = vmatpush.bf16.msra.mxu0 %v4800
    %6126 = vmatpush.bf16.msra.mxu0 %v4799
    %6127 = vmatpush.bf16.msra.mxu0 %v4798
    %6128 = vmatpush.bf16.msra.mxu0 %v4797
    %6129 = vmatpush.bf16.msra.mxu0 %v4796
    %6130 = vmatpush.bf16.msra.mxu0 %v4795
    %6131 = vmatpush.bf16.msra.mxu0 %v4794
    %6132 = vmatpush.bf16.msra.mxu0 %v4793
    %6133 = vmatmul.bf16.gmra.mxu0 %v1013
    %v6134 = vpop.f32.mrf.mxu0
    %v6135 = vadd.f32 %v6122, %v6134
    %v6136 = vpop.f32.mrf.mxu0
    %6137 = vdwg.mxu0
    %6138 = vmatpush.bf16.msra.mxu0 %v4808
    %6139 = vmatpush.bf16.msra.mxu0 %v4807
    %6140 = vmatpush.bf16.msra.mxu0 %v4806
    %6141 = vmatpush.bf16.msra.mxu0 %v4805
    %6142 = vmatpush.bf16.msra.mxu0 %v4804
    %6143 = vmatpush.bf16.msra.mxu0 %v4803
    %6144 = vmatpush.bf16.msra.mxu0 %v4802
    %6145 = vmatpush.bf16.msra.mxu0 %v4801
    %6146 = vmatmul.bf16.gmra.mxu0 %v1014
    %v6147 = vpop.f32.mrf.mxu0
    %v6148 = vadd.f32 %v6135, %v6147
    %v6149 = vpop.f32.mrf.mxu0
    %6150 = vdwg.mxu0
    %6151 = vmatpush.bf16.msra.mxu0 %v4816
    %6152 = vmatpush.bf16.msra.mxu0 %v4815
    %6153 = vmatpush.bf16.msra.mxu0 %v4814
    %6154 = vmatpush.bf16.msra.mxu0 %v4813
    %6155 = vmatpush.bf16.msra.mxu0 %v4812
    %6156 = vmatpush.bf16.msra.mxu0 %v4811
    %6157 = vmatpush.bf16.msra.mxu0 %v4810
    %6158 = vmatpush.bf16.msra.mxu0 %v4809
    %6159 = vmatmul.bf16.gmra.mxu0 %v1015
    %v6160 = vpop.f32.mrf.mxu0
    %v6161 = vadd.f32 %v6148, %v6160
    %v6162 = vpop.f32.mrf.mxu0
    %6163 = vdwg.mxu0
    %6164 = vmatpush.bf16.msra.mxu0 %v4824
    %6165 = vmatpush.bf16.msra.mxu0 %v4823
    %6166 = vmatpush.bf16.msra.mxu0 %v4822
    %6167 = vmatpush.bf16.msra.mxu0 %v4821
    %6168 = vmatpush.bf16.msra.mxu0 %v4820
    %6169 = vmatpush.bf16.msra.mxu0 %v4819
    %6170 = vmatpush.bf16.msra.mxu0 %v4818
    %6171 = vmatpush.bf16.msra.mxu0 %v4817
    %6172 = vmatmul.bf16.gmra.mxu0 %v1016
    %v6173 = vpop.f32.mrf.mxu0
    %v6174 = vadd.f32 %v6161, %v6173
    %v6175 = vpop.f32.mrf.mxu0
    %6176 = vdwg.mxu0
    %6177 = vmatpush.bf16.msra.mxu0 %v4832
    %6178 = vmatpush.bf16.msra.mxu0 %v4831
    %6179 = vmatpush.bf16.msra.mxu0 %v4830
    %6180 = vmatpush.bf16.msra.mxu0 %v4829
    %6181 = vmatpush.bf16.msra.mxu0 %v4828
    %6182 = vmatpush.bf16.msra.mxu0 %v4827
    %6183 = vmatpush.bf16.msra.mxu0 %v4826
    %6184 = vmatpush.bf16.msra.mxu0 %v4825
    %6185 = vmatmul.bf16.gmra.mxu0 %v1017
    %v6186 = vpop.f32.mrf.mxu0
    %v6187 = vadd.f32 %v6174, %v6186
    %v6188 = vpop.f32.mrf.mxu0
    %6189 = vdwg.mxu0
    %6190 = vmatpush.bf16.msra.mxu0 %v4840
    %6191 = vmatpush.bf16.msra.mxu0 %v4839
    %6192 = vmatpush.bf16.msra.mxu0 %v4838
    %6193 = vmatpush.bf16.msra.mxu0 %v4837
    %6194 = vmatpush.bf16.msra.mxu0 %v4836
    %6195 = vmatpush.bf16.msra.mxu0 %v4835
    %6196 = vmatpush.bf16.msra.mxu0 %v4834
    %6197 = vmatpush.bf16.msra.mxu0 %v4833
    %6198 = vmatmul.bf16.gmra.mxu0 %v1018
    %v6199 = vpop.f32.mrf.mxu0
    %v6200 = vadd.f32 %v6187, %v6199
    %v6201 = vpop.f32.mrf.mxu0
    %6202 = vdwg.mxu0
    %6203 = vmatpush.bf16.msra.mxu0 %v4848
    %6204 = vmatpush.bf16.msra.mxu0 %v4847
    %6205 = vmatpush.bf16.msra.mxu0 %v4846
    %6206 = vmatpush.bf16.msra.mxu0 %v4845
    %6207 = vmatpush.bf16.msra.mxu0 %v4844
    %6208 = vmatpush.bf16.msra.mxu0 %v4843
    %6209 = vmatpush.bf16.msra.mxu0 %v4842
    %6210 = vmatpush.bf16.msra.mxu0 %v4841
    %6211 = vmatmul.bf16.gmra.mxu0 %v1019
    %v6212 = vpop.f32.mrf.mxu0
    %v6213 = vadd.f32 %v6200, %v6212
    %v6214 = vpop.f32.mrf.mxu0
    %6215 = vdwg.mxu0
    %6216 = vmatpush.bf16.msra.mxu0 %v4856
    %6217 = vmatpush.bf16.msra.mxu0 %v4855
    %6218 = vmatpush.bf16.msra.mxu0 %v4854
    %6219 = vmatpush.bf16.msra.mxu0 %v4853
    %6220 = vmatpush.bf16.msra.mxu0 %v4852
    %6221 = vmatpush.bf16.msra.mxu0 %v4851
    %6222 = vmatpush.bf16.msra.mxu0 %v4850
    %6223 = vmatpush.bf16.msra.mxu0 %v4849
    %6224 = vmatmul.bf16.gmra.mxu0 %v1020
    %v6225 = vpop.f32.mrf.mxu0
    %v6226 = vadd.f32 %v6213, %v6225
    %v6227 = vpop.f32.mrf.mxu0
    %6228 = vdwg.mxu0
    %6229 = vmatpush.bf16.msra.mxu0 %v4864
    %6230 = vmatpush.bf16.msra.mxu0 %v4863
    %6231 = vmatpush.bf16.msra.mxu0 %v4862
    %6232 = vmatpush.bf16.msra.mxu0 %v4861
    %6233 = vmatpush.bf16.msra.mxu0 %v4860
    %6234 = vmatpush.bf16.msra.mxu0 %v4859
    %6235 = vmatpush.bf16.msra.mxu0 %v4858
    %6236 = vmatpush.bf16.msra.mxu0 %v4857
    %6237 = vmatmul.bf16.gmra.mxu0 %v1021
    %v6238 = vpop.f32.mrf.mxu0
    %v6239 = vadd.f32 %v6226, %v6238
    %v6240 = vpop.f32.mrf.mxu0
    %6241 = vdwg.mxu0
    %6242 = vmatpush.bf16.msra.mxu0 %v4872
    %6243 = vmatpush.bf16.msra.mxu0 %v4871
    %6244 = vmatpush.bf16.msra.mxu0 %v4870
    %6245 = vmatpush.bf16.msra.mxu0 %v4869
    %6246 = vmatpush.bf16.msra.mxu0 %v4868
    %6247 = vmatpush.bf16.msra.mxu0 %v4867
    %6248 = vmatpush.bf16.msra.mxu0 %v4866
    %6249 = vmatpush.bf16.msra.mxu0 %v4865
    %6250 = vmatmul.bf16.gmra.mxu0 %v1022
    %v6251 = vpop.f32.mrf.mxu0
    %v6252 = vadd.f32 %v6239, %v6251
    %v6253 = vpop.f32.mrf.mxu0
    %6254 = vdwg.mxu0
    %6255 = vmatpush.bf16.msra.mxu0 %v4880
    %6256 = vmatpush.bf16.msra.mxu0 %v4879
    %6257 = vmatpush.bf16.msra.mxu0 %v4878
    %6258 = vmatpush.bf16.msra.mxu0 %v4877
    %6259 = vmatpush.bf16.msra.mxu0 %v4876
    %6260 = vmatpush.bf16.msra.mxu0 %v4875
    %6261 = vmatpush.bf16.msra.mxu0 %v4874
    %6262 = vmatpush.bf16.msra.mxu0 %v4873
    %6263 = vmatmul.bf16.gmra.mxu0 %v1023
    %v6264 = vpop.f32.mrf.mxu0
    %v6265 = vadd.f32 %v6252, %v6264
    %v6266 = vpop.f32.mrf.mxu0
    %6267 = vdwg.mxu0
    %6268 = vmatpush.bf16.msra.mxu0 %v4888
    %6269 = vmatpush.bf16.msra.mxu0 %v4887
    %6270 = vmatpush.bf16.msra.mxu0 %v4886
    %6271 = vmatpush.bf16.msra.mxu0 %v4885
    %6272 = vmatpush.bf16.msra.mxu0 %v4884
    %6273 = vmatpush.bf16.msra.mxu0 %v4883
    %6274 = vmatpush.bf16.msra.mxu0 %v4882
    %6275 = vmatpush.bf16.msra.mxu0 %v4881
    %6276 = vmatmul.bf16.gmra.mxu0 %v1024
    %v6277 = vpop.f32.mrf.mxu0
    %v6278 = vadd.f32 %v6265, %v6277
    %v6279 = vpop.f32.mrf.mxu0
    %6280 = vdwg.mxu0
    %6281 = vmatpush.bf16.msra.mxu0 %v4896
    %6282 = vmatpush.bf16.msra.mxu0 %v4895
    %6283 = vmatpush.bf16.msra.mxu0 %v4894
    %6284 = vmatpush.bf16.msra.mxu0 %v4893
    %6285 = vmatpush.bf16.msra.mxu0 %v4892
    %6286 = vmatpush.bf16.msra.mxu0 %v4891
    %6287 = vmatpush.bf16.msra.mxu0 %v4890
    %6288 = vmatpush.bf16.msra.mxu0 %v4889
    %6289 = vmatmul.bf16.gmra.mxu0 %v1025
    %v6290 = vpop.f32.mrf.mxu0
    %v6291 = vadd.f32 %v6278, %v6290
    %v6292 = vpop.f32.mrf.mxu0
    %6293 = vdwg.mxu0
    %6294 = vmatpush.bf16.msra.mxu0 %v4904
    %6295 = vmatpush.bf16.msra.mxu0 %v4903
    %6296 = vmatpush.bf16.msra.mxu0 %v4902
    %6297 = vmatpush.bf16.msra.mxu0 %v4901
    %6298 = vmatpush.bf16.msra.mxu0 %v4900
    %6299 = vmatpush.bf16.msra.mxu0 %v4899
    %6300 = vmatpush.bf16.msra.mxu0 %v4898
    %6301 = vmatpush.bf16.msra.mxu0 %v4897
    %6302 = vmatmul.bf16.gmra.mxu0 %v1026
    %v6303 = vpop.f32.mrf.mxu0
    %v6304 = vadd.f32 %v6291, %v6303
    %v6305 = vpop.f32.mrf.mxu0
    %6306 = vdwg.mxu0
    %6307 = vmatpush.bf16.msra.mxu0 %v4912
    %6308 = vmatpush.bf16.msra.mxu0 %v4911
    %6309 = vmatpush.bf16.msra.mxu0 %v4910
    %6310 = vmatpush.bf16.msra.mxu0 %v4909
    %6311 = vmatpush.bf16.msra.mxu0 %v4908
    %6312 = vmatpush.bf16.msra.mxu0 %v4907
    %6313 = vmatpush.bf16.msra.mxu0 %v4906
    %6314 = vmatpush.bf16.msra.mxu0 %v4905
    %6315 = vmatmul.bf16.gmra.mxu0 %v1027
    %v6316 = vpop.f32.mrf.mxu0
    %v6317 = vadd.f32 %v6304, %v6316
    %v6318 = vpop.f32.mrf.mxu0
    %6319 = vdwg.mxu0
    %6320 = vmatpush.bf16.msra.mxu0 %v4920
    %6321 = vmatpush.bf16.msra.mxu0 %v4919
    %6322 = vmatpush.bf16.msra.mxu0 %v4918
    %6323 = vmatpush.bf16.msra.mxu0 %v4917
    %6324 = vmatpush.bf16.msra.mxu0 %v4916
    %6325 = vmatpush.bf16.msra.mxu0 %v4915
    %6326 = vmatpush.bf16.msra.mxu0 %v4914
    %6327 = vmatpush.bf16.msra.mxu0 %v4913
    %6328 = vmatmul.bf16.gmra.mxu0 %v1028
    %v6329 = vpop.f32.mrf.mxu0
    %v6330 = vadd.f32 %v6317, %v6329
    %v6331 = vpop.f32.mrf.mxu0
    %6332 = vdwg.mxu0
    %6333 = vmatpush.bf16.msra.mxu0 %v4928
    %6334 = vmatpush.bf16.msra.mxu0 %v4927
    %6335 = vmatpush.bf16.msra.mxu0 %v4926
    %6336 = vmatpush.bf16.msra.mxu0 %v4925
    %6337 = vmatpush.bf16.msra.mxu0 %v4924
    %6338 = vmatpush.bf16.msra.mxu0 %v4923
    %6339 = vmatpush.bf16.msra.mxu0 %v4922
    %6340 = vmatpush.bf16.msra.mxu0 %v4921
    %6341 = vmatmul.bf16.gmra.mxu0 %v1029
    %v6342 = vpop.f32.mrf.mxu0
    %v6343 = vadd.f32 %v6330, %v6342
    %v6344 = vpop.f32.mrf.mxu0
    %6345 = vdwg.mxu0
    %6346 = vmatpush.bf16.msra.mxu0 %v4936
    %6347 = vmatpush.bf16.msra.mxu0 %v4935
    %6348 = vmatpush.bf16.msra.mxu0 %v4934
    %6349 = vmatpush.bf16.msra.mxu0 %v4933
    %6350 = vmatpush.bf16.msra.mxu0 %v4932
    %6351 = vmatpush.bf16.msra.mxu0 %v4931
    %6352 = vmatpush.bf16.msra.mxu0 %v4930
    %6353 = vmatpush.bf16.msra.mxu0 %v4929
    %6354 = vmatmul.bf16.gmra.mxu0 %v1030
    %v6355 = vpop.f32.mrf.mxu0
    %v6356 = vadd.f32 %v6343, %v6355
    %v6357 = vpop.f32.mrf.mxu0
    %6358 = vdwg.mxu0
    %6359 = vmatpush.bf16.msra.mxu0 %v4944
    %6360 = vmatpush.bf16.msra.mxu0 %v4943
    %6361 = vmatpush.bf16.msra.mxu0 %v4942
    %6362 = vmatpush.bf16.msra.mxu0 %v4941
    %6363 = vmatpush.bf16.msra.mxu0 %v4940
    %6364 = vmatpush.bf16.msra.mxu0 %v4939
    %6365 = vmatpush.bf16.msra.mxu0 %v4938
    %6366 = vmatpush.bf16.msra.mxu0 %v4937
    %6367 = vmatmul.bf16.gmra.mxu0 %v1031
    %v6368 = vpop.f32.mrf.mxu0
    %v6369 = vadd.f32 %v6356, %v6368
    %v6370 = vpop.f32.mrf.mxu0
    %6371 = vdwg.mxu0
    %6372 = vmatpush.bf16.msra.mxu0 %v4952
    %6373 = vmatpush.bf16.msra.mxu0 %v4951
    %6374 = vmatpush.bf16.msra.mxu0 %v4950
    %6375 = vmatpush.bf16.msra.mxu0 %v4949
    %6376 = vmatpush.bf16.msra.mxu0 %v4948
    %6377 = vmatpush.bf16.msra.mxu0 %v4947
    %6378 = vmatpush.bf16.msra.mxu0 %v4946
    %6379 = vmatpush.bf16.msra.mxu0 %v4945
    %6380 = vmatmul.bf16.gmra.mxu0 %v1032
    %v6381 = vpop.f32.mrf.mxu0
    %v6382 = vadd.f32 %v6369, %v6381
    %v6383 = vpop.f32.mrf.mxu0
    %6384 = vdwg.mxu0
    %6385 = vmatpush.bf16.msra.mxu0 %v4960
    %6386 = vmatpush.bf16.msra.mxu0 %v4959
    %6387 = vmatpush.bf16.msra.mxu0 %v4958
    %6388 = vmatpush.bf16.msra.mxu0 %v4957
    %6389 = vmatpush.bf16.msra.mxu0 %v4956
    %6390 = vmatpush.bf16.msra.mxu0 %v4955
    %6391 = vmatpush.bf16.msra.mxu0 %v4954
    %6392 = vmatpush.bf16.msra.mxu0 %v4953
    %6393 = vmatmul.bf16.gmra.mxu0 %v1033
    %v6394 = vpop.f32.mrf.mxu0
    %v6395 = vadd.f32 %v6382, %v6394
    %v6396 = vpop.f32.mrf.mxu0
    %6397 = vdwg.mxu0
    %6398 = vmatpush.bf16.msra.mxu0 %v4968
    %6399 = vmatpush.bf16.msra.mxu0 %v4967
    %6400 = vmatpush.bf16.msra.mxu0 %v4966
    %6401 = vmatpush.bf16.msra.mxu0 %v4965
    %6402 = vmatpush.bf16.msra.mxu0 %v4964
    %6403 = vmatpush.bf16.msra.mxu0 %v4963
    %6404 = vmatpush.bf16.msra.mxu0 %v4962
    %6405 = vmatpush.bf16.msra.mxu0 %v4961
    %6406 = vmatmul.bf16.gmra.mxu0 %v1034
    %v6407 = vpop.f32.mrf.mxu0
    %v6408 = vadd.f32 %v6395, %v6407
    %v6409 = vpop.f32.mrf.mxu0
    %6410 = vdwg.mxu0
    %6411 = vmatpush.bf16.msra.mxu0 %v4976
    %6412 = vmatpush.bf16.msra.mxu0 %v4975
    %6413 = vmatpush.bf16.msra.mxu0 %v4974
    %6414 = vmatpush.bf16.msra.mxu0 %v4973
    %6415 = vmatpush.bf16.msra.mxu0 %v4972
    %6416 = vmatpush.bf16.msra.mxu0 %v4971
    %6417 = vmatpush.bf16.msra.mxu0 %v4970
    %6418 = vmatpush.bf16.msra.mxu0 %v4969
    %6419 = vmatmul.bf16.gmra.mxu0 %v1035
    %v6420 = vpop.f32.mrf.mxu0
    %v6421 = vadd.f32 %v6408, %v6420
    %v6422 = vpop.f32.mrf.mxu0
    %6423 = vdwg.mxu0
    %6424 = vmatpush.bf16.msra.mxu0 %v4984
    %6425 = vmatpush.bf16.msra.mxu0 %v4983
    %6426 = vmatpush.bf16.msra.mxu0 %v4982
    %6427 = vmatpush.bf16.msra.mxu0 %v4981
    %6428 = vmatpush.bf16.msra.mxu0 %v4980
    %6429 = vmatpush.bf16.msra.mxu0 %v4979
    %6430 = vmatpush.bf16.msra.mxu0 %v4978
    %6431 = vmatpush.bf16.msra.mxu0 %v4977
    %6432 = vmatmul.bf16.gmra.mxu0 %v1036
    %v6433 = vpop.f32.mrf.mxu0
    %v6434 = vadd.f32 %v6421, %v6433
    %v6435 = vpop.f32.mrf.mxu0
    %6436 = vdwg.mxu0
    %6437 = vmatpush.bf16.msra.mxu0 %v4992
    %6438 = vmatpush.bf16.msra.mxu0 %v4991
    %6439 = vmatpush.bf16.msra.mxu0 %v4990
    %6440 = vmatpush.bf16.msra.mxu0 %v4989
    %6441 = vmatpush.bf16.msra.mxu0 %v4988
    %6442 = vmatpush.bf16.msra.mxu0 %v4987
    %6443 = vmatpush.bf16.msra.mxu0 %v4986
    %6444 = vmatpush.bf16.msra.mxu0 %v4985
    %6445 = vmatmul.bf16.gmra.mxu0 %v1037
    %v6446 = vpop.f32.mrf.mxu0
    %v6447 = vadd.f32 %v6434, %v6446
    %v6448 = vpop.f32.mrf.mxu0
    %6449 = vdwg.mxu0
    %6450 = vmatpush.bf16.msra.mxu0 %v5000
    %6451 = vmatpush.bf16.msra.mxu0 %v4999
    %6452 = vmatpush.bf16.msra.mxu0 %v4998
    %6453 = vmatpush.bf16.msra.mxu0 %v4997
    %6454 = vmatpush.bf16.msra.mxu0 %v4996
    %6455 = vmatpush.bf16.msra.mxu0 %v4995
    %6456 = vmatpush.bf16.msra.mxu0 %v4994
    %6457 = vmatpush.bf16.msra.mxu0 %v4993
    %6458 = vmatmul.bf16.gmra.mxu0 %v1038
    %v6459 = vpop.f32.mrf.mxu0
    %v6460 = vadd.f32 %v6447, %v6459
    %v6461 = vpop.f32.mrf.mxu0
    %6462 = vdwg.mxu0
    %6463 = vmatpush.bf16.msra.mxu0 %v5008
    %6464 = vmatpush.bf16.msra.mxu0 %v5007
    %6465 = vmatpush.bf16.msra.mxu0 %v5006
    %6466 = vmatpush.bf16.msra.mxu0 %v5005
    %6467 = vmatpush.bf16.msra.mxu0 %v5004
    %6468 = vmatpush.bf16.msra.mxu0 %v5003
    %6469 = vmatpush.bf16.msra.mxu0 %v5002
    %6470 = vmatpush.bf16.msra.mxu0 %v5001
    %6471 = vmatmul.bf16.gmra.mxu0 %v1039
    %v6472 = vpop.f32.mrf.mxu0
    %v6473 = vadd.f32 %v6460, %v6472
    %v6474 = vpop.f32.mrf.mxu0
    %6475 = vdwg.mxu0
    %6476 = vmatpush.bf16.msra.mxu0 %v5016
    %6477 = vmatpush.bf16.msra.mxu0 %v5015
    %6478 = vmatpush.bf16.msra.mxu0 %v5014
    %6479 = vmatpush.bf16.msra.mxu0 %v5013
    %6480 = vmatpush.bf16.msra.mxu0 %v5012
    %6481 = vmatpush.bf16.msra.mxu0 %v5011
    %6482 = vmatpush.bf16.msra.mxu0 %v5010
    %6483 = vmatpush.bf16.msra.mxu0 %v5009
    %6484 = vmatmul.bf16.gmra.mxu0 %v1040
    %v6485 = vpop.f32.mrf.mxu0
    %v6486 = vadd.f32 %v6473, %v6485
    %v6487 = vpop.f32.mrf.mxu0
    %6488 = vdwg.mxu0
    %6489 = vmatpush.bf16.msra.mxu0 %v5024
    %6490 = vmatpush.bf16.msra.mxu0 %v5023
    %6491 = vmatpush.bf16.msra.mxu0 %v5022
    %6492 = vmatpush.bf16.msra.mxu0 %v5021
    %6493 = vmatpush.bf16.msra.mxu0 %v5020
    %6494 = vmatpush.bf16.msra.mxu0 %v5019
    %6495 = vmatpush.bf16.msra.mxu0 %v5018
    %6496 = vmatpush.bf16.msra.mxu0 %v5017
    %6497 = vmatmul.bf16.gmra.mxu0 %v1041
    %v6498 = vpop.f32.mrf.mxu0
    %v6499 = vadd.f32 %v6486, %v6498
    %v6500 = vpop.f32.mrf.mxu0
    %6501 = vdwg.mxu0
    %6502 = vmatpush.bf16.msra.mxu0 %v5032
    %6503 = vmatpush.bf16.msra.mxu0 %v5031
    %6504 = vmatpush.bf16.msra.mxu0 %v5030
    %6505 = vmatpush.bf16.msra.mxu0 %v5029
    %6506 = vmatpush.bf16.msra.mxu0 %v5028
    %6507 = vmatpush.bf16.msra.mxu0 %v5027
    %6508 = vmatpush.bf16.msra.mxu0 %v5026
    %6509 = vmatpush.bf16.msra.mxu0 %v5025
    %6510 = vmatmul.bf16.gmra.mxu0 %v1042
    %v6511 = vpop.f32.mrf.mxu0
    %v6512 = vadd.f32 %v6499, %v6511
    %v6513 = vpop.f32.mrf.mxu0
    %6514 = vdwg.mxu0
    %6515 = vmatpush.bf16.msra.mxu0 %v5040
    %6516 = vmatpush.bf16.msra.mxu0 %v5039
    %6517 = vmatpush.bf16.msra.mxu0 %v5038
    %6518 = vmatpush.bf16.msra.mxu0 %v5037
    %6519 = vmatpush.bf16.msra.mxu0 %v5036
    %6520 = vmatpush.bf16.msra.mxu0 %v5035
    %6521 = vmatpush.bf16.msra.mxu0 %v5034
    %6522 = vmatpush.bf16.msra.mxu0 %v5033
    %6523 = vmatmul.bf16.gmra.mxu0 %v1043
    %v6524 = vpop.f32.mrf.mxu0
    %v6525 = vadd.f32 %v6512, %v6524
    %v6526 = vpop.f32.mrf.mxu0
    %6527 = vdwg.mxu0
    %6528 = vmatpush.bf16.msra.mxu0 %v5048
    %6529 = vmatpush.bf16.msra.mxu0 %v5047
    %6530 = vmatpush.bf16.msra.mxu0 %v5046
    %6531 = vmatpush.bf16.msra.mxu0 %v5045
    %6532 = vmatpush.bf16.msra.mxu0 %v5044
    %6533 = vmatpush.bf16.msra.mxu0 %v5043
    %6534 = vmatpush.bf16.msra.mxu0 %v5042
    %6535 = vmatpush.bf16.msra.mxu0 %v5041
    %6536 = vmatmul.bf16.gmra.mxu0 %v1044
    %v6537 = vpop.f32.mrf.mxu0
    %v6538 = vadd.f32 %v6525, %v6537
    %v6539 = vpop.f32.mrf.mxu0
    %6540 = vdwg.mxu0
    %6541 = vmatpush.bf16.msra.mxu0 %v5056
    %6542 = vmatpush.bf16.msra.mxu0 %v5055
    %6543 = vmatpush.bf16.msra.mxu0 %v5054
    %6544 = vmatpush.bf16.msra.mxu0 %v5053
    %6545 = vmatpush.bf16.msra.mxu0 %v5052
    %6546 = vmatpush.bf16.msra.mxu0 %v5051
    %6547 = vmatpush.bf16.msra.mxu0 %v5050
    %6548 = vmatpush.bf16.msra.mxu0 %v5049
    %6549 = vmatmul.bf16.gmra.mxu0 %v1045
    %v6550 = vpop.f32.mrf.mxu0
    %v6551 = vadd.f32 %v6538, %v6550
    %v6552 = vpop.f32.mrf.mxu0
    %6553 = vdwg.mxu0
    %6554 = vmatpush.bf16.msra.mxu0 %v5064
    %6555 = vmatpush.bf16.msra.mxu0 %v5063
    %6556 = vmatpush.bf16.msra.mxu0 %v5062
    %6557 = vmatpush.bf16.msra.mxu0 %v5061
    %6558 = vmatpush.bf16.msra.mxu0 %v5060
    %6559 = vmatpush.bf16.msra.mxu0 %v5059
    %6560 = vmatpush.bf16.msra.mxu0 %v5058
    %6561 = vmatpush.bf16.msra.mxu0 %v5057
    %6562 = vmatmul.bf16.gmra.mxu0 %v1046
    %v6563 = vpop.f32.mrf.mxu0
    %v6564 = vadd.f32 %v6551, %v6563
    %v6565 = vpop.f32.mrf.mxu0
    %6566 = vdwg.mxu0
    %6567 = vmatpush.bf16.msra.mxu0 %v5072
    %6568 = vmatpush.bf16.msra.mxu0 %v5071
    %6569 = vmatpush.bf16.msra.mxu0 %v5070
    %6570 = vmatpush.bf16.msra.mxu0 %v5069
    %6571 = vmatpush.bf16.msra.mxu0 %v5068
    %6572 = vmatpush.bf16.msra.mxu0 %v5067
    %6573 = vmatpush.bf16.msra.mxu0 %v5066
    %6574 = vmatpush.bf16.msra.mxu0 %v5065
    %6575 = vmatmul.bf16.gmra.mxu0 %v1047
    %v6576 = vpop.f32.mrf.mxu0
    %v6577 = vadd.f32 %v6564, %v6576
    %v6578 = vpop.f32.mrf.mxu0
    %6579 = vdwg.mxu0
    %6580 = vmatpush.bf16.msra.mxu0 %v5080
    %6581 = vmatpush.bf16.msra.mxu0 %v5079
    %6582 = vmatpush.bf16.msra.mxu0 %v5078
    %6583 = vmatpush.bf16.msra.mxu0 %v5077
    %6584 = vmatpush.bf16.msra.mxu0 %v5076
    %6585 = vmatpush.bf16.msra.mxu0 %v5075
    %6586 = vmatpush.bf16.msra.mxu0 %v5074
    %6587 = vmatpush.bf16.msra.mxu0 %v5073
    %6588 = vmatmul.bf16.gmra.mxu0 %v1048
    %v6589 = vpop.f32.mrf.mxu0
    %v6590 = vadd.f32 %v6577, %v6589
    %v6591 = vpop.f32.mrf.mxu0
    %6592 = vdwg.mxu0
    %v6593 = vld [vmem:[#allocation7] sm:$0x1]
    %v6595 = vperm.slane %v6593, 0
    %v6597 = vadd.f32 %v6590, %v6595
    %vm6598 = vcmask 74752
    %6599 = vst.msk [vmem:[#allocation8] sm:$0x3] %vm6598, %v6597
    // Predicated region
    $region26: #{tpu_custom_call.1} parent=1 // pred_check
      _
    $region27: #{tpu_custom_call.1} parent=1 // pred_check_branch
      %6601 = sbr.rel (0) target = $region29
    $region28: #{tpu_custom_call.1} parent=1 // pred_region
      %6603 = vsyncadd [#allocation4], 0
      %s6605 = sshll.u32 [#allocation8], 4
      %s6606 = int_to_ptr.vmem [resolvable:$true] %s6605
      %s6607 = sshll.u32 %s3, 4
      %s6608 = int_to_ptr.hbm [resolvable:$true] %s6607
      %6610 = dma.vmem_to_hbm [thread:$0]  %s6606, 32, %s6608, [#allocation4]
    $region29: #{tpu_custom_call.1} parent=1 // pred_fallthru
      _
    // Predicated region
    $region30: #{tpu_custom_call.1} parent=1 // pred_check
      _
    $region31: #{tpu_custom_call.1} parent=1 // pred_check_branch
      %6612 = sbr.rel (0) target = $region33
    $region32: #{tpu_custom_call.1} parent=1 // pred_region
      %6614 = dma.done [#allocation4], 32
    $region33: #{tpu_custom_call.1} parent=1 // pred_fallthru
      _
    %6615 = vsyncpa [#allocation3], 1
    %6616 = vsyncpa [#allocation6], 1
    %6617 = vsyncpa [#allocation4], 1

</llo_original>
